<compile_context>
chip_gen: v6e
topology: v6e:2x2x1
jax: 0.10.0
libtpu: 0.0.40
codegen_flags: <defaults>
</compile_context>

<pallas_src>
import functools

import jax
import jax.numpy as jnp
from jax.experimental import pallas as pl
from jax.experimental.pallas import tpu as pltpu


def _round_up(x, m):
    return (x + m - 1) // m * m


# ----------------------------------------------------------------------------
# Generation-aware VMEM / core planning
# ----------------------------------------------------------------------------
def _tpu_vmem_plan():
    """Returns (num_tensorcores_to_shard_batch_over, per-core VMEM budget bytes)."""
    kind = ""
    try:
        kind = jax.devices()[0].device_kind.lower()
    except Exception:
        pass
    if "v7" in kind:                       # v7x: 2 TCs/chip, 64 MiB VMEM per TC
        cores, budget = 2, 48 * 1024 * 1024
    elif "v5p" in kind or "v4" in kind:    # megacore parts
        cores, budget = 2, 56 * 1024 * 1024
    else:                                  # v5e / v6e: 1 TC, 128 MiB VMEM
        cores, budget = 1, 100 * 1024 * 1024
    try:  # clamp to reported physical capacity when the query is available
        cap = pltpu.get_tpu_info().vmem_capacity_bytes
        budget = min(budget, int(cap * 0.8))
    except Exception:
        pass
    return cores, budget


def _select_tiles(T, b_pad, h_pad, i_pad, o_pad, cb, n_cores, vmem_budget):
    """Pick (n_btile, tb, tt) from an explicit per-TC VMEM budget."""
    def needed(tt, tb):
        weights = (i_pad + 2 * h_pad) * h_pad * cb \
                  + h_pad * o_pad * cb + h_pad * 4          # wih + wr + b_ih (1-buf)
        x_in = 2 * tt * tb * i_pad * cb                      # double-buffered input
        out_seq = 2 * tt * tb * o_pad * 4                    # double-buffered output
        states = 2 * 2 * tb * h_pad * 4                      # final hy/hz blocks
        scratch = tb * 2 * h_pad * 4                         # [hz|hy] carry scratch
        live = 4 * tb * h_pad * 4                            # spill headroom for loop values
        return weights + x_in + out_seq + states + scratch + live

    # Split the batch only where it buys real parallelism (multi-TC chips).
    n_btile = 1
    if n_cores > 1 and b_pad >= 8 * n_cores and b_pad % (8 * n_cores) == 0:
        n_btile = n_cores

    tt_max = min(32, T)
    cands = [tt_max] + [c for c in (32, 16, 8, 4, 2, 1) if c < tt_max]
    while True:
        tb = b_pad // n_btile
        for tt in cands:
            if needed(tt, tb) <= vmem_budget:
                return n_btile, tb, tt
        # VMEM escape hatch only: split the batch further (even on 1-TC parts).
        nxt = n_btile * 2
        if b_pad % nxt == 0 and (b_pad // nxt) % 8 == 0 and (b_pad // nxt) >= 8:
            n_btile = nxt
        else:
            return n_btile, b_pad // n_btile, 1


# ----------------------------------------------------------------------------
# Kernel
# ----------------------------------------------------------------------------
def _cornn_kernel(x_ref, wih_ref, b_ih_ref, wr_ref,
                  out_seq_ref, hy_out_ref, hz_out_ref,
                  carry_sc,
                  *, dt, gamma, epsilon, tt, t_total, h_pad, has_tail,
                  compute_dtype):
    t_blk = pl.program_id(1)

    @pl.when(t_blk == 0)
    def _():
        carry_sc[...] = jnp.zeros_like(carry_sc)

    # Pre-folded update coefficients (fewer VPU multiplies per step).
    a_z = 1.0 - dt * epsilon
    c_y = dt * gamma

    carry0 = carry_sc[...]
    hz0 = carry0[:, :h_pad]
    hy0 = carry0[:, h_pad:]

    def step(i, carry):
        hz, hy = carry
        # i2h(cat((x_t, hz, hy), 1)): ONE fused MXU dot, K = i_pad + 2*h_pad,
        # compute-dtype operands, f32 accumulation.
        lhs = jnp.concatenate(
            [x_ref[i], hz.astype(compute_dtype), hy.astype(compute_dtype)],
            axis=1)
        pre = jnp.dot(lhs, wih_ref[...],
                      preferred_element_type=jnp.float32) + b_ih_ref[...]
        hz_new = a_z * hz + dt * jnp.tanh(pre) - c_y * hy
        hy_new = hy + dt * hz_new
        # Fused readout: only a 128-lane-padded logits slab ever leaves VMEM.
        logits = jnp.dot(hy_new.astype(compute_dtype), wr_ref[...],
                         preferred_element_type=jnp.float32)

        if has_tail:
            t_global = t_blk * tt + i

            @pl.when(t_global < t_total)
            def _():
                out_seq_ref[i] = logits

            @pl.when(t_global == t_total - 1)
            def _():
                hy_out_ref[...] = hy_new
                hz_out_ref[...] = hz_new
        else:
            out_seq_ref[i] = logits
        return (hz_new, hy_new)

    hz_f, hy_f = jax.lax.fori_loop(0, tt, step, (hz0, hy0), unroll=True)

    # Persist the carry for the next time block (harmless garbage on the last).
    carry_sc[:, :h_pad] = hz_f
    carry_sc[:, h_pad:] = hy_f

    if not has_tail:
        @pl.when(t_blk == pl.num_programs(1) - 1)
        def _():
            hy_out_ref[...] = hy_f
            hz_out_ref[...] = hz_f


# ----------------------------------------------------------------------------
# Wrapper
# ----------------------------------------------------------------------------
def cornn_forward(x, params, *, dt, gamma, epsilon, states=None,
                  compute_dtype=jnp.bfloat16):
    """x: (batch, seq, n_inp) f32. Returns (output (batch,seq,n_out), [hy, hz])."""
    # TODO(synk): non-None `states` initial condition not wired into the kernel
    # (the reference default path uses zeros, which is what the kernel does).
    assert states is None
    wx, wz, wy, b_ih, wr, b_r = params
    B, T, n_inp = x.shape
    n_hid = wx.shape[1]
    n_out = wr.shape[1]

    if T == 0:
        zero = jnp.zeros((B, n_hid), jnp.float32)
        return jnp.zeros((B, 0, n_out), jnp.float32), [zero, zero]

    b_pad = _round_up(B, 8)
    h_pad = _round_up(n_hid, 128)
    i_pad = _round_up(max(n_inp, 1), 128)
    o_pad = _round_up(max(n_out, 1), 128)
    cb = jnp.dtype(compute_dtype).itemsize

    n_cores, vmem_budget = _tpu_vmem_plan()
    n_btile, tb, tt = _select_tiles(T, b_pad, h_pad, i_pad, o_pad, cb,
                                    n_cores, vmem_budget)
    n_tblk = pl.cdiv(T, tt)
    t_pad = n_tblk * tt
    has_tail = (T % tt) != 0

    # Time-major, zero-padded, compute-dtype input (tiny vs old (T,B,H) xw).
    x_tm = jnp.transpose(x, (1, 0, 2)).astype(compute_dtype)
    x_p = jnp.zeros((t_pad, b_pad, i_pad), compute_dtype)
    x_p = x_p.at[:T, :B, :n_inp].set(x_tm)

    # Stacked i2h weight [Wx; Wz; Wy] matching the in-kernel concat order.
    wih_p = jnp.zeros((i_pad + 2 * h_pad, h_pad), compute_dtype)
    wih_p = wih_p.at[:n_inp, :n_hid].set(wx.astype(compute_dtype))
    wih_p = wih_p.at[i_pad:i_pad + n_hid, :n_hid].set(wz.astype(compute_dtype))
    wih_p = wih_p.at[i_pad + h_pad:i_pad + h_pad + n_hid, :n_hid].set(
        wy.astype(compute_dtype))
    b_ih_p = jnp.zeros((1, h_pad), jnp.float32).at[:, :n_hid].set(
        jnp.asarray(b_ih, jnp.float32).reshape(1, n_hid))
    wr_p = jnp.zeros((h_pad, o_pad), compute_dtype).at[:n_hid, :n_out].set(
        wr.astype(compute_dtype))

    kernel = functools.partial(
        _cornn_kernel, dt=float(dt), gamma=float(gamma), epsilon=float(epsilon),
        tt=tt, t_total=T, h_pad=h_pad, has_tail=has_tail,
        compute_dtype=compute_dtype)

    grid_spec = pltpu.PrefetchScalarGridSpec(
        num_scalar_prefetch=0,
        grid=(n_btile, n_tblk),
        in_specs=[
            pl.BlockSpec((tt, tb, i_pad), lambda b, t: (t, b, 0)),        # x block
            pl.BlockSpec((i_pad + 2 * h_pad, h_pad), lambda b, t: (0, 0),
                         pipeline_mode=pl.Buffered(1)),                   # [Wx;Wz;Wy]
            pl.BlockSpec((1, h_pad), lambda b, t: (0, 0),
                         pipeline_mode=pl.Buffered(1)),                   # b_ih
            pl.BlockSpec((h_pad, o_pad), lambda b, t: (0, 0),
                         pipeline_mode=pl.Buffered(1)),                   # Wr
        ],
        out_specs=[
            pl.BlockSpec((tt, tb, o_pad), lambda b, t: (t, b, 0)),        # logits
            pl.BlockSpec((tb, h_pad), lambda b, t: (b, 0)),               # final hy
            pl.BlockSpec((tb, h_pad), lambda b, t: (b, 0)),               # final hz
        ],
        scratch_shapes=[
            pltpu.VMEM((tb, 2 * h_pad), jnp.float32),                     # [hz|hy]
        ],
    )

    cost = pl.CostEstimate(
        flops=int(2 * T * b_pad * (i_pad + 2 * h_pad) * h_pad
                  + 2 * T * b_pad * h_pad * o_pad
                  + 10 * T * b_pad * h_pad),
        transcendentals=int(T * b_pad * h_pad),
        bytes_accessed=int(x_p.size * cb + wih_p.size * cb + wr_p.size * cb
                           + b_ih_p.size * 4
                           + t_pad * b_pad * o_pad * 4 + 2 * b_pad * h_pad * 4),
    )

    out_seq_p, hy_p, hz_p = pl.pallas_call(
        kernel,
        grid_spec=grid_spec,
        out_shape=(
            jax.ShapeDtypeStruct((t_pad, b_pad, o_pad), jnp.float32),
            jax.ShapeDtypeStruct((b_pad, h_pad), jnp.float32),
            jax.ShapeDtypeStruct((b_pad, h_pad), jnp.float32),
        ),
        compiler_params=pltpu.CompilerParams(
            dimension_semantics=("parallel", "arbitrary"),
            vmem_limit_bytes=int(vmem_budget),
        ),
        cost_estimate=cost,
    )(x_p, wih_p, b_ih_p, wr_p)

    output = jnp.transpose(out_seq_p[:T, :B, :n_out], (1, 0, 2)) + b_r
    return output, [hy_p[:B, :n_hid], hz_p[:B, :n_hid]]


# ----------------------------------------------------------------------------
# Params + pure-JAX reference (mirrors the PyTorch module exactly)
# ----------------------------------------------------------------------------
def init_params(key, n_inp, n_hid, n_out):
    """PyTorch nn.Linear-style uniform init; i2h split by concat order (x,hz,hy)."""
    k1, k2, k3, k4 = jax.random.split(key, 4)
    fan_ih = n_inp + 2 * n_hid
    bnd_ih = 1.0 / (fan_ih ** 0.5)
    w_ih = jax.random.uniform(k1, (fan_ih, n_hid), jnp.float32, -bnd_ih, bnd_ih)
    b_ih = jax.random.uniform(k2, (1, n_hid), jnp.float32, -bnd_ih, bnd_ih)
    wx = w_ih[:n_inp]                       # (n_inp, n_hid)
    wz = w_ih[n_inp:n_inp + n_hid]          # (n_hid, n_hid)
    wy = w_ih[n_inp + n_hid:]               # (n_hid, n_hid)

    bnd_r = 1.0 / (n_hid ** 0.5)
    wr = jax.random.uniform(k3, (n_hid, n_out), jnp.float32, -bnd_r, bnd_r)
    b_r = jax.random.uniform(k4, (1, n_out), jnp.float32, -bnd_r, bnd_r)
    return (wx, wz, wy, b_ih, wr, b_r)


def cornn_reference(x, params, *, dt, gamma, epsilon):
    wx, wz, wy, b_ih, wr, b_r = params
    B, T, _ = x.shape
    n_hid = wx.shape[1]
    hy = jnp.zeros((B, n_hid), jnp.float32)
    hz = jnp.zeros((B, n_hid), jnp.float32)

    def step(carry, xt):
        hy, hz = carry
        pre = xt @ wx + hz @ wz + hy @ wy + b_ih
        hz = hz + dt * (jnp.tanh(pre) - gamma * hy - epsilon * hz)
        hy = hy + dt * hz
        return (hy, hz), hy

    (hy, hz), hys = jax.lax.scan(step, (hy, hz), jnp.transpose(x, (1, 0, 2)))
    out = jnp.transpose(hys, (1, 0, 2)) @ wr + b_r
    return out, [hy, hz]


if __name__ == "__main__":
    B, T, N_INP, N_HID, N_OUT = 2, 8, 4, 32, 8
    DT, GAMMA, EPS = 0.042, 2.7, 4.7

    key = jax.random.PRNGKey(0)
    kx, kp = jax.random.split(key)
    x = jax.random.normal(kx, (B, T, N_INP), jnp.float32)
    params = init_params(kp, N_INP, N_HID, N_OUT)

    ref_out, (ref_hy, ref_hz) = cornn_reference(x, params, dt=DT, gamma=GAMMA,
                                                epsilon=EPS)

    # Exact-precision path (f32 MXU operands): tight check vs reference.
    out, (hy, hz) = cornn_forward(x, params, dt=DT, gamma=GAMMA, epsilon=EPS,
                                  compute_dtype=jnp.float32)
    jax.block_until_ready(out)
    jax.block_until_ready(hy)
    jax.block_until_ready(hz)
    assert out.shape == (B, T, N_OUT)
    assert hy.shape == (B, N_HID) and hz.shape == (B, N_HID)
    assert jnp.allclose(out, ref_out, atol=1e-4, rtol=1e-4)
    assert jnp.allclose(hy, ref_hy, atol=1e-4, rtol=1e-4)
    assert jnp.allclose(hz, ref_hz, atol=1e-4, rtol=1e-4)

    # Performance path (bf16 operands, f32 carry/accumulation): loose check.
    out_bf, (hy_bf, hz_bf) = cornn_forward(x, params, dt=DT, gamma=GAMMA,
                                           epsilon=EPS,
                                           compute_dtype=jnp.bfloat16)
    jax.block_until_ready(out_bf)
    assert jnp.allclose(out_bf, ref_out, atol=1e-2, rtol=1e-2)
    assert jnp.allclose(hy_bf, ref_hy, atol=1e-2, rtol=1e-2)
    assert jnp.allclose(hz_bf, ref_hz, atol=1e-2, rtol=1e-2)

    print("KERNEL_OK")
</pallas_src>

<mosaic_0001>
module attributes {stable_mosaic.version = 11 : i64} {
  func.func @_cornn_kernel(%arg0: i32, %arg1: i32, %arg2: memref<8x8x128xf32, #tpu.memory_space<vmem>>, %arg3: memref<384x128xf32, #tpu.memory_space<vmem>>, %arg4: memref<1x128xf32, #tpu.memory_space<vmem>>, %arg5: memref<128x128xf32, #tpu.memory_space<vmem>>, %arg6: memref<8x8x128xf32, #tpu.memory_space<vmem>>, %arg7: memref<8x128xf32, #tpu.memory_space<vmem>>, %arg8: memref<8x128xf32, #tpu.memory_space<vmem>>, %arg9: memref<8x256xf32, #tpu.memory_space<vmem>>) attributes {dimension_semantics = [#tpu.dimension_semantics<parallel>, #tpu.dimension_semantics<arbitrary>], iteration_bounds = array<i64: 1, 1>, scalar_prefetch = 0 : i64, scratch_operands = 1 : i64, tpu.core_type = #tpu.core_type<tc>, window_params = [{transform_indices = @transform_0, window_bounds = array<i64: 8, 8, 128>}, {pipeline_mode = #tpu.pipeline_mode<synchronous>, transform_indices = @transform_1, window_bounds = array<i64: 384, 128>}, {pipeline_mode = #tpu.pipeline_mode<synchronous>, transform_indices = @transform_2, window_bounds = array<i64: 1, 128>}, {pipeline_mode = #tpu.pipeline_mode<synchronous>, transform_indices = @transform_3, window_bounds = array<i64: 128, 128>}, {transform_indices = @transform_4, window_bounds = array<i64: 8, 8, 128>}, {transform_indices = @transform_5, window_bounds = array<i64: 8, 128>}, {transform_indices = @transform_6, window_bounds = array<i64: 8, 128>}]} {
    %c0_i32 = arith.constant 0 : i32
    %0 = arith.cmpi eq, %arg1, %c0_i32 : i32
    %1 = arith.extui %0 : i1 to i32
    %c0_i32_0 = arith.constant 0 : i32
    %2 = arith.cmpi ne, %1, %c0_i32_0 : i32
    scf.if %2 {
      %cst_135 = arith.constant 0.000000e+00 : f32
      %227 = vector.broadcast %cst_135 : f32 to vector<8x256xf32>
      %c0_136 = arith.constant 0 : index
      %c0_137 = arith.constant 0 : index
      %228 = vector.load %arg9[%c0_136, %c0_137] : memref<8x256xf32, #tpu.memory_space<vmem>>, vector<8x256xf32>
      tpu.vector_store %arg9[%c0_136, %c0_137], %227 {strides = array<i32>} : memref<8x256xf32, #tpu.memory_space<vmem>>, vector<8x256xf32>,
    } else {
    }
    %c0 = arith.constant 0 : index
    %c0_1 = arith.constant 0 : index
    %3 = vector.load %arg9[%c0, %c0_1] : memref<8x256xf32, #tpu.memory_space<vmem>>, vector<8x256xf32>
    %4 = vector.extract_strided_slice %3 {offsets = [0, 0], sizes = [8, 128], strides = [1, 1]} : vector<8x256xf32> to vector<8x128xf32>
    %5 = vector.extract_strided_slice %3 {offsets = [0, 128], sizes = [8, 128], strides = [1, 1]} : vector<8x256xf32> to vector<8x128xf32>
    %c0_i32_2 = arith.constant 0 : i32
    %6 = arith.index_cast %c0_i32_2 : i32 to index
    %c0_3 = arith.constant 0 : index
    %c0_4 = arith.constant 0 : index
    %7 = vector.load %arg2[%6, %c0_3, %c0_4] : memref<8x8x128xf32, #tpu.memory_space<vmem>>, vector<1x8x128xf32>
    %8 = vector.shape_cast %7 : vector<1x8x128xf32> to vector<8x128xf32>
    %9 = tpu.concatenate %8, %4, %5 in 1 : vector<8x128xf32>, vector<8x128xf32>, vector<8x128xf32> -> vector<8x384xf32>
    %c0_5 = arith.constant 0 : index
    %c0_6 = arith.constant 0 : index
    %10 = vector.load %arg3[%c0_5, %c0_6] : memref<384x128xf32, #tpu.memory_space<vmem>>, vector<384x128xf32>
    %cst = arith.constant dense<0.000000e+00> : vector<8x128xf32>
    %11 = tpu.matmul %9, %10, %cst {dimension_numbers = #tpu.dot_dimension_numbers<[1], [0], [0], [1], [0, 0, 1, 1], [], []>} : vector<8x384xf32>, vector<384x128xf32>, vector<8x128xf32> -> vector<8x128xf32>
    %c0_7 = arith.constant 0 : index
    %c0_8 = arith.constant 0 : index
    %12 = vector.load %arg4[%c0_7, %c0_8] : memref<1x128xf32, #tpu.memory_space<vmem>>, vector<1x128xf32>
    %13 = vector.broadcast %12 : vector<1x128xf32> to vector<8x128xf32>
    %14 = arith.addf %11, %13 : vector<8x128xf32>
    %cst_9 = arith.constant 8.026000e-01 : f32
    %15 = vector.broadcast %cst_9 : f32 to vector<8x128xf32>
    %16 = arith.mulf %15, %4 : vector<8x128xf32>
    %17 = math.tanh %14 : vector<8x128xf32>
    %cst_10 = arith.constant 4.200000e-02 : f32
    %18 = vector.broadcast %cst_10 : f32 to vector<8x128xf32>
    %19 = arith.mulf %18, %17 : vector<8x128xf32>
    %20 = arith.addf %16, %19 : vector<8x128xf32>
    %cst_11 = arith.constant 1.134000e-01 : f32
    %21 = vector.broadcast %cst_11 : f32 to vector<8x128xf32>
    %22 = arith.mulf %21, %5 : vector<8x128xf32>
    %23 = arith.subf %20, %22 : vector<8x128xf32>
    %cst_12 = arith.constant 4.200000e-02 : f32
    %24 = vector.broadcast %cst_12 : f32 to vector<8x128xf32>
    %25 = arith.mulf %24, %23 : vector<8x128xf32>
    %26 = arith.addf %5, %25 : vector<8x128xf32>
    %c0_13 = arith.constant 0 : index
    %c0_14 = arith.constant 0 : index
    %27 = vector.load %arg5[%c0_13, %c0_14] : memref<128x128xf32, #tpu.memory_space<vmem>>, vector<128x128xf32>
    %cst_15 = arith.constant dense<0.000000e+00> : vector<8x128xf32>
    %28 = tpu.matmul %26, %27, %cst_15 {dimension_numbers = #tpu.dot_dimension_numbers<[1], [0], [0], [1], [0, 0, 1, 1], [], []>} : vector<8x128xf32>, vector<128x128xf32>, vector<8x128xf32> -> vector<8x128xf32>
    %29 = arith.index_cast %c0_i32_2 : i32 to index
    %c0_16 = arith.constant 0 : index
    %c0_17 = arith.constant 0 : index
    %30 = vector.load %arg6[%29, %c0_16, %c0_17] : memref<8x8x128xf32, #tpu.memory_space<vmem>>, vector<1x8x128xf32>
    %31 = vector.shape_cast %30 : vector<1x8x128xf32> to vector<8x128xf32>
    %32 = vector.shape_cast %28 : vector<8x128xf32> to vector<1x8x128xf32>
    tpu.vector_store %arg6[%29, %c0_16, %c0_17], %32 {strides = array<i32>} : memref<8x8x128xf32, #tpu.memory_space<vmem>>, vector<1x8x128xf32>,
    %c1_i32 = arith.constant 1 : i32
    %33 = arith.index_cast %c1_i32 : i32 to index
    %c0_18 = arith.constant 0 : index
    %c0_19 = arith.constant 0 : index
    %34 = vector.load %arg2[%33, %c0_18, %c0_19] : memref<8x8x128xf32, #tpu.memory_space<vmem>>, vector<1x8x128xf32>
    %35 = vector.shape_cast %34 : vector<1x8x128xf32> to vector<8x128xf32>
    %36 = tpu.concatenate %35, %23, %26 in 1 : vector<8x128xf32>, vector<8x128xf32>, vector<8x128xf32> -> vector<8x384xf32>
    %c0_20 = arith.constant 0 : index
    %c0_21 = arith.constant 0 : index
    %37 = vector.load %arg3[%c0_20, %c0_21] : memref<384x128xf32, #tpu.memory_space<vmem>>, vector<384x128xf32>
    %cst_22 = arith.constant dense<0.000000e+00> : vector<8x128xf32>
    %38 = tpu.matmul %36, %37, %cst_22 {dimension_numbers = #tpu.dot_dimension_numbers<[1], [0], [0], [1], [0, 0, 1, 1], [], []>} : vector<8x384xf32>, vector<384x128xf32>, vector<8x128xf32> -> vector<8x128xf32>
    %c0_23 = arith.constant 0 : index
    %c0_24 = arith.constant 0 : index
    %39 = vector.load %arg4[%c0_23, %c0_24] : memref<1x128xf32, #tpu.memory_space<vmem>>, vector<1x128xf32>
    %40 = vector.broadcast %39 : vector<1x128xf32> to vector<8x128xf32>
    %41 = arith.addf %38, %40 : vector<8x128xf32>
    %cst_25 = arith.constant 8.026000e-01 : f32
    %42 = vector.broadcast %cst_25 : f32 to vector<8x128xf32>
    %43 = arith.mulf %42, %23 : vector<8x128xf32>
    %44 = math.tanh %41 : vector<8x128xf32>
    %cst_26 = arith.constant 4.200000e-02 : f32
    %45 = vector.broadcast %cst_26 : f32 to vector<8x128xf32>
    %46 = arith.mulf %45, %44 : vector<8x128xf32>
    %47 = arith.addf %43, %46 : vector<8x128xf32>
    %cst_27 = arith.constant 1.134000e-01 : f32
    %48 = vector.broadcast %cst_27 : f32 to vector<8x128xf32>
    %49 = arith.mulf %48, %26 : vector<8x128xf32>
    %50 = arith.subf %47, %49 : vector<8x128xf32>
    %cst_28 = arith.constant 4.200000e-02 : f32
    %51 = vector.broadcast %cst_28 : f32 to vector<8x128xf32>
    %52 = arith.mulf %51, %50 : vector<8x128xf32>
    %53 = arith.addf %26, %52 : vector<8x128xf32>
    %c0_29 = arith.constant 0 : index
    %c0_30 = arith.constant 0 : index
    %54 = vector.load %arg5[%c0_29, %c0_30] : memref<128x128xf32, #tpu.memory_space<vmem>>, vector<128x128xf32>
    %cst_31 = arith.constant dense<0.000000e+00> : vector<8x128xf32>
    %55 = tpu.matmul %53, %54, %cst_31 {dimension_numbers = #tpu.dot_dimension_numbers<[1], [0], [0], [1], [0, 0, 1, 1], [], []>} : vector<8x128xf32>, vector<128x128xf32>, vector<8x128xf32> -> vector<8x128xf32>
    %56 = arith.index_cast %c1_i32 : i32 to index
    %c0_32 = arith.constant 0 : index
    %c0_33 = arith.constant 0 : index
    %57 = vector.load %arg6[%56, %c0_32, %c0_33] : memref<8x8x128xf32, #tpu.memory_space<vmem>>, vector<1x8x128xf32>
    %58 = vector.shape_cast %57 : vector<1x8x128xf32> to vector<8x128xf32>
    %59 = vector.shape_cast %55 : vector<8x128xf32> to vector<1x8x128xf32>
    tpu.vector_store %arg6[%56, %c0_32, %c0_33], %59 {strides = array<i32>} : memref<8x8x128xf32, #tpu.memory_space<vmem>>, vector<1x8x128xf32>,
    %c2_i32 = arith.constant 2 : i32
    %60 = arith.index_cast %c2_i32 : i32 to index
    %c0_34 = arith.constant 0 : index
    %c0_35 = arith.constant 0 : index
    %61 = vector.load %arg2[%60, %c0_34, %c0_35] : memref<8x8x128xf32, #tpu.memory_space<vmem>>, vector<1x8x128xf32>
    %62 = vector.shape_cast %61 : vector<1x8x128xf32> to vector<8x128xf32>
    %63 = tpu.concatenate %62, %50, %53 in 1 : vector<8x128xf32>, vector<8x128xf32>, vector<8x128xf32> -> vector<8x384xf32>
    %c0_36 = arith.constant 0 : index
    %c0_37 = arith.constant 0 : index
    %64 = vector.load %arg3[%c0_36, %c0_37] : memref<384x128xf32, #tpu.memory_space<vmem>>, vector<384x128xf32>
    %cst_38 = arith.constant dense<0.000000e+00> : vector<8x128xf32>
    %65 = tpu.matmul %63, %64, %cst_38 {dimension_numbers = #tpu.dot_dimension_numbers<[1], [0], [0], [1], [0, 0, 1, 1], [], []>} : vector<8x384xf32>, vector<384x128xf32>, vector<8x128xf32> -> vector<8x128xf32>
    %c0_39 = arith.constant 0 : index
    %c0_40 = arith.constant 0 : index
    %66 = vector.load %arg4[%c0_39, %c0_40] : memref<1x128xf32, #tpu.memory_space<vmem>>, vector<1x128xf32>
    %67 = vector.broadcast %66 : vector<1x128xf32> to vector<8x128xf32>
    %68 = arith.addf %65, %67 : vector<8x128xf32>
    %cst_41 = arith.constant 8.026000e-01 : f32
    %69 = vector.broadcast %cst_41 : f32 to vector<8x128xf32>
    %70 = arith.mulf %69, %50 : vector<8x128xf32>
    %71 = math.tanh %68 : vector<8x128xf32>
    %cst_42 = arith.constant 4.200000e-02 : f32
    %72 = vector.broadcast %cst_42 : f32 to vector<8x128xf32>
    %73 = arith.mulf %72, %71 : vector<8x128xf32>
    %74 = arith.addf %70, %73 : vector<8x128xf32>
    %cst_43 = arith.constant 1.134000e-01 : f32
    %75 = vector.broadcast %cst_43 : f32 to vector<8x128xf32>
    %76 = arith.mulf %75, %53 : vector<8x128xf32>
    %77 = arith.subf %74, %76 : vector<8x128xf32>
    %cst_44 = arith.constant 4.200000e-02 : f32
    %78 = vector.broadcast %cst_44 : f32 to vector<8x128xf32>
    %79 = arith.mulf %78, %77 : vector<8x128xf32>
    %80 = arith.addf %53, %79 : vector<8x128xf32>
    %c0_45 = arith.constant 0 : index
    %c0_46 = arith.constant 0 : index
    %81 = vector.load %arg5[%c0_45, %c0_46] : memref<128x128xf32, #tpu.memory_space<vmem>>, vector<128x128xf32>
    %cst_47 = arith.constant dense<0.000000e+00> : vector<8x128xf32>
    %82 = tpu.matmul %80, %81, %cst_47 {dimension_numbers = #tpu.dot_dimension_numbers<[1], [0], [0], [1], [0, 0, 1, 1], [], []>} : vector<8x128xf32>, vector<128x128xf32>, vector<8x128xf32> -> vector<8x128xf32>
    %83 = arith.index_cast %c2_i32 : i32 to index
    %c0_48 = arith.constant 0 : index
    %c0_49 = arith.constant 0 : index
    %84 = vector.load %arg6[%83, %c0_48, %c0_49] : memref<8x8x128xf32, #tpu.memory_space<vmem>>, vector<1x8x128xf32>
    %85 = vector.shape_cast %84 : vector<1x8x128xf32> to vector<8x128xf32>
    %86 = vector.shape_cast %82 : vector<8x128xf32> to vector<1x8x128xf32>
    tpu.vector_store %arg6[%83, %c0_48, %c0_49], %86 {strides = array<i32>} : memref<8x8x128xf32, #tpu.memory_space<vmem>>, vector<1x8x128xf32>,
    %c3_i32 = arith.constant 3 : i32
    %87 = arith.index_cast %c3_i32 : i32 to index
    %c0_50 = arith.constant 0 : index
    %c0_51 = arith.constant 0 : index
    %88 = vector.load %arg2[%87, %c0_50, %c0_51] : memref<8x8x128xf32, #tpu.memory_space<vmem>>, vector<1x8x128xf32>
    %89 = vector.shape_cast %88 : vector<1x8x128xf32> to vector<8x128xf32>
    %90 = tpu.concatenate %89, %77, %80 in 1 : vector<8x128xf32>, vector<8x128xf32>, vector<8x128xf32> -> vector<8x384xf32>
    %c0_52 = arith.constant 0 : index
    %c0_53 = arith.constant 0 : index
    %91 = vector.load %arg3[%c0_52, %c0_53] : memref<384x128xf32, #tpu.memory_space<vmem>>, vector<384x128xf32>
    %cst_54 = arith.constant dense<0.000000e+00> : vector<8x128xf32>
    %92 = tpu.matmul %90, %91, %cst_54 {dimension_numbers = #tpu.dot_dimension_numbers<[1], [0], [0], [1], [0, 0, 1, 1], [], []>} : vector<8x384xf32>, vector<384x128xf32>, vector<8x128xf32> -> vector<8x128xf32>
    %c0_55 = arith.constant 0 : index
    %c0_56 = arith.constant 0 : index
    %93 = vector.load %arg4[%c0_55, %c0_56] : memref<1x128xf32, #tpu.memory_space<vmem>>, vector<1x128xf32>
    %94 = vector.broadcast %93 : vector<1x128xf32> to vector<8x128xf32>
    %95 = arith.addf %92, %94 : vector<8x128xf32>
    %cst_57 = arith.constant 8.026000e-01 : f32
    %96 = vector.broadcast %cst_57 : f32 to vector<8x128xf32>
    %97 = arith.mulf %96, %77 : vector<8x128xf32>
    %98 = math.tanh %95 : vector<8x128xf32>
    %cst_58 = arith.constant 4.200000e-02 : f32
    %99 = vector.broadcast %cst_58 : f32 to vector<8x128xf32>
    %100 = arith.mulf %99, %98 : vector<8x128xf32>
    %101 = arith.addf %97, %100 : vector<8x128xf32>
    %cst_59 = arith.constant 1.134000e-01 : f32
    %102 = vector.broadcast %cst_59 : f32 to vector<8x128xf32>
    %103 = arith.mulf %102, %80 : vector<8x128xf32>
    %104 = arith.subf %101, %103 : vector<8x128xf32>
    %cst_60 = arith.constant 4.200000e-02 : f32
    %105 = vector.broadcast %cst_60 : f32 to vector<8x128xf32>
    %106 = arith.mulf %105, %104 : vector<8x128xf32>
    %107 = arith.addf %80, %106 : vector<8x128xf32>
    %c0_61 = arith.constant 0 : index
    %c0_62 = arith.constant 0 : index
    %108 = vector.load %arg5[%c0_61, %c0_62] : memref<128x128xf32, #tpu.memory_space<vmem>>, vector<128x128xf32>
    %cst_63 = arith.constant dense<0.000000e+00> : vector<8x128xf32>
    %109 = tpu.matmul %107, %108, %cst_63 {dimension_numbers = #tpu.dot_dimension_numbers<[1], [0], [0], [1], [0, 0, 1, 1], [], []>} : vector<8x128xf32>, vector<128x128xf32>, vector<8x128xf32> -> vector<8x128xf32>
    %110 = arith.index_cast %c3_i32 : i32 to index
    %c0_64 = arith.constant 0 : index
    %c0_65 = arith.constant 0 : index
    %111 = vector.load %arg6[%110, %c0_64, %c0_65] : memref<8x8x128xf32, #tpu.memory_space<vmem>>, vector<1x8x128xf32>
    %112 = vector.shape_cast %111 : vector<1x8x128xf32> to vector<8x128xf32>
    %113 = vector.shape_cast %109 : vector<8x128xf32> to vector<1x8x128xf32>
    tpu.vector_store %arg6[%110, %c0_64, %c0_65], %113 {strides = array<i32>} : memref<8x8x128xf32, #tpu.memory_space<vmem>>, vector<1x8x128xf32>,
    %c4_i32 = arith.constant 4 : i32
    %114 = arith.index_cast %c4_i32 : i32 to index
    %c0_66 = arith.constant 0 : index
    %c0_67 = arith.constant 0 : index
    %115 = vector.load %arg2[%114, %c0_66, %c0_67] : memref<8x8x128xf32, #tpu.memory_space<vmem>>, vector<1x8x128xf32>
    %116 = vector.shape_cast %115 : vector<1x8x128xf32> to vector<8x128xf32>
    %117 = tpu.concatenate %116, %104, %107 in 1 : vector<8x128xf32>, vector<8x128xf32>, vector<8x128xf32> -> vector<8x384xf32>
    %c0_68 = arith.constant 0 : index
    %c0_69 = arith.constant 0 : index
    %118 = vector.load %arg3[%c0_68, %c0_69] : memref<384x128xf32, #tpu.memory_space<vmem>>, vector<384x128xf32>
    %cst_70 = arith.constant dense<0.000000e+00> : vector<8x128xf32>
    %119 = tpu.matmul %117, %118, %cst_70 {dimension_numbers = #tpu.dot_dimension_numbers<[1], [0], [0], [1], [0, 0, 1, 1], [], []>} : vector<8x384xf32>, vector<384x128xf32>, vector<8x128xf32> -> vector<8x128xf32>
    %c0_71 = arith.constant 0 : index
    %c0_72 = arith.constant 0 : index
    %120 = vector.load %arg4[%c0_71, %c0_72] : memref<1x128xf32, #tpu.memory_space<vmem>>, vector<1x128xf32>
    %121 = vector.broadcast %120 : vector<1x128xf32> to vector<8x128xf32>
    %122 = arith.addf %119, %121 : vector<8x128xf32>
    %cst_73 = arith.constant 8.026000e-01 : f32
    %123 = vector.broadcast %cst_73 : f32 to vector<8x128xf32>
    %124 = arith.mulf %123, %104 : vector<8x128xf32>
    %125 = math.tanh %122 : vector<8x128xf32>
    %cst_74 = arith.constant 4.200000e-02 : f32
    %126 = vector.broadcast %cst_74 : f32 to vector<8x128xf32>
    %127 = arith.mulf %126, %125 : vector<8x128xf32>
    %128 = arith.addf %124, %127 : vector<8x128xf32>
    %cst_75 = arith.constant 1.134000e-01 : f32
    %129 = vector.broadcast %cst_75 : f32 to vector<8x128xf32>
    %130 = arith.mulf %129, %107 : vector<8x128xf32>
    %131 = arith.subf %128, %130 : vector<8x128xf32>
    %cst_76 = arith.constant 4.200000e-02 : f32
    %132 = vector.broadcast %cst_76 : f32 to vector<8x128xf32>
    %133 = arith.mulf %132, %131 : vector<8x128xf32>
    %134 = arith.addf %107, %133 : vector<8x128xf32>
    %c0_77 = arith.constant 0 : index
    %c0_78 = arith.constant 0 : index
    %135 = vector.load %arg5[%c0_77, %c0_78] : memref<128x128xf32, #tpu.memory_space<vmem>>, vector<128x128xf32>
    %cst_79 = arith.constant dense<0.000000e+00> : vector<8x128xf32>
    %136 = tpu.matmul %134, %135, %cst_79 {dimension_numbers = #tpu.dot_dimension_numbers<[1], [0], [0], [1], [0, 0, 1, 1], [], []>} : vector<8x128xf32>, vector<128x128xf32>, vector<8x128xf32> -> vector<8x128xf32>
    %137 = arith.index_cast %c4_i32 : i32 to index
    %c0_80 = arith.constant 0 : index
    %c0_81 = arith.constant 0 : index
    %138 = vector.load %arg6[%137, %c0_80, %c0_81] : memref<8x8x128xf32, #tpu.memory_space<vmem>>, vector<1x8x128xf32>
    %139 = vector.shape_cast %138 : vector<1x8x128xf32> to vector<8x128xf32>
    %140 = vector.shape_cast %136 : vector<8x128xf32> to vector<1x8x128xf32>
    tpu.vector_store %arg6[%137, %c0_80, %c0_81], %140 {strides = array<i32>} : memref<8x8x128xf32, #tpu.memory_space<vmem>>, vector<1x8x128xf32>,
    %c5_i32 = arith.constant 5 : i32
    %141 = arith.index_cast %c5_i32 : i32 to index
    %c0_82 = arith.constant 0 : index
    %c0_83 = arith.constant 0 : index
    %142 = vector.load %arg2[%141, %c0_82, %c0_83] : memref<8x8x128xf32, #tpu.memory_space<vmem>>, vector<1x8x128xf32>
    %143 = vector.shape_cast %142 : vector<1x8x128xf32> to vector<8x128xf32>
    %144 = tpu.concatenate %143, %131, %134 in 1 : vector<8x128xf32>, vector<8x128xf32>, vector<8x128xf32> -> vector<8x384xf32>
    %c0_84 = arith.constant 0 : index
    %c0_85 = arith.constant 0 : index
    %145 = vector.load %arg3[%c0_84, %c0_85] : memref<384x128xf32, #tpu.memory_space<vmem>>, vector<384x128xf32>
    %cst_86 = arith.constant dense<0.000000e+00> : vector<8x128xf32>
    %146 = tpu.matmul %144, %145, %cst_86 {dimension_numbers = #tpu.dot_dimension_numbers<[1], [0], [0], [1], [0, 0, 1, 1], [], []>} : vector<8x384xf32>, vector<384x128xf32>, vector<8x128xf32> -> vector<8x128xf32>
    %c0_87 = arith.constant 0 : index
    %c0_88 = arith.constant 0 : index
    %147 = vector.load %arg4[%c0_87, %c0_88] : memref<1x128xf32, #tpu.memory_space<vmem>>, vector<1x128xf32>
    %148 = vector.broadcast %147 : vector<1x128xf32> to vector<8x128xf32>
    %149 = arith.addf %146, %148 : vector<8x128xf32>
    %cst_89 = arith.constant 8.026000e-01 : f32
    %150 = vector.broadcast %cst_89 : f32 to vector<8x128xf32>
    %151 = arith.mulf %150, %131 : vector<8x128xf32>
    %152 = math.tanh %149 : vector<8x128xf32>
    %cst_90 = arith.constant 4.200000e-02 : f32
    %153 = vector.broadcast %cst_90 : f32 to vector<8x128xf32>
    %154 = arith.mulf %153, %152 : vector<8x128xf32>
    %155 = arith.addf %151, %154 : vector<8x128xf32>
    %cst_91 = arith.constant 1.134000e-01 : f32
    %156 = vector.broadcast %cst_91 : f32 to vector<8x128xf32>
    %157 = arith.mulf %156, %134 : vector<8x128xf32>
    %158 = arith.subf %155, %157 : vector<8x128xf32>
    %cst_92 = arith.constant 4.200000e-02 : f32
    %159 = vector.broadcast %cst_92 : f32 to vector<8x128xf32>
    %160 = arith.mulf %159, %158 : vector<8x128xf32>
    %161 = arith.addf %134, %160 : vector<8x128xf32>
    %c0_93 = arith.constant 0 : index
    %c0_94 = arith.constant 0 : index
    %162 = vector.load %arg5[%c0_93, %c0_94] : memref<128x128xf32, #tpu.memory_space<vmem>>, vector<128x128xf32>
    %cst_95 = arith.constant dense<0.000000e+00> : vector<8x128xf32>
    %163 = tpu.matmul %161, %162, %cst_95 {dimension_numbers = #tpu.dot_dimension_numbers<[1], [0], [0], [1], [0, 0, 1, 1], [], []>} : vector<8x128xf32>, vector<128x128xf32>, vector<8x128xf32> -> vector<8x128xf32>
    %164 = arith.index_cast %c5_i32 : i32 to index
    %c0_96 = arith.constant 0 : index
    %c0_97 = arith.constant 0 : index
    %165 = vector.load %arg6[%164, %c0_96, %c0_97] : memref<8x8x128xf32, #tpu.memory_space<vmem>>, vector<1x8x128xf32>
    %166 = vector.shape_cast %165 : vector<1x8x128xf32> to vector<8x128xf32>
    %167 = vector.shape_cast %163 : vector<8x128xf32> to vector<1x8x128xf32>
    tpu.vector_store %arg6[%164, %c0_96, %c0_97], %167 {strides = array<i32>} : memref<8x8x128xf32, #tpu.memory_space<vmem>>, vector<1x8x128xf32>,
    %c6_i32 = arith.constant 6 : i32
    %168 = arith.index_cast %c6_i32 : i32 to index
    %c0_98 = arith.constant 0 : index
    %c0_99 = arith.constant 0 : index
    %169 = vector.load %arg2[%168, %c0_98, %c0_99] : memref<8x8x128xf32, #tpu.memory_space<vmem>>, vector<1x8x128xf32>
    %170 = vector.shape_cast %169 : vector<1x8x128xf32> to vector<8x128xf32>
    %171 = tpu.concatenate %170, %158, %161 in 1 : vector<8x128xf32>, vector<8x128xf32>, vector<8x128xf32> -> vector<8x384xf32>
    %c0_100 = arith.constant 0 : index
    %c0_101 = arith.constant 0 : index
    %172 = vector.load %arg3[%c0_100, %c0_101] : memref<384x128xf32, #tpu.memory_space<vmem>>, vector<384x128xf32>
    %cst_102 = arith.constant dense<0.000000e+00> : vector<8x128xf32>
    %173 = tpu.matmul %171, %172, %cst_102 {dimension_numbers = #tpu.dot_dimension_numbers<[1], [0], [0], [1], [0, 0, 1, 1], [], []>} : vector<8x384xf32>, vector<384x128xf32>, vector<8x128xf32> -> vector<8x128xf32>
    %c0_103 = arith.constant 0 : index
    %c0_104 = arith.constant 0 : index
    %174 = vector.load %arg4[%c0_103, %c0_104] : memref<1x128xf32, #tpu.memory_space<vmem>>, vector<1x128xf32>
    %175 = vector.broadcast %174 : vector<1x128xf32> to vector<8x128xf32>
    %176 = arith.addf %173, %175 : vector<8x128xf32>
    %cst_105 = arith.constant 8.026000e-01 : f32
    %177 = vector.broadcast %cst_105 : f32 to vector<8x128xf32>
    %178 = arith.mulf %177, %158 : vector<8x128xf32>
    %179 = math.tanh %176 : vector<8x128xf32>
    %cst_106 = arith.constant 4.200000e-02 : f32
    %180 = vector.broadcast %cst_106 : f32 to vector<8x128xf32>
    %181 = arith.mulf %180, %179 : vector<8x128xf32>
    %182 = arith.addf %178, %181 : vector<8x128xf32>
    %cst_107 = arith.constant 1.134000e-01 : f32
    %183 = vector.broadcast %cst_107 : f32 to vector<8x128xf32>
    %184 = arith.mulf %183, %161 : vector<8x128xf32>
    %185 = arith.subf %182, %184 : vector<8x128xf32>
    %cst_108 = arith.constant 4.200000e-02 : f32
    %186 = vector.broadcast %cst_108 : f32 to vector<8x128xf32>
    %187 = arith.mulf %186, %185 : vector<8x128xf32>
    %188 = arith.addf %161, %187 : vector<8x128xf32>
    %c0_109 = arith.constant 0 : index
    %c0_110 = arith.constant 0 : index
    %189 = vector.load %arg5[%c0_109, %c0_110] : memref<128x128xf32, #tpu.memory_space<vmem>>, vector<128x128xf32>
    %cst_111 = arith.constant dense<0.000000e+00> : vector<8x128xf32>
    %190 = tpu.matmul %188, %189, %cst_111 {dimension_numbers = #tpu.dot_dimension_numbers<[1], [0], [0], [1], [0, 0, 1, 1], [], []>} : vector<8x128xf32>, vector<128x128xf32>, vector<8x128xf32> -> vector<8x128xf32>
    %191 = arith.index_cast %c6_i32 : i32 to index
    %c0_112 = arith.constant 0 : index
    %c0_113 = arith.constant 0 : index
    %192 = vector.load %arg6[%191, %c0_112, %c0_113] : memref<8x8x128xf32, #tpu.memory_space<vmem>>, vector<1x8x128xf32>
    %193 = vector.shape_cast %192 : vector<1x8x128xf32> to vector<8x128xf32>
    %194 = vector.shape_cast %190 : vector<8x128xf32> to vector<1x8x128xf32>
    tpu.vector_store %arg6[%191, %c0_112, %c0_113], %194 {strides = array<i32>} : memref<8x8x128xf32, #tpu.memory_space<vmem>>, vector<1x8x128xf32>,
    %c7_i32 = arith.constant 7 : i32
    %195 = arith.index_cast %c7_i32 : i32 to index
    %c0_114 = arith.constant 0 : index
    %c0_115 = arith.constant 0 : index
    %196 = vector.load %arg2[%195, %c0_114, %c0_115] : memref<8x8x128xf32, #tpu.memory_space<vmem>>, vector<1x8x128xf32>
    %197 = vector.shape_cast %196 : vector<1x8x128xf32> to vector<8x128xf32>
    %198 = tpu.concatenate %197, %185, %188 in 1 : vector<8x128xf32>, vector<8x128xf32>, vector<8x128xf32> -> vector<8x384xf32>
    %c0_116 = arith.constant 0 : index
    %c0_117 = arith.constant 0 : index
    %199 = vector.load %arg3[%c0_116, %c0_117] : memref<384x128xf32, #tpu.memory_space<vmem>>, vector<384x128xf32>
    %cst_118 = arith.constant dense<0.000000e+00> : vector<8x128xf32>
    %200 = tpu.matmul %198, %199, %cst_118 {dimension_numbers = #tpu.dot_dimension_numbers<[1], [0], [0], [1], [0, 0, 1, 1], [], []>} : vector<8x384xf32>, vector<384x128xf32>, vector<8x128xf32> -> vector<8x128xf32>
    %c0_119 = arith.constant 0 : index
    %c0_120 = arith.constant 0 : index
    %201 = vector.load %arg4[%c0_119, %c0_120] : memref<1x128xf32, #tpu.memory_space<vmem>>, vector<1x128xf32>
    %202 = vector.broadcast %201 : vector<1x128xf32> to vector<8x128xf32>
    %203 = arith.addf %200, %202 : vector<8x128xf32>
    %cst_121 = arith.constant 8.026000e-01 : f32
    %204 = vector.broadcast %cst_121 : f32 to vector<8x128xf32>
    %205 = arith.mulf %204, %185 : vector<8x128xf32>
    %206 = math.tanh %203 : vector<8x128xf32>
    %cst_122 = arith.constant 4.200000e-02 : f32
    %207 = vector.broadcast %cst_122 : f32 to vector<8x128xf32>
    %208 = arith.mulf %207, %206 : vector<8x128xf32>
    %209 = arith.addf %205, %208 : vector<8x128xf32>
    %cst_123 = arith.constant 1.134000e-01 : f32
    %210 = vector.broadcast %cst_123 : f32 to vector<8x128xf32>
    %211 = arith.mulf %210, %188 : vector<8x128xf32>
    %212 = arith.subf %209, %211 : vector<8x128xf32>
    %cst_124 = arith.constant 4.200000e-02 : f32
    %213 = vector.broadcast %cst_124 : f32 to vector<8x128xf32>
    %214 = arith.mulf %213, %212 : vector<8x128xf32>
    %215 = arith.addf %188, %214 : vector<8x128xf32>
    %c0_125 = arith.constant 0 : index
    %c0_126 = arith.constant 0 : index
    %216 = vector.load %arg5[%c0_125, %c0_126] : memref<128x128xf32, #tpu.memory_space<vmem>>, vector<128x128xf32>
    %cst_127 = arith.constant dense<0.000000e+00> : vector<8x128xf32>
    %217 = tpu.matmul %215, %216, %cst_127 {dimension_numbers = #tpu.dot_dimension_numbers<[1], [0], [0], [1], [0, 0, 1, 1], [], []>} : vector<8x128xf32>, vector<128x128xf32>, vector<8x128xf32> -> vector<8x128xf32>
    %218 = arith.index_cast %c7_i32 : i32 to index
    %c0_128 = arith.constant 0 : index
    %c0_129 = arith.constant 0 : index
    %219 = vector.load %arg6[%218, %c0_128, %c0_129] : memref<8x8x128xf32, #tpu.memory_space<vmem>>, vector<1x8x128xf32>
    %220 = vector.shape_cast %219 : vector<1x8x128xf32> to vector<8x128xf32>
    %221 = vector.shape_cast %217 : vector<8x128xf32> to vector<1x8x128xf32>
    tpu.vector_store %arg6[%218, %c0_128, %c0_129], %221 {strides = array<i32>} : memref<8x8x128xf32, #tpu.memory_space<vmem>>, vector<1x8x128xf32>,
    %c8_i32 = arith.constant 8 : i32
    %c0_130 = arith.constant 0 : index
    %c0_131 = arith.constant 0 : index
    %222 = vector.load %arg9[%c0_130, %c0_131] : memref<8x256xf32, #tpu.memory_space<vmem>>, vector<8x128xf32>
    tpu.vector_store %arg9[%c0_130, %c0_131], %212 {strides = array<i32>} : memref<8x256xf32, #tpu.memory_space<vmem>>, vector<8x128xf32>,
    %c0_132 = arith.constant 0 : index
    %c128 = arith.constant 128 : index
    %223 = vector.load %arg9[%c0_132, %c128] : memref<8x256xf32, #tpu.memory_space<vmem>>, vector<8x128xf32>
    tpu.vector_store %arg9[%c0_132, %c128], %215 {strides = array<i32>} : memref<8x256xf32, #tpu.memory_space<vmem>>, vector<8x128xf32>,
    %c0_i32_133 = arith.constant 0 : i32
    %224 = arith.cmpi eq, %arg1, %c0_i32_133 : i32
    %225 = arith.extui %224 : i1 to i32
    %c0_i32_134 = arith.constant 0 : i32
    %226 = arith.cmpi ne, %225, %c0_i32_134 : i32
    scf.if %226 {
      %c0_135 = arith.constant 0 : index
      %c0_136 = arith.constant 0 : index
      %227 = vector.load %arg7[%c0_135, %c0_136] : memref<8x128xf32, #tpu.memory_space<vmem>>, vector<8x128xf32>
      tpu.vector_store %arg7[%c0_135, %c0_136], %215 {strides = array<i32>} : memref<8x128xf32, #tpu.memory_space<vmem>>, vector<8x128xf32>,
      %c0_137 = arith.constant 0 : index
      %c0_138 = arith.constant 0 : index
      %228 = vector.load %arg8[%c0_137, %c0_138] : memref<8x128xf32, #tpu.memory_space<vmem>>, vector<8x128xf32>
      tpu.vector_store %arg8[%c0_137, %c0_138], %212 {strides = array<i32>} : memref<8x128xf32, #tpu.memory_space<vmem>>, vector<8x128xf32>,
    } else {
    }
    return
  }
  func.func @transform_0(%arg0: i32, %arg1: i32) -> (i32, i32, i32) {
    %c0_i32 = arith.constant 0 : i32
    %c0_i32_0 = arith.constant 0 : i32
    return %arg1, %arg0, %c0_i32 : i32, i32, i32
  }
  func.func @transform_1(%arg0: i32, %arg1: i32) -> (i32, i32) {
    %c0_i32 = arith.constant 0 : i32
    %c0_i32_0 = arith.constant 0 : i32
    %c0_i32_1 = arith.constant 0 : i32
    return %c0_i32, %c0_i32_0 : i32, i32
  }
  func.func @transform_2(%arg0: i32, %arg1: i32) -> (i32, i32) {
    %c0_i32 = arith.constant 0 : i32
    %c0_i32_0 = arith.constant 0 : i32
    %c0_i32_1 = arith.constant 0 : i32
    return %c0_i32, %c0_i32_0 : i32, i32
  }
  func.func @transform_3(%arg0: i32, %arg1: i32) -> (i32, i32) {
    %c0_i32 = arith.constant 0 : i32
    %c0_i32_0 = arith.constant 0 : i32
    %c0_i32_1 = arith.constant 0 : i32
    return %c0_i32, %c0_i32_0 : i32, i32
  }
  func.func @transform_4(%arg0: i32, %arg1: i32) -> (i32, i32, i32) {
    %c0_i32 = arith.constant 0 : i32
    %c0_i32_0 = arith.constant 0 : i32
    return %arg1, %arg0, %c0_i32 : i32, i32, i32
  }
  func.func @transform_5(%arg0: i32, %arg1: i32) -> (i32, i32) {
    %c0_i32 = arith.constant 0 : i32
    %c0_i32_0 = arith.constant 0 : i32
    return %arg0, %c0_i32 : i32, i32
  }
  func.func @transform_6(%arg0: i32, %arg1: i32) -> (i32, i32) {
    %c0_i32 = arith.constant 0 : i32
    %c0_i32_0 = arith.constant 0 : i32
    return %arg0, %c0_i32 : i32, i32
  }
}

</mosaic_0001>

<llo_original>
// kernel: tpu_custom_call.1
$region0: #{tpu_custom_call.1}
  #allocation0 [shape = 'u32[]', space=smem, size = 0x4, offset = 0x4, fixed_abs, tag = 'smem constant byte address 0x4 - core index']
  #allocation1 [shape = 'u32[144,128]{1,0:T(1,128)}', space=vmem, size = 0x12000, scoped, tag = 'internal scratch']
  #allocation2 [shape = 'f32[8,256]{1,0:T(8,128)}', space=vmem, size = 0x2000, scoped, tag = 'scratch operand']
  %s0 = inlined_call_operand.hbm [shape: f32[8,8,128], index: 0, kind: input, shape index: {}]
  %s1 = inlined_call_operand.hbm [shape: f32[384,128], index: 1, kind: input, shape index: {}]
  %s2 = inlined_call_operand.vmem [shape: f32[1,128], index: 2, kind: input, shape index: {}]
  %s3 = inlined_call_operand.hbm [shape: f32[128,128], index: 3, kind: input, shape index: {}]
  %s4 = inlined_call_operand.hbm [shape: f32[8,8,128], index: 4, kind: output, shape index: {0}]
  %s5 = inlined_call_operand.hbm [shape: f32[8,128], index: 5, kind: output, shape index: {1}]
  %s6 = inlined_call_operand.hbm [shape: f32[8,128], index: 6, kind: output, shape index: {2}]
  %7 = xla_tuple %s4, %s5, %s6
  %s8 = sld [smem:[#allocation0]]
  $region62: #{tpu_custom_call.1} parent=0
    _
  %s10 = ssub.s32 1, %s8
  %s11 = scalar_select 0, %s10, %s8
  $region1: #{tpu_custom_call.1} parent=0
    #allocation3 [shape = 'u8[32768]{0}', space=vmem, size = 0x8000, scoped, tag = 'input window, operand 0, single buffered']
    #allocation4 [shape = 's32[1]{0}', space=sflag, size = 0x4, scoped, tag = 'scoped memory for tpu_custom_call.1']
    #allocation5 [shape = 's32[1]{0}', space=sflag, size = 0x4, scoped, tag = 'scoped memory for tpu_custom_call.1']
    #allocation6 [shape = 'u8[196608]{0}', space=vmem, size = 0x30000, scoped, tag = 'input window, operand 1, single buffered']
    #allocation7 [shape = 's32[1]{0}', space=sflag, size = 0x4, scoped, tag = 'scoped memory for tpu_custom_call.1']
    #allocation8 [shape = 'u8[65536]{0}', space=vmem, size = 0x10000, scoped, tag = 'input window, operand 3, single buffered']
    #allocation9 [shape = 'u8[32768]{0}', space=vmem, size = 0x8000, scoped, tag = 'output window, operand 0, single buffered']
    #allocation10 [shape = 'u8[4096]{0}', space=vmem, size = 0x1000, scoped, tag = 'output window, operand 1, single buffered']
    #allocation11 [shape = 's32[1]{0}', space=sflag, size = 0x4, scoped, tag = 'scoped memory for tpu_custom_call.1']
    #allocation12 [shape = 'u8[4096]{0}', space=vmem, size = 0x1000, scoped, tag = 'output window, operand 2, single buffered']
    %12 = vsyncpa [#allocation4], 0
    %13 = vsyncpa [#allocation7], 0
    %14 = vsyncpa [#allocation5], 0
    %15 = vsyncpa [#allocation11], 0
    // Predicated region
    $region2: #{tpu_custom_call.1} parent=1 // pred_check
      _
    $region3: #{tpu_custom_call.1} parent=1 // pred_check_branch
      %17 = sbr.rel (0) target = $region5
    $region4: #{tpu_custom_call.1} parent=1 // pred_region
      %s19 = ssub.s32 1024, 1024
      %20 = vsyncadd [#allocation4], %s19
      %s21 = sshll.u32 [#allocation3], 4
      %s22 = int_to_ptr.vmem [resolvable:$true] %s21
      %27 = dma.hbm_to_vmem [thread:$0]  %s0, 1024, %s22, [#allocation4], 128, 128, 8
    $region5: #{tpu_custom_call.1} parent=1 // pred_fallthru
      _
    // Predicated region
    $region6: #{tpu_custom_call.1} parent=1 // pred_check
      _
    $region7: #{tpu_custom_call.1} parent=1 // pred_check_branch
      %29 = sbr.rel (0) target = $region9
    $region8: #{tpu_custom_call.1} parent=1 // pred_region
      %s31 = ssub.s32 6144, 6144
      %32 = vsyncadd [#allocation7], %s31
      %s33 = sshll.u32 [#allocation6], 4
      %s34 = int_to_ptr.vmem [resolvable:$true] %s33
      %39 = dma.hbm_to_vmem [thread:$0]  %s1, 6144, %s34, [#allocation7], 128, 128, 8
    $region9: #{tpu_custom_call.1} parent=1 // pred_fallthru
      _
    // Predicated region
    $region10: #{tpu_custom_call.1} parent=1 // pred_check
      _
    $region11: #{tpu_custom_call.1} parent=1 // pred_check_branch
      %41 = sbr.rel (0) target = $region13
    $region12: #{tpu_custom_call.1} parent=1 // pred_region
      _
    $region13: #{tpu_custom_call.1} parent=1 // pred_fallthru
      _
    // Predicated region
    $region14: #{tpu_custom_call.1} parent=1 // pred_check
      _
    $region15: #{tpu_custom_call.1} parent=1 // pred_check_branch
      %43 = sbr.rel (0) target = $region17
    $region16: #{tpu_custom_call.1} parent=1 // pred_region
      %s45 = ssub.s32 2048, 2048
      %46 = vsyncadd [#allocation7], %s45
      %s47 = sshll.u32 [#allocation8], 4
      %s48 = int_to_ptr.vmem [resolvable:$true] %s47
      %53 = dma.hbm_to_vmem [thread:$0]  %s3, 2048, %s48, [#allocation7], 128, 128, 8
    $region17: #{tpu_custom_call.1} parent=1 // pred_fallthru
      _
    // Predicated region
    $region18: #{tpu_custom_call.1} parent=1 // pred_check
      _
    $region19: #{tpu_custom_call.1} parent=1 // pred_check_branch
      %55 = sbr.rel (0) target = $region21
    $region20: #{tpu_custom_call.1} parent=1 // pred_region
      %56 = dma.done [#allocation4], 1024
    $region21: #{tpu_custom_call.1} parent=1 // pred_fallthru
      _
    // Predicated region
    $region22: #{tpu_custom_call.1} parent=1 // pred_check
      _
    $region23: #{tpu_custom_call.1} parent=1 // pred_check_branch
      %58 = sbr.rel (0) target = $region25
    $region24: #{tpu_custom_call.1} parent=1 // pred_region
      %59 = dma.done [#allocation7], 6144
    $region25: #{tpu_custom_call.1} parent=1 // pred_fallthru
      _
    // Predicated region
    $region26: #{tpu_custom_call.1} parent=1 // pred_check
      _
    $region27: #{tpu_custom_call.1} parent=1 // pred_check_branch
      %61 = sbr.rel (0) target = $region29
    $region28: #{tpu_custom_call.1} parent=1 // pred_region
      %62 = dma.done [#allocation7], 2048
    $region29: #{tpu_custom_call.1} parent=1 // pred_fallthru
      _
    %p63 = scmp.eq.s32.totalorder 0, 0
    // Predicated region
    $region30: #{tpu_custom_call.1} parent=1 // pred_check
      %p64 = pneg %p63
    $region31: #{tpu_custom_call.1} parent=1 // pred_check_branch
      %66 = sbr.rel (%p64) target = $region33
    $region32: #{tpu_custom_call.1} parent=1 // pred_region
      %67 = vst [vmem:[#allocation2] sm:$0xff] 0.0
      %68 = vst [vmem:[#allocation2 + $0x8] sm:$0xff] 0.0
    $region33: #{tpu_custom_call.1} parent=1 // pred_fallthru
      _
    %v69 = vld [vmem:[#allocation2] sm:$0xff]
    %v70 = vld [vmem:[#allocation2 + $0x8] sm:$0xff]
    %v71 = vld [vmem:[#allocation3] sm:$0xff]
    %v72 = vld [vmem:[#allocation6] sm:$0xff]
    %v73 = vld [vmem:[#allocation6 + $0x8] sm:$0xff]
    %v74 = vld [vmem:[#allocation6 + $0x10] sm:$0xff]
    %v75 = vld [vmem:[#allocation6 + $0x18] sm:$0xff]
    %v76 = vld [vmem:[#allocation6 + $0x20] sm:$0xff]
    %v77 = vld [vmem:[#allocation6 + $0x28] sm:$0xff]
    %v78 = vld [vmem:[#allocation6 + $0x30] sm:$0xff]
    %v79 = vld [vmem:[#allocation6 + $0x38] sm:$0xff]
    %v80 = vld [vmem:[#allocation6 + $0x40] sm:$0xff]
    %v81 = vld [vmem:[#allocation6 + $0x48] sm:$0xff]
    %v82 = vld [vmem:[#allocation6 + $0x50] sm:$0xff]
    %v83 = vld [vmem:[#allocation6 + $0x58] sm:$0xff]
    %v84 = vld [vmem:[#allocation6 + $0x60] sm:$0xff]
    %v85 = vld [vmem:[#allocation6 + $0x68] sm:$0xff]
    %v86 = vld [vmem:[#allocation6 + $0x70] sm:$0xff]
    %v87 = vld [vmem:[#allocation6 + $0x78] sm:$0xff]
    %v88 = vld [vmem:[#allocation6 + $0x80] sm:$0xff]
    %v89 = vld [vmem:[#allocation6 + $0x88] sm:$0xff]
    %v90 = vld [vmem:[#allocation6 + $0x90] sm:$0xff]
    %v91 = vld [vmem:[#allocation6 + $0x98] sm:$0xff]
    %v92 = vld [vmem:[#allocation6 + $0xa0] sm:$0xff]
    %v93 = vld [vmem:[#allocation6 + $0xa8] sm:$0xff]
    %v94 = vld [vmem:[#allocation6 + $0xb0] sm:$0xff]
    %v95 = vld [vmem:[#allocation6 + $0xb8] sm:$0xff]
    %v96 = vld [vmem:[#allocation6 + $0xc0] sm:$0xff]
    %v97 = vld [vmem:[#allocation6 + $0xc8] sm:$0xff]
    %v98 = vld [vmem:[#allocation6 + $0xd0] sm:$0xff]
    %v99 = vld [vmem:[#allocation6 + $0xd8] sm:$0xff]
    %v100 = vld [vmem:[#allocation6 + $0xe0] sm:$0xff]
    %v101 = vld [vmem:[#allocation6 + $0xe8] sm:$0xff]
    %v102 = vld [vmem:[#allocation6 + $0xf0] sm:$0xff]
    %v103 = vld [vmem:[#allocation6 + $0xf8] sm:$0xff]
    %v104 = vld [vmem:[#allocation6 + $0x100] sm:$0xff]
    %v105 = vld [vmem:[#allocation6 + $0x108] sm:$0xff]
    %v106 = vld [vmem:[#allocation6 + $0x110] sm:$0xff]
    %v107 = vld [vmem:[#allocation6 + $0x118] sm:$0xff]
    %v108 = vld [vmem:[#allocation6 + $0x120] sm:$0xff]
    %v109 = vld [vmem:[#allocation6 + $0x128] sm:$0xff]
    %v110 = vld [vmem:[#allocation6 + $0x130] sm:$0xff]
    %v111 = vld [vmem:[#allocation6 + $0x138] sm:$0xff]
    %v112 = vld [vmem:[#allocation6 + $0x140] sm:$0xff]
    %v113 = vld [vmem:[#allocation6 + $0x148] sm:$0xff]
    %v114 = vld [vmem:[#allocation6 + $0x150] sm:$0xff]
    %v115 = vld [vmem:[#allocation6 + $0x158] sm:$0xff]
    %v116 = vld [vmem:[#allocation6 + $0x160] sm:$0xff]
    %v117 = vld [vmem:[#allocation6 + $0x168] sm:$0xff]
    %v118 = vld [vmem:[#allocation6 + $0x170] sm:$0xff]
    %v119 = vld [vmem:[#allocation6 + $0x178] sm:$0xff]
    %v120 = vld [vmem:[%s2] sm:$0x1]
    %v122 = vlaneseq
    %v123 = vshrl.u32 %v122, 7
    %v124 = vsub.s32 0, %v123
    %v125 = vrot.slane %v120, %v124
    %127 = vmatprep.subr.mxu0 0.0
    %128 = vmatpush1.msra.mxu0 %v87
    %129 = vmatprep.subr.mxu0 0.0
    %130 = vmatpush1.msra.mxu0 %v86
    %131 = vmatprep.subr.mxu0 0.0
    %132 = vmatpush1.msra.mxu0 %v85
    %133 = vmatprep.subr.mxu0 0.0
    %134 = vmatpush1.msra.mxu0 %v84
    %135 = vmatprep.subr.mxu0 0.0
    %136 = vmatpush1.msra.mxu0 %v83
    %137 = vmatprep.subr.mxu0 0.0
    %138 = vmatpush1.msra.mxu0 %v82
    %139 = vmatprep.subr.mxu0 0.0
    %140 = vmatpush1.msra.mxu0 %v81
    %141 = vmatprep.subr.mxu0 0.0
    %142 = vmatpush1.msra.mxu0 %v80
    %143 = vmatprep.subr.mxu0 0.0
    %144 = vmatpush1.msra.mxu0 %v79
    %145 = vmatprep.subr.mxu0 0.0
    %146 = vmatpush1.msra.mxu0 %v78
    %147 = vmatprep.subr.mxu0 0.0
    %148 = vmatpush1.msra.mxu0 %v77
    %149 = vmatprep.subr.mxu0 0.0
    %150 = vmatpush1.msra.mxu0 %v76
    %151 = vmatprep.subr.mxu0 0.0
    %152 = vmatpush1.msra.mxu0 %v75
    %153 = vmatprep.subr.mxu0 0.0
    %154 = vmatpush1.msra.mxu0 %v74
    %155 = vmatprep.subr.mxu0 0.0
    %156 = vmatpush1.msra.mxu0 %v73
    %157 = vmatprep.subr.mxu0 0.0
    %158 = vmatpush1.msra.mxu0 %v72
    %159 = vmatprep.subr.mxu0 0.0
    %160 = vmatpush2.msra.mxu0 %v103
    %161 = vmatprep.subr.mxu0 0.0
    %162 = vmatpush2.msra.mxu0 %v102
    %163 = vmatprep.subr.mxu0 0.0
    %164 = vmatpush2.msra.mxu0 %v101
    %165 = vmatprep.subr.mxu0 0.0
    %166 = vmatpush2.msra.mxu0 %v100
    %167 = vmatprep.subr.mxu0 0.0
    %168 = vmatpush2.msra.mxu0 %v99
    %169 = vmatprep.subr.mxu0 0.0
    %170 = vmatpush2.msra.mxu0 %v98
    %171 = vmatprep.subr.mxu0 0.0
    %172 = vmatpush2.msra.mxu0 %v97
    %173 = vmatprep.subr.mxu0 0.0
    %174 = vmatpush2.msra.mxu0 %v96
    %175 = vmatprep.subr.mxu0 0.0
    %176 = vmatpush2.msra.mxu0 %v95
    %177 = vmatprep.subr.mxu0 0.0
    %178 = vmatpush2.msra.mxu0 %v94
    %179 = vmatprep.subr.mxu0 0.0
    %180 = vmatpush2.msra.mxu0 %v93
    %181 = vmatprep.subr.mxu0 0.0
    %182 = vmatpush2.msra.mxu0 %v92
    %183 = vmatprep.subr.mxu0 0.0
    %184 = vmatpush2.msra.mxu0 %v91
    %185 = vmatprep.subr.mxu0 0.0
    %186 = vmatpush2.msra.mxu0 %v90
    %187 = vmatprep.subr.mxu0 0.0
    %188 = vmatpush2.msra.mxu0 %v89
    %189 = vmatprep.subr.mxu0 0.0
    %190 = vmatpush2.msra.mxu0 %v88
    %191 = vmatprep.mubr.f32.mxu0 %v69
    %192 = vmatmul.mubr.f32.gmra.mxu0 %v71
    %v193 = vpop.f32.mrf.mxu0
    %v194 = vadd.f32 %v125, %v193
    %v195 = vpop.f32.mrf.mxu0
    %196 = vdwg.mxu0
    %197 = vmatprep.subr.mxu0 0.0
    %198 = vmatpush1.msra.mxu0 %v119
    %199 = vmatprep.subr.mxu0 0.0
    %200 = vmatpush1.msra.mxu0 %v118
    %201 = vmatprep.subr.mxu0 0.0
    %202 = vmatpush1.msra.mxu0 %v117
    %203 = vmatprep.subr.mxu0 0.0
    %204 = vmatpush1.msra.mxu0 %v116
    %205 = vmatprep.subr.mxu0 0.0
    %206 = vmatpush1.msra.mxu0 %v115
    %207 = vmatprep.subr.mxu0 0.0
    %208 = vmatpush1.msra.mxu0 %v114
    %209 = vmatprep.subr.mxu0 0.0
    %210 = vmatpush1.msra.mxu0 %v113
    %211 = vmatprep.subr.mxu0 0.0
    %212 = vmatpush1.msra.mxu0 %v112
    %213 = vmatprep.subr.mxu0 0.0
    %214 = vmatpush1.msra.mxu0 %v111
    %215 = vmatprep.subr.mxu0 0.0
    %216 = vmatpush1.msra.mxu0 %v110
    %217 = vmatprep.subr.mxu0 0.0
    %218 = vmatpush1.msra.mxu0 %v109
    %219 = vmatprep.subr.mxu0 0.0
    %220 = vmatpush1.msra.mxu0 %v108
    %221 = vmatprep.subr.mxu0 0.0
    %222 = vmatpush1.msra.mxu0 %v107
    %223 = vmatprep.subr.mxu0 0.0
    %224 = vmatpush1.msra.mxu0 %v106
    %225 = vmatprep.subr.mxu0 0.0
    %226 = vmatpush1.msra.mxu0 %v105
    %227 = vmatprep.subr.mxu0 0.0
    %228 = vmatpush1.msra.mxu0 %v104
    %229 = vmatprep.subr.mxu0 0.0
    %230 = vmatpush2.msra.mxu0 0.0
    %231 = vmatprep.subr.mxu0 0.0
    %232 = vmatpush2.msra.mxu0 0.0
    %233 = vmatprep.subr.mxu0 0.0
    %234 = vmatpush2.msra.mxu0 0.0
    %235 = vmatprep.subr.mxu0 0.0
    %236 = vmatpush2.msra.mxu0 0.0
    %237 = vmatprep.subr.mxu0 0.0
    %238 = vmatpush2.msra.mxu0 0.0
    %239 = vmatprep.subr.mxu0 0.0
    %240 = vmatpush2.msra.mxu0 0.0
    %241 = vmatprep.subr.mxu0 0.0
    %242 = vmatpush2.msra.mxu0 0.0
    %243 = vmatprep.subr.mxu0 0.0
    %244 = vmatpush2.msra.mxu0 0.0
    %245 = vmatprep.subr.mxu0 0.0
    %246 = vmatpush2.msra.mxu0 0.0
    %247 = vmatprep.subr.mxu0 0.0
    %248 = vmatpush2.msra.mxu0 0.0
    %249 = vmatprep.subr.mxu0 0.0
    %250 = vmatpush2.msra.mxu0 0.0
    %251 = vmatprep.subr.mxu0 0.0
    %252 = vmatpush2.msra.mxu0 0.0
    %253 = vmatprep.subr.mxu0 0.0
    %254 = vmatpush2.msra.mxu0 0.0
    %255 = vmatprep.subr.mxu0 0.0
    %256 = vmatpush2.msra.mxu0 0.0
    %257 = vmatprep.subr.mxu0 0.0
    %258 = vmatpush2.msra.mxu0 0.0
    %259 = vmatprep.subr.mxu0 0.0
    %260 = vmatpush2.msra.mxu0 0.0
    %261 = vmatprep.mubr.f32.mxu0 0.0
    %262 = vmatmul.mubr.f32.gmra.mxu0 %v70
    %v263 = vpop.f32.mrf.mxu0
    %v264 = vadd.f32 %v194, %v263
    %v265 = vpop.f32.mrf.mxu0
    %266 = vdwg.mxu0
    %v267 = vmul.f32 %v69, 0.8026
    %v268 = vtanh.pop %v264
    %v269 = vmul.f32 %v268, 0.042
    %v270 = vadd.f32 %v267, %v269
    %v271 = vmul.f32 %v70, 0.1134
    %v272 = vsub.f32 %v270, %v271
    %v273 = vmul.f32 %v272, 0.042
    %v274 = vadd.f32 %v70, %v273
    %v275 = vld [vmem:[#allocation8] sm:$0xff]
    %v276 = vld [vmem:[#allocation8 + $0x8] sm:$0xff]
    %v277 = vld [vmem:[#allocation8 + $0x10] sm:$0xff]
    %v278 = vld [vmem:[#allocation8 + $0x18] sm:$0xff]
    %v279 = vld [vmem:[#allocation8 + $0x20] sm:$0xff]
    %v280 = vld [vmem:[#allocation8 + $0x28] sm:$0xff]
    %v281 = vld [vmem:[#allocation8 + $0x30] sm:$0xff]
    %v282 = vld [vmem:[#allocation8 + $0x38] sm:$0xff]
    %v283 = vld [vmem:[#allocation8 + $0x40] sm:$0xff]
    %v284 = vld [vmem:[#allocation8 + $0x48] sm:$0xff]
    %v285 = vld [vmem:[#allocation8 + $0x50] sm:$0xff]
    %v286 = vld [vmem:[#allocation8 + $0x58] sm:$0xff]
    %v287 = vld [vmem:[#allocation8 + $0x60] sm:$0xff]
    %v288 = vld [vmem:[#allocation8 + $0x68] sm:$0xff]
    %v289 = vld [vmem:[#allocation8 + $0x70] sm:$0xff]
    %v290 = vld [vmem:[#allocation8 + $0x78] sm:$0xff]
    %291 = vmatprep.subr.mxu0 0.0
    %292 = vmatpush1.msra.mxu0 %v290
    %293 = vmatprep.subr.mxu0 0.0
    %294 = vmatpush1.msra.mxu0 %v289
    %295 = vmatprep.subr.mxu0 0.0
    %296 = vmatpush1.msra.mxu0 %v288
    %297 = vmatprep.subr.mxu0 0.0
    %298 = vmatpush1.msra.mxu0 %v287
    %299 = vmatprep.subr.mxu0 0.0
    %300 = vmatpush1.msra.mxu0 %v286
    %301 = vmatprep.subr.mxu0 0.0
    %302 = vmatpush1.msra.mxu0 %v285
    %303 = vmatprep.subr.mxu0 0.0
    %304 = vmatpush1.msra.mxu0 %v284
    %305 = vmatprep.subr.mxu0 0.0
    %306 = vmatpush1.msra.mxu0 %v283
    %307 = vmatprep.subr.mxu0 0.0
    %308 = vmatpush1.msra.mxu0 %v282
    %309 = vmatprep.subr.mxu0 0.0
    %310 = vmatpush1.msra.mxu0 %v281
    %311 = vmatprep.subr.mxu0 0.0
    %312 = vmatpush1.msra.mxu0 %v280
    %313 = vmatprep.subr.mxu0 0.0
    %314 = vmatpush1.msra.mxu0 %v279
    %315 = vmatprep.subr.mxu0 0.0
    %316 = vmatpush1.msra.mxu0 %v278
    %317 = vmatprep.subr.mxu0 0.0
    %318 = vmatpush1.msra.mxu0 %v277
    %319 = vmatprep.subr.mxu0 0.0
    %320 = vmatpush1.msra.mxu0 %v276
    %321 = vmatprep.subr.mxu0 0.0
    %322 = vmatpush1.msra.mxu0 %v275
    %323 = vmatprep.subr.mxu0 0.0
    %324 = vmatpush2.msra.mxu0 0.0
    %325 = vmatprep.subr.mxu0 0.0
    %326 = vmatpush2.msra.mxu0 0.0
    %327 = vmatprep.subr.mxu0 0.0
    %328 = vmatpush2.msra.mxu0 0.0
    %329 = vmatprep.subr.mxu0 0.0
    %330 = vmatpush2.msra.mxu0 0.0
    %331 = vmatprep.subr.mxu0 0.0
    %332 = vmatpush2.msra.mxu0 0.0
    %333 = vmatprep.subr.mxu0 0.0
    %334 = vmatpush2.msra.mxu0 0.0
    %335 = vmatprep.subr.mxu0 0.0
    %336 = vmatpush2.msra.mxu0 0.0
    %337 = vmatprep.subr.mxu0 0.0
    %338 = vmatpush2.msra.mxu0 0.0
    %339 = vmatprep.subr.mxu0 0.0
    %340 = vmatpush2.msra.mxu0 0.0
    %341 = vmatprep.subr.mxu0 0.0
    %342 = vmatpush2.msra.mxu0 0.0
    %343 = vmatprep.subr.mxu0 0.0
    %344 = vmatpush2.msra.mxu0 0.0
    %345 = vmatprep.subr.mxu0 0.0
    %346 = vmatpush2.msra.mxu0 0.0
    %347 = vmatprep.subr.mxu0 0.0
    %348 = vmatpush2.msra.mxu0 0.0
    %349 = vmatprep.subr.mxu0 0.0
    %350 = vmatpush2.msra.mxu0 0.0
    %351 = vmatprep.subr.mxu0 0.0
    %352 = vmatpush2.msra.mxu0 0.0
    %353 = vmatprep.subr.mxu0 0.0
    %354 = vmatpush2.msra.mxu0 0.0
    %355 = vmatprep.mubr.f32.mxu0 0.0
    %356 = vmatmul.mubr.f32.gmra.mxu0 %v274
    %v357 = vpop.f32.mrf.mxu0
    %v358 = vadd.f32 0.0, %v357
    %v359 = vpop.f32.mrf.mxu0
    %360 = vdwg.mxu0
    %361 = vst [vmem:[#allocation9] sm:$0xff] %v358
    %s362 = scalar_lea.vmem [#allocation3], 8
    %v363 = vld [vmem:[%s362] sm:$0xff]
    %v364 = vld [vmem:[#allocation6] sm:$0xff]
    %v365 = vld [vmem:[#allocation6 + $0x8] sm:$0xff]
    %v366 = vld [vmem:[#allocation6 + $0x10] sm:$0xff]
    %v367 = vld [vmem:[#allocation6 + $0x18] sm:$0xff]
    %v368 = vld [vmem:[#allocation6 + $0x20] sm:$0xff]
    %v369 = vld [vmem:[#allocation6 + $0x28] sm:$0xff]
    %v370 = vld [vmem:[#allocation6 + $0x30] sm:$0xff]
    %v371 = vld [vmem:[#allocation6 + $0x38] sm:$0xff]
    %v372 = vld [vmem:[#allocation6 + $0x40] sm:$0xff]
    %v373 = vld [vmem:[#allocation6 + $0x48] sm:$0xff]
    %v374 = vld [vmem:[#allocation6 + $0x50] sm:$0xff]
    %v375 = vld [vmem:[#allocation6 + $0x58] sm:$0xff]
    %v376 = vld [vmem:[#allocation6 + $0x60] sm:$0xff]
    %v377 = vld [vmem:[#allocation6 + $0x68] sm:$0xff]
    %v378 = vld [vmem:[#allocation6 + $0x70] sm:$0xff]
    %v379 = vld [vmem:[#allocation6 + $0x78] sm:$0xff]
    %v380 = vld [vmem:[#allocation6 + $0x80] sm:$0xff]
    %v381 = vld [vmem:[#allocation6 + $0x88] sm:$0xff]
    %v382 = vld [vmem:[#allocation6 + $0x90] sm:$0xff]
    %v383 = vld [vmem:[#allocation6 + $0x98] sm:$0xff]
    %v384 = vld [vmem:[#allocation6 + $0xa0] sm:$0xff]
    %v385 = vld [vmem:[#allocation6 + $0xa8] sm:$0xff]
    %v386 = vld [vmem:[#allocation6 + $0xb0] sm:$0xff]
    %v387 = vld [vmem:[#allocation6 + $0xb8] sm:$0xff]
    %v388 = vld [vmem:[#allocation6 + $0xc0] sm:$0xff]
    %v389 = vld [vmem:[#allocation6 + $0xc8] sm:$0xff]
    %v390 = vld [vmem:[#allocation6 + $0xd0] sm:$0xff]
    %v391 = vld [vmem:[#allocation6 + $0xd8] sm:$0xff]
    %v392 = vld [vmem:[#allocation6 + $0xe0] sm:$0xff]
    %v393 = vld [vmem:[#allocation6 + $0xe8] sm:$0xff]
    %v394 = vld [vmem:[#allocation6 + $0xf0] sm:$0xff]
    %v395 = vld [vmem:[#allocation6 + $0xf8] sm:$0xff]
    %v396 = vld [vmem:[#allocation6 + $0x100] sm:$0xff]
    %v397 = vld [vmem:[#allocation6 + $0x108] sm:$0xff]
    %v398 = vld [vmem:[#allocation6 + $0x110] sm:$0xff]
    %v399 = vld [vmem:[#allocation6 + $0x118] sm:$0xff]
    %v400 = vld [vmem:[#allocation6 + $0x120] sm:$0xff]
    %v401 = vld [vmem:[#allocation6 + $0x128] sm:$0xff]
    %v402 = vld [vmem:[#allocation6 + $0x130] sm:$0xff]
    %v403 = vld [vmem:[#allocation6 + $0x138] sm:$0xff]
    %v404 = vld [vmem:[#allocation6 + $0x140] sm:$0xff]
    %v405 = vld [vmem:[#allocation6 + $0x148] sm:$0xff]
    %v406 = vld [vmem:[#allocation6 + $0x150] sm:$0xff]
    %v407 = vld [vmem:[#allocation6 + $0x158] sm:$0xff]
    %v408 = vld [vmem:[#allocation6 + $0x160] sm:$0xff]
    %v409 = vld [vmem:[#allocation6 + $0x168] sm:$0xff]
    %v410 = vld [vmem:[#allocation6 + $0x170] sm:$0xff]
    %v411 = vld [vmem:[#allocation6 + $0x178] sm:$0xff]
    %v412 = vld [vmem:[%s2] sm:$0x1]
    %v414 = vlaneseq
    %v415 = vshrl.u32 %v414, 7
    %v416 = vsub.s32 0, %v415
    %v417 = vrot.slane %v412, %v416
    %419 = vmatprep.subr.mxu0 0.0
    %420 = vmatpush1.msra.mxu0 %v379
    %421 = vmatprep.subr.mxu0 0.0
    %422 = vmatpush1.msra.mxu0 %v378
    %423 = vmatprep.subr.mxu0 0.0
    %424 = vmatpush1.msra.mxu0 %v377
    %425 = vmatprep.subr.mxu0 0.0
    %426 = vmatpush1.msra.mxu0 %v376
    %427 = vmatprep.subr.mxu0 0.0
    %428 = vmatpush1.msra.mxu0 %v375
    %429 = vmatprep.subr.mxu0 0.0
    %430 = vmatpush1.msra.mxu0 %v374
    %431 = vmatprep.subr.mxu0 0.0
    %432 = vmatpush1.msra.mxu0 %v373
    %433 = vmatprep.subr.mxu0 0.0
    %434 = vmatpush1.msra.mxu0 %v372
    %435 = vmatprep.subr.mxu0 0.0
    %436 = vmatpush1.msra.mxu0 %v371
    %437 = vmatprep.subr.mxu0 0.0
    %438 = vmatpush1.msra.mxu0 %v370
    %439 = vmatprep.subr.mxu0 0.0
    %440 = vmatpush1.msra.mxu0 %v369
    %441 = vmatprep.subr.mxu0 0.0
    %442 = vmatpush1.msra.mxu0 %v368
    %443 = vmatprep.subr.mxu0 0.0
    %444 = vmatpush1.msra.mxu0 %v367
    %445 = vmatprep.subr.mxu0 0.0
    %446 = vmatpush1.msra.mxu0 %v366
    %447 = vmatprep.subr.mxu0 0.0
    %448 = vmatpush1.msra.mxu0 %v365
    %449 = vmatprep.subr.mxu0 0.0
    %450 = vmatpush1.msra.mxu0 %v364
    %451 = vmatprep.subr.mxu0 0.0
    %452 = vmatpush2.msra.mxu0 %v395
    %453 = vmatprep.subr.mxu0 0.0
    %454 = vmatpush2.msra.mxu0 %v394
    %455 = vmatprep.subr.mxu0 0.0
    %456 = vmatpush2.msra.mxu0 %v393
    %457 = vmatprep.subr.mxu0 0.0
    %458 = vmatpush2.msra.mxu0 %v392
    %459 = vmatprep.subr.mxu0 0.0
    %460 = vmatpush2.msra.mxu0 %v391
    %461 = vmatprep.subr.mxu0 0.0
    %462 = vmatpush2.msra.mxu0 %v390
    %463 = vmatprep.subr.mxu0 0.0
    %464 = vmatpush2.msra.mxu0 %v389
    %465 = vmatprep.subr.mxu0 0.0
    %466 = vmatpush2.msra.mxu0 %v388
    %467 = vmatprep.subr.mxu0 0.0
    %468 = vmatpush2.msra.mxu0 %v387
    %469 = vmatprep.subr.mxu0 0.0
    %470 = vmatpush2.msra.mxu0 %v386
    %471 = vmatprep.subr.mxu0 0.0
    %472 = vmatpush2.msra.mxu0 %v385
    %473 = vmatprep.subr.mxu0 0.0
    %474 = vmatpush2.msra.mxu0 %v384
    %475 = vmatprep.subr.mxu0 0.0
    %476 = vmatpush2.msra.mxu0 %v383
    %477 = vmatprep.subr.mxu0 0.0
    %478 = vmatpush2.msra.mxu0 %v382
    %479 = vmatprep.subr.mxu0 0.0
    %480 = vmatpush2.msra.mxu0 %v381
    %481 = vmatprep.subr.mxu0 0.0
    %482 = vmatpush2.msra.mxu0 %v380
    %483 = vmatprep.mubr.f32.mxu0 %v272
    %484 = vmatmul.mubr.f32.gmra.mxu0 %v363
    %v485 = vpop.f32.mrf.mxu0
    %v486 = vadd.f32 %v417, %v485
    %v487 = vpop.f32.mrf.mxu0
    %488 = vdwg.mxu0
    %489 = vmatprep.subr.mxu0 0.0
    %490 = vmatpush1.msra.mxu0 %v411
    %491 = vmatprep.subr.mxu0 0.0
    %492 = vmatpush1.msra.mxu0 %v410
    %493 = vmatprep.subr.mxu0 0.0
    %494 = vmatpush1.msra.mxu0 %v409
    %495 = vmatprep.subr.mxu0 0.0
    %496 = vmatpush1.msra.mxu0 %v408
    %497 = vmatprep.subr.mxu0 0.0
    %498 = vmatpush1.msra.mxu0 %v407
    %499 = vmatprep.subr.mxu0 0.0
    %500 = vmatpush1.msra.mxu0 %v406
    %501 = vmatprep.subr.mxu0 0.0
    %502 = vmatpush1.msra.mxu0 %v405
    %503 = vmatprep.subr.mxu0 0.0
    %504 = vmatpush1.msra.mxu0 %v404
    %505 = vmatprep.subr.mxu0 0.0
    %506 = vmatpush1.msra.mxu0 %v403
    %507 = vmatprep.subr.mxu0 0.0
    %508 = vmatpush1.msra.mxu0 %v402
    %509 = vmatprep.subr.mxu0 0.0
    %510 = vmatpush1.msra.mxu0 %v401
    %511 = vmatprep.subr.mxu0 0.0
    %512 = vmatpush1.msra.mxu0 %v400
    %513 = vmatprep.subr.mxu0 0.0
    %514 = vmatpush1.msra.mxu0 %v399
    %515 = vmatprep.subr.mxu0 0.0
    %516 = vmatpush1.msra.mxu0 %v398
    %517 = vmatprep.subr.mxu0 0.0
    %518 = vmatpush1.msra.mxu0 %v397
    %519 = vmatprep.subr.mxu0 0.0
    %520 = vmatpush1.msra.mxu0 %v396
    %521 = vmatprep.subr.mxu0 0.0
    %522 = vmatpush2.msra.mxu0 0.0
    %523 = vmatprep.subr.mxu0 0.0
    %524 = vmatpush2.msra.mxu0 0.0
    %525 = vmatprep.subr.mxu0 0.0
    %526 = vmatpush2.msra.mxu0 0.0
    %527 = vmatprep.subr.mxu0 0.0
    %528 = vmatpush2.msra.mxu0 0.0
    %529 = vmatprep.subr.mxu0 0.0
    %530 = vmatpush2.msra.mxu0 0.0
    %531 = vmatprep.subr.mxu0 0.0
    %532 = vmatpush2.msra.mxu0 0.0
    %533 = vmatprep.subr.mxu0 0.0
    %534 = vmatpush2.msra.mxu0 0.0
    %535 = vmatprep.subr.mxu0 0.0
    %536 = vmatpush2.msra.mxu0 0.0
    %537 = vmatprep.subr.mxu0 0.0
    %538 = vmatpush2.msra.mxu0 0.0
    %539 = vmatprep.subr.mxu0 0.0
    %540 = vmatpush2.msra.mxu0 0.0
    %541 = vmatprep.subr.mxu0 0.0
    %542 = vmatpush2.msra.mxu0 0.0
    %543 = vmatprep.subr.mxu0 0.0
    %544 = vmatpush2.msra.mxu0 0.0
    %545 = vmatprep.subr.mxu0 0.0
    %546 = vmatpush2.msra.mxu0 0.0
    %547 = vmatprep.subr.mxu0 0.0
    %548 = vmatpush2.msra.mxu0 0.0
    %549 = vmatprep.subr.mxu0 0.0
    %550 = vmatpush2.msra.mxu0 0.0
    %551 = vmatprep.subr.mxu0 0.0
    %552 = vmatpush2.msra.mxu0 0.0
    %553 = vmatprep.mubr.f32.mxu0 0.0
    %554 = vmatmul.mubr.f32.gmra.mxu0 %v274
    %v555 = vpop.f32.mrf.mxu0
    %v556 = vadd.f32 %v486, %v555
    %v557 = vpop.f32.mrf.mxu0
    %558 = vdwg.mxu0
    %v559 = vmul.f32 %v272, 0.8026
    %v560 = vtanh.pop %v556
    %v561 = vmul.f32 %v560, 0.042
    %v562 = vadd.f32 %v559, %v561
    %v563 = vmul.f32 %v274, 0.1134
    %v564 = vsub.f32 %v562, %v563
    %v565 = vmul.f32 %v564, 0.042
    %v566 = vadd.f32 %v274, %v565
    %v567 = vld [vmem:[#allocation8] sm:$0xff]
    %v568 = vld [vmem:[#allocation8 + $0x8] sm:$0xff]
    %v569 = vld [vmem:[#allocation8 + $0x10] sm:$0xff]
    %v570 = vld [vmem:[#allocation8 + $0x18] sm:$0xff]
    %v571 = vld [vmem:[#allocation8 + $0x20] sm:$0xff]
    %v572 = vld [vmem:[#allocation8 + $0x28] sm:$0xff]
    %v573 = vld [vmem:[#allocation8 + $0x30] sm:$0xff]
    %v574 = vld [vmem:[#allocation8 + $0x38] sm:$0xff]
    %v575 = vld [vmem:[#allocation8 + $0x40] sm:$0xff]
    %v576 = vld [vmem:[#allocation8 + $0x48] sm:$0xff]
    %v577 = vld [vmem:[#allocation8 + $0x50] sm:$0xff]
    %v578 = vld [vmem:[#allocation8 + $0x58] sm:$0xff]
    %v579 = vld [vmem:[#allocation8 + $0x60] sm:$0xff]
    %v580 = vld [vmem:[#allocation8 + $0x68] sm:$0xff]
    %v581 = vld [vmem:[#allocation8 + $0x70] sm:$0xff]
    %v582 = vld [vmem:[#allocation8 + $0x78] sm:$0xff]
    %583 = vmatprep.subr.mxu0 0.0
    %584 = vmatpush1.msra.mxu0 %v582
    %585 = vmatprep.subr.mxu0 0.0
    %586 = vmatpush1.msra.mxu0 %v581
    %587 = vmatprep.subr.mxu0 0.0
    %588 = vmatpush1.msra.mxu0 %v580
    %589 = vmatprep.subr.mxu0 0.0
    %590 = vmatpush1.msra.mxu0 %v579
    %591 = vmatprep.subr.mxu0 0.0
    %592 = vmatpush1.msra.mxu0 %v578
    %593 = vmatprep.subr.mxu0 0.0
    %594 = vmatpush1.msra.mxu0 %v577
    %595 = vmatprep.subr.mxu0 0.0
    %596 = vmatpush1.msra.mxu0 %v576
    %597 = vmatprep.subr.mxu0 0.0
    %598 = vmatpush1.msra.mxu0 %v575
    %599 = vmatprep.subr.mxu0 0.0
    %600 = vmatpush1.msra.mxu0 %v574
    %601 = vmatprep.subr.mxu0 0.0
    %602 = vmatpush1.msra.mxu0 %v573
    %603 = vmatprep.subr.mxu0 0.0
    %604 = vmatpush1.msra.mxu0 %v572
    %605 = vmatprep.subr.mxu0 0.0
    %606 = vmatpush1.msra.mxu0 %v571
    %607 = vmatprep.subr.mxu0 0.0
    %608 = vmatpush1.msra.mxu0 %v570
    %609 = vmatprep.subr.mxu0 0.0
    %610 = vmatpush1.msra.mxu0 %v569
    %611 = vmatprep.subr.mxu0 0.0
    %612 = vmatpush1.msra.mxu0 %v568
    %613 = vmatprep.subr.mxu0 0.0
    %614 = vmatpush1.msra.mxu0 %v567
    %615 = vmatprep.subr.mxu0 0.0
    %616 = vmatpush2.msra.mxu0 0.0
    %617 = vmatprep.subr.mxu0 0.0
    %618 = vmatpush2.msra.mxu0 0.0
    %619 = vmatprep.subr.mxu0 0.0
    %620 = vmatpush2.msra.mxu0 0.0
    %621 = vmatprep.subr.mxu0 0.0
    %622 = vmatpush2.msra.mxu0 0.0
    %623 = vmatprep.subr.mxu0 0.0
    %624 = vmatpush2.msra.mxu0 0.0
    %625 = vmatprep.subr.mxu0 0.0
    %626 = vmatpush2.msra.mxu0 0.0
    %627 = vmatprep.subr.mxu0 0.0
    %628 = vmatpush2.msra.mxu0 0.0
    %629 = vmatprep.subr.mxu0 0.0
    %630 = vmatpush2.msra.mxu0 0.0
    %631 = vmatprep.subr.mxu0 0.0
    %632 = vmatpush2.msra.mxu0 0.0
    %633 = vmatprep.subr.mxu0 0.0
    %634 = vmatpush2.msra.mxu0 0.0
    %635 = vmatprep.subr.mxu0 0.0
    %636 = vmatpush2.msra.mxu0 0.0
    %637 = vmatprep.subr.mxu0 0.0
    %638 = vmatpush2.msra.mxu0 0.0
    %639 = vmatprep.subr.mxu0 0.0
    %640 = vmatpush2.msra.mxu0 0.0
    %641 = vmatprep.subr.mxu0 0.0
    %642 = vmatpush2.msra.mxu0 0.0
    %643 = vmatprep.subr.mxu0 0.0
    %644 = vmatpush2.msra.mxu0 0.0
    %645 = vmatprep.subr.mxu0 0.0
    %646 = vmatpush2.msra.mxu0 0.0
    %647 = vmatprep.mubr.f32.mxu0 0.0
    %648 = vmatmul.mubr.f32.gmra.mxu0 %v566
    %v649 = vpop.f32.mrf.mxu0
    %v650 = vadd.f32 0.0, %v649
    %v651 = vpop.f32.mrf.mxu0
    %652 = vdwg.mxu0
    %s653 = scalar_lea.vmem [#allocation9], 8
    %654 = vst [vmem:[%s653] sm:$0xff] %v650
    %s655 = scalar_lea.vmem [#allocation3], 16
    %v656 = vld [vmem:[%s655] sm:$0xff]
    %v657 = vld [vmem:[#allocation6] sm:$0xff]
    %v658 = vld [vmem:[#allocation6 + $0x8] sm:$0xff]
    %v659 = vld [vmem:[#allocation6 + $0x10] sm:$0xff]
    %v660 = vld [vmem:[#allocation6 + $0x18] sm:$0xff]
    %v661 = vld [vmem:[#allocation6 + $0x20] sm:$0xff]
    %v662 = vld [vmem:[#allocation6 + $0x28] sm:$0xff]
    %v663 = vld [vmem:[#allocation6 + $0x30] sm:$0xff]
    %v664 = vld [vmem:[#allocation6 + $0x38] sm:$0xff]
    %v665 = vld [vmem:[#allocation6 + $0x40] sm:$0xff]
    %v666 = vld [vmem:[#allocation6 + $0x48] sm:$0xff]
    %v667 = vld [vmem:[#allocation6 + $0x50] sm:$0xff]
    %v668 = vld [vmem:[#allocation6 + $0x58] sm:$0xff]
    %v669 = vld [vmem:[#allocation6 + $0x60] sm:$0xff]
    %v670 = vld [vmem:[#allocation6 + $0x68] sm:$0xff]
    %v671 = vld [vmem:[#allocation6 + $0x70] sm:$0xff]
    %v672 = vld [vmem:[#allocation6 + $0x78] sm:$0xff]
    %v673 = vld [vmem:[#allocation6 + $0x80] sm:$0xff]
    %v674 = vld [vmem:[#allocation6 + $0x88] sm:$0xff]
    %v675 = vld [vmem:[#allocation6 + $0x90] sm:$0xff]
    %v676 = vld [vmem:[#allocation6 + $0x98] sm:$0xff]
    %v677 = vld [vmem:[#allocation6 + $0xa0] sm:$0xff]
    %v678 = vld [vmem:[#allocation6 + $0xa8] sm:$0xff]
    %v679 = vld [vmem:[#allocation6 + $0xb0] sm:$0xff]
    %v680 = vld [vmem:[#allocation6 + $0xb8] sm:$0xff]
    %v681 = vld [vmem:[#allocation6 + $0xc0] sm:$0xff]
    %v682 = vld [vmem:[#allocation6 + $0xc8] sm:$0xff]
    %v683 = vld [vmem:[#allocation6 + $0xd0] sm:$0xff]
    %v684 = vld [vmem:[#allocation6 + $0xd8] sm:$0xff]
    %v685 = vld [vmem:[#allocation6 + $0xe0] sm:$0xff]
    %v686 = vld [vmem:[#allocation6 + $0xe8] sm:$0xff]
    %v687 = vld [vmem:[#allocation6 + $0xf0] sm:$0xff]
    %v688 = vld [vmem:[#allocation6 + $0xf8] sm:$0xff]
    %v689 = vld [vmem:[#allocation6 + $0x100] sm:$0xff]
    %v690 = vld [vmem:[#allocation6 + $0x108] sm:$0xff]
    %v691 = vld [vmem:[#allocation6 + $0x110] sm:$0xff]
    %v692 = vld [vmem:[#allocation6 + $0x118] sm:$0xff]
    %v693 = vld [vmem:[#allocation6 + $0x120] sm:$0xff]
    %v694 = vld [vmem:[#allocation6 + $0x128] sm:$0xff]
    %v695 = vld [vmem:[#allocation6 + $0x130] sm:$0xff]
    %v696 = vld [vmem:[#allocation6 + $0x138] sm:$0xff]
    %v697 = vld [vmem:[#allocation6 + $0x140] sm:$0xff]
    %v698 = vld [vmem:[#allocation6 + $0x148] sm:$0xff]
    %v699 = vld [vmem:[#allocation6 + $0x150] sm:$0xff]
    %v700 = vld [vmem:[#allocation6 + $0x158] sm:$0xff]
    %v701 = vld [vmem:[#allocation6 + $0x160] sm:$0xff]
    %v702 = vld [vmem:[#allocation6 + $0x168] sm:$0xff]
    %v703 = vld [vmem:[#allocation6 + $0x170] sm:$0xff]
    %v704 = vld [vmem:[#allocation6 + $0x178] sm:$0xff]
    %v705 = vld [vmem:[%s2] sm:$0x1]
    %v707 = vlaneseq
    %v708 = vshrl.u32 %v707, 7
    %v709 = vsub.s32 0, %v708
    %v710 = vrot.slane %v705, %v709
    %712 = vmatprep.subr.mxu0 0.0
    %713 = vmatpush1.msra.mxu0 %v672
    %714 = vmatprep.subr.mxu0 0.0
    %715 = vmatpush1.msra.mxu0 %v671
    %716 = vmatprep.subr.mxu0 0.0
    %717 = vmatpush1.msra.mxu0 %v670
    %718 = vmatprep.subr.mxu0 0.0
    %719 = vmatpush1.msra.mxu0 %v669
    %720 = vmatprep.subr.mxu0 0.0
    %721 = vmatpush1.msra.mxu0 %v668
    %722 = vmatprep.subr.mxu0 0.0
    %723 = vmatpush1.msra.mxu0 %v667
    %724 = vmatprep.subr.mxu0 0.0
    %725 = vmatpush1.msra.mxu0 %v666
    %726 = vmatprep.subr.mxu0 0.0
    %727 = vmatpush1.msra.mxu0 %v665
    %728 = vmatprep.subr.mxu0 0.0
    %729 = vmatpush1.msra.mxu0 %v664
    %730 = vmatprep.subr.mxu0 0.0
    %731 = vmatpush1.msra.mxu0 %v663
    %732 = vmatprep.subr.mxu0 0.0
    %733 = vmatpush1.msra.mxu0 %v662
    %734 = vmatprep.subr.mxu0 0.0
    %735 = vmatpush1.msra.mxu0 %v661
    %736 = vmatprep.subr.mxu0 0.0
    %737 = vmatpush1.msra.mxu0 %v660
    %738 = vmatprep.subr.mxu0 0.0
    %739 = vmatpush1.msra.mxu0 %v659
    %740 = vmatprep.subr.mxu0 0.0
    %741 = vmatpush1.msra.mxu0 %v658
    %742 = vmatprep.subr.mxu0 0.0
    %743 = vmatpush1.msra.mxu0 %v657
    %744 = vmatprep.subr.mxu0 0.0
    %745 = vmatpush2.msra.mxu0 %v688
    %746 = vmatprep.subr.mxu0 0.0
    %747 = vmatpush2.msra.mxu0 %v687
    %748 = vmatprep.subr.mxu0 0.0
    %749 = vmatpush2.msra.mxu0 %v686
    %750 = vmatprep.subr.mxu0 0.0
    %751 = vmatpush2.msra.mxu0 %v685
    %752 = vmatprep.subr.mxu0 0.0
    %753 = vmatpush2.msra.mxu0 %v684
    %754 = vmatprep.subr.mxu0 0.0
    %755 = vmatpush2.msra.mxu0 %v683
    %756 = vmatprep.subr.mxu0 0.0
    %757 = vmatpush2.msra.mxu0 %v682
    %758 = vmatprep.subr.mxu0 0.0
    %759 = vmatpush2.msra.mxu0 %v681
    %760 = vmatprep.subr.mxu0 0.0
    %761 = vmatpush2.msra.mxu0 %v680
    %762 = vmatprep.subr.mxu0 0.0
    %763 = vmatpush2.msra.mxu0 %v679
    %764 = vmatprep.subr.mxu0 0.0
    %765 = vmatpush2.msra.mxu0 %v678
    %766 = vmatprep.subr.mxu0 0.0
    %767 = vmatpush2.msra.mxu0 %v677
    %768 = vmatprep.subr.mxu0 0.0
    %769 = vmatpush2.msra.mxu0 %v676
    %770 = vmatprep.subr.mxu0 0.0
    %771 = vmatpush2.msra.mxu0 %v675
    %772 = vmatprep.subr.mxu0 0.0
    %773 = vmatpush2.msra.mxu0 %v674
    %774 = vmatprep.subr.mxu0 0.0
    %775 = vmatpush2.msra.mxu0 %v673
    %776 = vmatprep.mubr.f32.mxu0 %v564
    %777 = vmatmul.mubr.f32.gmra.mxu0 %v656
    %v778 = vpop.f32.mrf.mxu0
    %v779 = vadd.f32 %v710, %v778
    %v780 = vpop.f32.mrf.mxu0
    %781 = vdwg.mxu0
    %782 = vmatprep.subr.mxu0 0.0
    %783 = vmatpush1.msra.mxu0 %v704
    %784 = vmatprep.subr.mxu0 0.0
    %785 = vmatpush1.msra.mxu0 %v703
    %786 = vmatprep.subr.mxu0 0.0
    %787 = vmatpush1.msra.mxu0 %v702
    %788 = vmatprep.subr.mxu0 0.0
    %789 = vmatpush1.msra.mxu0 %v701
    %790 = vmatprep.subr.mxu0 0.0
    %791 = vmatpush1.msra.mxu0 %v700
    %792 = vmatprep.subr.mxu0 0.0
    %793 = vmatpush1.msra.mxu0 %v699
    %794 = vmatprep.subr.mxu0 0.0
    %795 = vmatpush1.msra.mxu0 %v698
    %796 = vmatprep.subr.mxu0 0.0
    %797 = vmatpush1.msra.mxu0 %v697
    %798 = vmatprep.subr.mxu0 0.0
    %799 = vmatpush1.msra.mxu0 %v696
    %800 = vmatprep.subr.mxu0 0.0
    %801 = vmatpush1.msra.mxu0 %v695
    %802 = vmatprep.subr.mxu0 0.0
    %803 = vmatpush1.msra.mxu0 %v694
    %804 = vmatprep.subr.mxu0 0.0
    %805 = vmatpush1.msra.mxu0 %v693
    %806 = vmatprep.subr.mxu0 0.0
    %807 = vmatpush1.msra.mxu0 %v692
    %808 = vmatprep.subr.mxu0 0.0
    %809 = vmatpush1.msra.mxu0 %v691
    %810 = vmatprep.subr.mxu0 0.0
    %811 = vmatpush1.msra.mxu0 %v690
    %812 = vmatprep.subr.mxu0 0.0
    %813 = vmatpush1.msra.mxu0 %v689
    %814 = vmatprep.subr.mxu0 0.0
    %815 = vmatpush2.msra.mxu0 0.0
    %816 = vmatprep.subr.mxu0 0.0
    %817 = vmatpush2.msra.mxu0 0.0
    %818 = vmatprep.subr.mxu0 0.0
    %819 = vmatpush2.msra.mxu0 0.0
    %820 = vmatprep.subr.mxu0 0.0
    %821 = vmatpush2.msra.mxu0 0.0
    %822 = vmatprep.subr.mxu0 0.0
    %823 = vmatpush2.msra.mxu0 0.0
    %824 = vmatprep.subr.mxu0 0.0
    %825 = vmatpush2.msra.mxu0 0.0
    %826 = vmatprep.subr.mxu0 0.0
    %827 = vmatpush2.msra.mxu0 0.0
    %828 = vmatprep.subr.mxu0 0.0
    %829 = vmatpush2.msra.mxu0 0.0
    %830 = vmatprep.subr.mxu0 0.0
    %831 = vmatpush2.msra.mxu0 0.0
    %832 = vmatprep.subr.mxu0 0.0
    %833 = vmatpush2.msra.mxu0 0.0
    %834 = vmatprep.subr.mxu0 0.0
    %835 = vmatpush2.msra.mxu0 0.0
    %836 = vmatprep.subr.mxu0 0.0
    %837 = vmatpush2.msra.mxu0 0.0
    %838 = vmatprep.subr.mxu0 0.0
    %839 = vmatpush2.msra.mxu0 0.0
    %840 = vmatprep.subr.mxu0 0.0
    %841 = vmatpush2.msra.mxu0 0.0
    %842 = vmatprep.subr.mxu0 0.0
    %843 = vmatpush2.msra.mxu0 0.0
    %844 = vmatprep.subr.mxu0 0.0
    %845 = vmatpush2.msra.mxu0 0.0
    %846 = vmatprep.mubr.f32.mxu0 0.0
    %847 = vmatmul.mubr.f32.gmra.mxu0 %v566
    %v848 = vpop.f32.mrf.mxu0
    %v849 = vadd.f32 %v779, %v848
    %v850 = vpop.f32.mrf.mxu0
    %851 = vdwg.mxu0
    %v852 = vmul.f32 %v564, 0.8026
    %v853 = vtanh.pop %v849
    %v854 = vmul.f32 %v853, 0.042
    %v855 = vadd.f32 %v852, %v854
    %v856 = vmul.f32 %v566, 0.1134
    %v857 = vsub.f32 %v855, %v856
    %v858 = vmul.f32 %v857, 0.042
    %v859 = vadd.f32 %v566, %v858
    %v860 = vld [vmem:[#allocation8] sm:$0xff]
    %v861 = vld [vmem:[#allocation8 + $0x8] sm:$0xff]
    %v862 = vld [vmem:[#allocation8 + $0x10] sm:$0xff]
    %v863 = vld [vmem:[#allocation8 + $0x18] sm:$0xff]
    %v864 = vld [vmem:[#allocation8 + $0x20] sm:$0xff]
    %v865 = vld [vmem:[#allocation8 + $0x28] sm:$0xff]
    %v866 = vld [vmem:[#allocation8 + $0x30] sm:$0xff]
    %v867 = vld [vmem:[#allocation8 + $0x38] sm:$0xff]
    %v868 = vld [vmem:[#allocation8 + $0x40] sm:$0xff]
    %v869 = vld [vmem:[#allocation8 + $0x48] sm:$0xff]
    %v870 = vld [vmem:[#allocation8 + $0x50] sm:$0xff]
    %v871 = vld [vmem:[#allocation8 + $0x58] sm:$0xff]
    %v872 = vld [vmem:[#allocation8 + $0x60] sm:$0xff]
    %v873 = vld [vmem:[#allocation8 + $0x68] sm:$0xff]
    %v874 = vld [vmem:[#allocation8 + $0x70] sm:$0xff]
    %v875 = vld [vmem:[#allocation8 + $0x78] sm:$0xff]
    %876 = vmatprep.subr.mxu0 0.0
    %877 = vmatpush1.msra.mxu0 %v875
    %878 = vmatprep.subr.mxu0 0.0
    %879 = vmatpush1.msra.mxu0 %v874
    %880 = vmatprep.subr.mxu0 0.0
    %881 = vmatpush1.msra.mxu0 %v873
    %882 = vmatprep.subr.mxu0 0.0
    %883 = vmatpush1.msra.mxu0 %v872
    %884 = vmatprep.subr.mxu0 0.0
    %885 = vmatpush1.msra.mxu0 %v871
    %886 = vmatprep.subr.mxu0 0.0
    %887 = vmatpush1.msra.mxu0 %v870
    %888 = vmatprep.subr.mxu0 0.0
    %889 = vmatpush1.msra.mxu0 %v869
    %890 = vmatprep.subr.mxu0 0.0
    %891 = vmatpush1.msra.mxu0 %v868
    %892 = vmatprep.subr.mxu0 0.0
    %893 = vmatpush1.msra.mxu0 %v867
    %894 = vmatprep.subr.mxu0 0.0
    %895 = vmatpush1.msra.mxu0 %v866
    %896 = vmatprep.subr.mxu0 0.0
    %897 = vmatpush1.msra.mxu0 %v865
    %898 = vmatprep.subr.mxu0 0.0
    %899 = vmatpush1.msra.mxu0 %v864
    %900 = vmatprep.subr.mxu0 0.0
    %901 = vmatpush1.msra.mxu0 %v863
    %902 = vmatprep.subr.mxu0 0.0
    %903 = vmatpush1.msra.mxu0 %v862
    %904 = vmatprep.subr.mxu0 0.0
    %905 = vmatpush1.msra.mxu0 %v861
    %906 = vmatprep.subr.mxu0 0.0
    %907 = vmatpush1.msra.mxu0 %v860
    %908 = vmatprep.subr.mxu0 0.0
    %909 = vmatpush2.msra.mxu0 0.0
    %910 = vmatprep.subr.mxu0 0.0
    %911 = vmatpush2.msra.mxu0 0.0
    %912 = vmatprep.subr.mxu0 0.0
    %913 = vmatpush2.msra.mxu0 0.0
    %914 = vmatprep.subr.mxu0 0.0
    %915 = vmatpush2.msra.mxu0 0.0
    %916 = vmatprep.subr.mxu0 0.0
    %917 = vmatpush2.msra.mxu0 0.0
    %918 = vmatprep.subr.mxu0 0.0
    %919 = vmatpush2.msra.mxu0 0.0
    %920 = vmatprep.subr.mxu0 0.0
    %921 = vmatpush2.msra.mxu0 0.0
    %922 = vmatprep.subr.mxu0 0.0
    %923 = vmatpush2.msra.mxu0 0.0
    %924 = vmatprep.subr.mxu0 0.0
    %925 = vmatpush2.msra.mxu0 0.0
    %926 = vmatprep.subr.mxu0 0.0
    %927 = vmatpush2.msra.mxu0 0.0
    %928 = vmatprep.subr.mxu0 0.0
    %929 = vmatpush2.msra.mxu0 0.0
    %930 = vmatprep.subr.mxu0 0.0
    %931 = vmatpush2.msra.mxu0 0.0
    %932 = vmatprep.subr.mxu0 0.0
    %933 = vmatpush2.msra.mxu0 0.0
    %934 = vmatprep.subr.mxu0 0.0
    %935 = vmatpush2.msra.mxu0 0.0
    %936 = vmatprep.subr.mxu0 0.0
    %937 = vmatpush2.msra.mxu0 0.0
    %938 = vmatprep.subr.mxu0 0.0
    %939 = vmatpush2.msra.mxu0 0.0
    %940 = vmatprep.mubr.f32.mxu0 0.0
    %941 = vmatmul.mubr.f32.gmra.mxu0 %v859
    %v942 = vpop.f32.mrf.mxu0
    %v943 = vadd.f32 0.0, %v942
    %v944 = vpop.f32.mrf.mxu0
    %945 = vdwg.mxu0
    %s946 = scalar_lea.vmem [#allocation9], 16
    %947 = vst [vmem:[%s946] sm:$0xff] %v943
    %s948 = scalar_lea.vmem [#allocation3], 24
    %v949 = vld [vmem:[%s948] sm:$0xff]
    %v950 = vld [vmem:[#allocation6] sm:$0xff]
    %v951 = vld [vmem:[#allocation6 + $0x8] sm:$0xff]
    %v952 = vld [vmem:[#allocation6 + $0x10] sm:$0xff]
    %v953 = vld [vmem:[#allocation6 + $0x18] sm:$0xff]
    %v954 = vld [vmem:[#allocation6 + $0x20] sm:$0xff]
    %v955 = vld [vmem:[#allocation6 + $0x28] sm:$0xff]
    %v956 = vld [vmem:[#allocation6 + $0x30] sm:$0xff]
    %v957 = vld [vmem:[#allocation6 + $0x38] sm:$0xff]
    %v958 = vld [vmem:[#allocation6 + $0x40] sm:$0xff]
    %v959 = vld [vmem:[#allocation6 + $0x48] sm:$0xff]
    %v960 = vld [vmem:[#allocation6 + $0x50] sm:$0xff]
    %v961 = vld [vmem:[#allocation6 + $0x58] sm:$0xff]
    %v962 = vld [vmem:[#allocation6 + $0x60] sm:$0xff]
    %v963 = vld [vmem:[#allocation6 + $0x68] sm:$0xff]
    %v964 = vld [vmem:[#allocation6 + $0x70] sm:$0xff]
    %v965 = vld [vmem:[#allocation6 + $0x78] sm:$0xff]
    %v966 = vld [vmem:[#allocation6 + $0x80] sm:$0xff]
    %v967 = vld [vmem:[#allocation6 + $0x88] sm:$0xff]
    %v968 = vld [vmem:[#allocation6 + $0x90] sm:$0xff]
    %v969 = vld [vmem:[#allocation6 + $0x98] sm:$0xff]
    %v970 = vld [vmem:[#allocation6 + $0xa0] sm:$0xff]
    %v971 = vld [vmem:[#allocation6 + $0xa8] sm:$0xff]
    %v972 = vld [vmem:[#allocation6 + $0xb0] sm:$0xff]
    %v973 = vld [vmem:[#allocation6 + $0xb8] sm:$0xff]
    %v974 = vld [vmem:[#allocation6 + $0xc0] sm:$0xff]
    %v975 = vld [vmem:[#allocation6 + $0xc8] sm:$0xff]
    %v976 = vld [vmem:[#allocation6 + $0xd0] sm:$0xff]
    %v977 = vld [vmem:[#allocation6 + $0xd8] sm:$0xff]
    %v978 = vld [vmem:[#allocation6 + $0xe0] sm:$0xff]
    %v979 = vld [vmem:[#allocation6 + $0xe8] sm:$0xff]
    %v980 = vld [vmem:[#allocation6 + $0xf0] sm:$0xff]
    %v981 = vld [vmem:[#allocation6 + $0xf8] sm:$0xff]
    %v982 = vld [vmem:[#allocation6 + $0x100] sm:$0xff]
    %v983 = vld [vmem:[#allocation6 + $0x108] sm:$0xff]
    %v984 = vld [vmem:[#allocation6 + $0x110] sm:$0xff]
    %v985 = vld [vmem:[#allocation6 + $0x118] sm:$0xff]
    %v986 = vld [vmem:[#allocation6 + $0x120] sm:$0xff]
    %v987 = vld [vmem:[#allocation6 + $0x128] sm:$0xff]
    %v988 = vld [vmem:[#allocation6 + $0x130] sm:$0xff]
    %v989 = vld [vmem:[#allocation6 + $0x138] sm:$0xff]
    %v990 = vld [vmem:[#allocation6 + $0x140] sm:$0xff]
    %v991 = vld [vmem:[#allocation6 + $0x148] sm:$0xff]
    %v992 = vld [vmem:[#allocation6 + $0x150] sm:$0xff]
    %v993 = vld [vmem:[#allocation6 + $0x158] sm:$0xff]
    %v994 = vld [vmem:[#allocation6 + $0x160] sm:$0xff]
    %v995 = vld [vmem:[#allocation6 + $0x168] sm:$0xff]
    %v996 = vld [vmem:[#allocation6 + $0x170] sm:$0xff]
    %v997 = vld [vmem:[#allocation6 + $0x178] sm:$0xff]
    %v998 = vld [vmem:[%s2] sm:$0x1]
    %v1000 = vlaneseq
    %v1001 = vshrl.u32 %v1000, 7
    %v1002 = vsub.s32 0, %v1001
    %v1003 = vrot.slane %v998, %v1002
    %1005 = vmatprep.subr.mxu0 0.0
    %1006 = vmatpush1.msra.mxu0 %v965
    %1007 = vmatprep.subr.mxu0 0.0
    %1008 = vmatpush1.msra.mxu0 %v964
    %1009 = vmatprep.subr.mxu0 0.0
    %1010 = vmatpush1.msra.mxu0 %v963
    %1011 = vmatprep.subr.mxu0 0.0
    %1012 = vmatpush1.msra.mxu0 %v962
    %1013 = vmatprep.subr.mxu0 0.0
    %1014 = vmatpush1.msra.mxu0 %v961
    %1015 = vmatprep.subr.mxu0 0.0
    %1016 = vmatpush1.msra.mxu0 %v960
    %1017 = vmatprep.subr.mxu0 0.0
    %1018 = vmatpush1.msra.mxu0 %v959
    %1019 = vmatprep.subr.mxu0 0.0
    %1020 = vmatpush1.msra.mxu0 %v958
    %1021 = vmatprep.subr.mxu0 0.0
    %1022 = vmatpush1.msra.mxu0 %v957
    %1023 = vmatprep.subr.mxu0 0.0
    %1024 = vmatpush1.msra.mxu0 %v956
    %1025 = vmatprep.subr.mxu0 0.0
    %1026 = vmatpush1.msra.mxu0 %v955
    %1027 = vmatprep.subr.mxu0 0.0
    %1028 = vmatpush1.msra.mxu0 %v954
    %1029 = vmatprep.subr.mxu0 0.0
    %1030 = vmatpush1.msra.mxu0 %v953
    %1031 = vmatprep.subr.mxu0 0.0
    %1032 = vmatpush1.msra.mxu0 %v952
    %1033 = vmatprep.subr.mxu0 0.0
    %1034 = vmatpush1.msra.mxu0 %v951
    %1035 = vmatprep.subr.mxu0 0.0
    %1036 = vmatpush1.msra.mxu0 %v950
    %1037 = vmatprep.subr.mxu0 0.0
    %1038 = vmatpush2.msra.mxu0 %v981
    %1039 = vmatprep.subr.mxu0 0.0
    %1040 = vmatpush2.msra.mxu0 %v980
    %1041 = vmatprep.subr.mxu0 0.0
    %1042 = vmatpush2.msra.mxu0 %v979
    %1043 = vmatprep.subr.mxu0 0.0
    %1044 = vmatpush2.msra.mxu0 %v978
    %1045 = vmatprep.subr.mxu0 0.0
    %1046 = vmatpush2.msra.mxu0 %v977
    %1047 = vmatprep.subr.mxu0 0.0
    %1048 = vmatpush2.msra.mxu0 %v976
    %1049 = vmatprep.subr.mxu0 0.0
    %1050 = vmatpush2.msra.mxu0 %v975
    %1051 = vmatprep.subr.mxu0 0.0
    %1052 = vmatpush2.msra.mxu0 %v974
    %1053 = vmatprep.subr.mxu0 0.0
    %1054 = vmatpush2.msra.mxu0 %v973
    %1055 = vmatprep.subr.mxu0 0.0
    %1056 = vmatpush2.msra.mxu0 %v972
    %1057 = vmatprep.subr.mxu0 0.0
    %1058 = vmatpush2.msra.mxu0 %v971
    %1059 = vmatprep.subr.mxu0 0.0
    %1060 = vmatpush2.msra.mxu0 %v970
    %1061 = vmatprep.subr.mxu0 0.0
    %1062 = vmatpush2.msra.mxu0 %v969
    %1063 = vmatprep.subr.mxu0 0.0
    %1064 = vmatpush2.msra.mxu0 %v968
    %1065 = vmatprep.subr.mxu0 0.0
    %1066 = vmatpush2.msra.mxu0 %v967
    %1067 = vmatprep.subr.mxu0 0.0
    %1068 = vmatpush2.msra.mxu0 %v966
    %1069 = vmatprep.mubr.f32.mxu0 %v857
    %1070 = vmatmul.mubr.f32.gmra.mxu0 %v949
    %v1071 = vpop.f32.mrf.mxu0
    %v1072 = vadd.f32 %v1003, %v1071
    %v1073 = vpop.f32.mrf.mxu0
    %1074 = vdwg.mxu0
    %1075 = vmatprep.subr.mxu0 0.0
    %1076 = vmatpush1.msra.mxu0 %v997
    %1077 = vmatprep.subr.mxu0 0.0
    %1078 = vmatpush1.msra.mxu0 %v996
    %1079 = vmatprep.subr.mxu0 0.0
    %1080 = vmatpush1.msra.mxu0 %v995
    %1081 = vmatprep.subr.mxu0 0.0
    %1082 = vmatpush1.msra.mxu0 %v994
    %1083 = vmatprep.subr.mxu0 0.0
    %1084 = vmatpush1.msra.mxu0 %v993
    %1085 = vmatprep.subr.mxu0 0.0
    %1086 = vmatpush1.msra.mxu0 %v992
    %1087 = vmatprep.subr.mxu0 0.0
    %1088 = vmatpush1.msra.mxu0 %v991
    %1089 = vmatprep.subr.mxu0 0.0
    %1090 = vmatpush1.msra.mxu0 %v990
    %1091 = vmatprep.subr.mxu0 0.0
    %1092 = vmatpush1.msra.mxu0 %v989
    %1093 = vmatprep.subr.mxu0 0.0
    %1094 = vmatpush1.msra.mxu0 %v988
    %1095 = vmatprep.subr.mxu0 0.0
    %1096 = vmatpush1.msra.mxu0 %v987
    %1097 = vmatprep.subr.mxu0 0.0
    %1098 = vmatpush1.msra.mxu0 %v986
    %1099 = vmatprep.subr.mxu0 0.0
    %1100 = vmatpush1.msra.mxu0 %v985
    %1101 = vmatprep.subr.mxu0 0.0
    %1102 = vmatpush1.msra.mxu0 %v984
    %1103 = vmatprep.subr.mxu0 0.0
    %1104 = vmatpush1.msra.mxu0 %v983
    %1105 = vmatprep.subr.mxu0 0.0
    %1106 = vmatpush1.msra.mxu0 %v982
    %1107 = vmatprep.subr.mxu0 0.0
    %1108 = vmatpush2.msra.mxu0 0.0
    %1109 = vmatprep.subr.mxu0 0.0
    %1110 = vmatpush2.msra.mxu0 0.0
    %1111 = vmatprep.subr.mxu0 0.0
    %1112 = vmatpush2.msra.mxu0 0.0
    %1113 = vmatprep.subr.mxu0 0.0
    %1114 = vmatpush2.msra.mxu0 0.0
    %1115 = vmatprep.subr.mxu0 0.0
    %1116 = vmatpush2.msra.mxu0 0.0
    %1117 = vmatprep.subr.mxu0 0.0
    %1118 = vmatpush2.msra.mxu0 0.0
    %1119 = vmatprep.subr.mxu0 0.0
    %1120 = vmatpush2.msra.mxu0 0.0
    %1121 = vmatprep.subr.mxu0 0.0
    %1122 = vmatpush2.msra.mxu0 0.0
    %1123 = vmatprep.subr.mxu0 0.0
    %1124 = vmatpush2.msra.mxu0 0.0
    %1125 = vmatprep.subr.mxu0 0.0
    %1126 = vmatpush2.msra.mxu0 0.0
    %1127 = vmatprep.subr.mxu0 0.0
    %1128 = vmatpush2.msra.mxu0 0.0
    %1129 = vmatprep.subr.mxu0 0.0
    %1130 = vmatpush2.msra.mxu0 0.0
    %1131 = vmatprep.subr.mxu0 0.0
    %1132 = vmatpush2.msra.mxu0 0.0
    %1133 = vmatprep.subr.mxu0 0.0
    %1134 = vmatpush2.msra.mxu0 0.0
    %1135 = vmatprep.subr.mxu0 0.0
    %1136 = vmatpush2.msra.mxu0 0.0
    %1137 = vmatprep.subr.mxu0 0.0
    %1138 = vmatpush2.msra.mxu0 0.0
    %1139 = vmatprep.mubr.f32.mxu0 0.0
    %1140 = vmatmul.mubr.f32.gmra.mxu0 %v859
    %v1141 = vpop.f32.mrf.mxu0
    %v1142 = vadd.f32 %v1072, %v1141
    %v1143 = vpop.f32.mrf.mxu0
    %1144 = vdwg.mxu0
    %v1145 = vmul.f32 %v857, 0.8026
    %v1146 = vtanh.pop %v1142
    %v1147 = vmul.f32 %v1146, 0.042
    %v1148 = vadd.f32 %v1145, %v1147
    %v1149 = vmul.f32 %v859, 0.1134
    %v1150 = vsub.f32 %v1148, %v1149
    %v1151 = vmul.f32 %v1150, 0.042
    %v1152 = vadd.f32 %v859, %v1151
    %v1153 = vld [vmem:[#allocation8] sm:$0xff]
    %v1154 = vld [vmem:[#allocation8 + $0x8] sm:$0xff]
    %v1155 = vld [vmem:[#allocation8 + $0x10] sm:$0xff]
    %v1156 = vld [vmem:[#allocation8 + $0x18] sm:$0xff]
    %v1157 = vld [vmem:[#allocation8 + $0x20] sm:$0xff]
    %v1158 = vld [vmem:[#allocation8 + $0x28] sm:$0xff]
    %v1159 = vld [vmem:[#allocation8 + $0x30] sm:$0xff]
    %v1160 = vld [vmem:[#allocation8 + $0x38] sm:$0xff]
    %v1161 = vld [vmem:[#allocation8 + $0x40] sm:$0xff]
    %v1162 = vld [vmem:[#allocation8 + $0x48] sm:$0xff]
    %v1163 = vld [vmem:[#allocation8 + $0x50] sm:$0xff]
    %v1164 = vld [vmem:[#allocation8 + $0x58] sm:$0xff]
    %v1165 = vld [vmem:[#allocation8 + $0x60] sm:$0xff]
    %v1166 = vld [vmem:[#allocation8 + $0x68] sm:$0xff]
    %v1167 = vld [vmem:[#allocation8 + $0x70] sm:$0xff]
    %v1168 = vld [vmem:[#allocation8 + $0x78] sm:$0xff]
    %1169 = vmatprep.subr.mxu0 0.0
    %1170 = vmatpush1.msra.mxu0 %v1168
    %1171 = vmatprep.subr.mxu0 0.0
    %1172 = vmatpush1.msra.mxu0 %v1167
    %1173 = vmatprep.subr.mxu0 0.0
    %1174 = vmatpush1.msra.mxu0 %v1166
    %1175 = vmatprep.subr.mxu0 0.0
    %1176 = vmatpush1.msra.mxu0 %v1165
    %1177 = vmatprep.subr.mxu0 0.0
    %1178 = vmatpush1.msra.mxu0 %v1164
    %1179 = vmatprep.subr.mxu0 0.0
    %1180 = vmatpush1.msra.mxu0 %v1163
    %1181 = vmatprep.subr.mxu0 0.0
    %1182 = vmatpush1.msra.mxu0 %v1162
    %1183 = vmatprep.subr.mxu0 0.0
    %1184 = vmatpush1.msra.mxu0 %v1161
    %1185 = vmatprep.subr.mxu0 0.0
    %1186 = vmatpush1.msra.mxu0 %v1160
    %1187 = vmatprep.subr.mxu0 0.0
    %1188 = vmatpush1.msra.mxu0 %v1159
    %1189 = vmatprep.subr.mxu0 0.0
    %1190 = vmatpush1.msra.mxu0 %v1158
    %1191 = vmatprep.subr.mxu0 0.0
    %1192 = vmatpush1.msra.mxu0 %v1157
    %1193 = vmatprep.subr.mxu0 0.0
    %1194 = vmatpush1.msra.mxu0 %v1156
    %1195 = vmatprep.subr.mxu0 0.0
    %1196 = vmatpush1.msra.mxu0 %v1155
    %1197 = vmatprep.subr.mxu0 0.0
    %1198 = vmatpush1.msra.mxu0 %v1154
    %1199 = vmatprep.subr.mxu0 0.0
    %1200 = vmatpush1.msra.mxu0 %v1153
    %1201 = vmatprep.subr.mxu0 0.0
    %1202 = vmatpush2.msra.mxu0 0.0
    %1203 = vmatprep.subr.mxu0 0.0
    %1204 = vmatpush2.msra.mxu0 0.0
    %1205 = vmatprep.subr.mxu0 0.0
    %1206 = vmatpush2.msra.mxu0 0.0
    %1207 = vmatprep.subr.mxu0 0.0
    %1208 = vmatpush2.msra.mxu0 0.0
    %1209 = vmatprep.subr.mxu0 0.0
    %1210 = vmatpush2.msra.mxu0 0.0
    %1211 = vmatprep.subr.mxu0 0.0
    %1212 = vmatpush2.msra.mxu0 0.0
    %1213 = vmatprep.subr.mxu0 0.0
    %1214 = vmatpush2.msra.mxu0 0.0
    %1215 = vmatprep.subr.mxu0 0.0
    %1216 = vmatpush2.msra.mxu0 0.0
    %1217 = vmatprep.subr.mxu0 0.0
    %1218 = vmatpush2.msra.mxu0 0.0
    %1219 = vmatprep.subr.mxu0 0.0
    %1220 = vmatpush2.msra.mxu0 0.0
    %1221 = vmatprep.subr.mxu0 0.0
    %1222 = vmatpush2.msra.mxu0 0.0
    %1223 = vmatprep.subr.mxu0 0.0
    %1224 = vmatpush2.msra.mxu0 0.0
    %1225 = vmatprep.subr.mxu0 0.0
    %1226 = vmatpush2.msra.mxu0 0.0
    %1227 = vmatprep.subr.mxu0 0.0
    %1228 = vmatpush2.msra.mxu0 0.0
    %1229 = vmatprep.subr.mxu0 0.0
    %1230 = vmatpush2.msra.mxu0 0.0
    %1231 = vmatprep.subr.mxu0 0.0
    %1232 = vmatpush2.msra.mxu0 0.0
    %1233 = vmatprep.mubr.f32.mxu0 0.0
    %1234 = vmatmul.mubr.f32.gmra.mxu0 %v1152
    %v1235 = vpop.f32.mrf.mxu0
    %v1236 = vadd.f32 0.0, %v1235
    %v1237 = vpop.f32.mrf.mxu0
    %1238 = vdwg.mxu0
    %s1239 = scalar_lea.vmem [#allocation9], 24
    %1240 = vst [vmem:[%s1239] sm:$0xff] %v1236
    %s1241 = scalar_lea.vmem [#allocation3], 32
    %v1242 = vld [vmem:[%s1241] sm:$0xff]
    %v1243 = vld [vmem:[#allocation6] sm:$0xff]
    %v1244 = vld [vmem:[#allocation6 + $0x8] sm:$0xff]
    %v1245 = vld [vmem:[#allocation6 + $0x10] sm:$0xff]
    %v1246 = vld [vmem:[#allocation6 + $0x18] sm:$0xff]
    %v1247 = vld [vmem:[#allocation6 + $0x20] sm:$0xff]
    %v1248 = vld [vmem:[#allocation6 + $0x28] sm:$0xff]
    %v1249 = vld [vmem:[#allocation6 + $0x30] sm:$0xff]
    %v1250 = vld [vmem:[#allocation6 + $0x38] sm:$0xff]
    %v1251 = vld [vmem:[#allocation6 + $0x40] sm:$0xff]
    %v1252 = vld [vmem:[#allocation6 + $0x48] sm:$0xff]
    %v1253 = vld [vmem:[#allocation6 + $0x50] sm:$0xff]
    %v1254 = vld [vmem:[#allocation6 + $0x58] sm:$0xff]
    %v1255 = vld [vmem:[#allocation6 + $0x60] sm:$0xff]
    %v1256 = vld [vmem:[#allocation6 + $0x68] sm:$0xff]
    %v1257 = vld [vmem:[#allocation6 + $0x70] sm:$0xff]
    %v1258 = vld [vmem:[#allocation6 + $0x78] sm:$0xff]
    %v1259 = vld [vmem:[#allocation6 + $0x80] sm:$0xff]
    %v1260 = vld [vmem:[#allocation6 + $0x88] sm:$0xff]
    %v1261 = vld [vmem:[#allocation6 + $0x90] sm:$0xff]
    %v1262 = vld [vmem:[#allocation6 + $0x98] sm:$0xff]
    %v1263 = vld [vmem:[#allocation6 + $0xa0] sm:$0xff]
    %v1264 = vld [vmem:[#allocation6 + $0xa8] sm:$0xff]
    %v1265 = vld [vmem:[#allocation6 + $0xb0] sm:$0xff]
    %v1266 = vld [vmem:[#allocation6 + $0xb8] sm:$0xff]
    %v1267 = vld [vmem:[#allocation6 + $0xc0] sm:$0xff]
    %v1268 = vld [vmem:[#allocation6 + $0xc8] sm:$0xff]
    %v1269 = vld [vmem:[#allocation6 + $0xd0] sm:$0xff]
    %v1270 = vld [vmem:[#allocation6 + $0xd8] sm:$0xff]
    %v1271 = vld [vmem:[#allocation6 + $0xe0] sm:$0xff]
    %v1272 = vld [vmem:[#allocation6 + $0xe8] sm:$0xff]
    %v1273 = vld [vmem:[#allocation6 + $0xf0] sm:$0xff]
    %v1274 = vld [vmem:[#allocation6 + $0xf8] sm:$0xff]
    %v1275 = vld [vmem:[#allocation6 + $0x100] sm:$0xff]
    %v1276 = vld [vmem:[#allocation6 + $0x108] sm:$0xff]
    %v1277 = vld [vmem:[#allocation6 + $0x110] sm:$0xff]
    %v1278 = vld [vmem:[#allocation6 + $0x118] sm:$0xff]
    %v1279 = vld [vmem:[#allocation6 + $0x120] sm:$0xff]
    %v1280 = vld [vmem:[#allocation6 + $0x128] sm:$0xff]
    %v1281 = vld [vmem:[#allocation6 + $0x130] sm:$0xff]
    %v1282 = vld [vmem:[#allocation6 + $0x138] sm:$0xff]
    %v1283 = vld [vmem:[#allocation6 + $0x140] sm:$0xff]
    %v1284 = vld [vmem:[#allocation6 + $0x148] sm:$0xff]
    %v1285 = vld [vmem:[#allocation6 + $0x150] sm:$0xff]
    %v1286 = vld [vmem:[#allocation6 + $0x158] sm:$0xff]
    %v1287 = vld [vmem:[#allocation6 + $0x160] sm:$0xff]
    %v1288 = vld [vmem:[#allocation6 + $0x168] sm:$0xff]
    %v1289 = vld [vmem:[#allocation6 + $0x170] sm:$0xff]
    %v1290 = vld [vmem:[#allocation6 + $0x178] sm:$0xff]
    %v1291 = vld [vmem:[%s2] sm:$0x1]
    %v1293 = vlaneseq
    %v1294 = vshrl.u32 %v1293, 7
    %v1295 = vsub.s32 0, %v1294
    %v1296 = vrot.slane %v1291, %v1295
    %1298 = vmatprep.subr.mxu0 0.0
    %1299 = vmatpush1.msra.mxu0 %v1258
    %1300 = vmatprep.subr.mxu0 0.0
    %1301 = vmatpush1.msra.mxu0 %v1257
    %1302 = vmatprep.subr.mxu0 0.0
    %1303 = vmatpush1.msra.mxu0 %v1256
    %1304 = vmatprep.subr.mxu0 0.0
    %1305 = vmatpush1.msra.mxu0 %v1255
    %1306 = vmatprep.subr.mxu0 0.0
    %1307 = vmatpush1.msra.mxu0 %v1254
    %1308 = vmatprep.subr.mxu0 0.0
    %1309 = vmatpush1.msra.mxu0 %v1253
    %1310 = vmatprep.subr.mxu0 0.0
    %1311 = vmatpush1.msra.mxu0 %v1252
    %1312 = vmatprep.subr.mxu0 0.0
    %1313 = vmatpush1.msra.mxu0 %v1251
    %1314 = vmatprep.subr.mxu0 0.0
    %1315 = vmatpush1.msra.mxu0 %v1250
    %1316 = vmatprep.subr.mxu0 0.0
    %1317 = vmatpush1.msra.mxu0 %v1249
    %1318 = vmatprep.subr.mxu0 0.0
    %1319 = vmatpush1.msra.mxu0 %v1248
    %1320 = vmatprep.subr.mxu0 0.0
    %1321 = vmatpush1.msra.mxu0 %v1247
    %1322 = vmatprep.subr.mxu0 0.0
    %1323 = vmatpush1.msra.mxu0 %v1246
    %1324 = vmatprep.subr.mxu0 0.0
    %1325 = vmatpush1.msra.mxu0 %v1245
    %1326 = vmatprep.subr.mxu0 0.0
    %1327 = vmatpush1.msra.mxu0 %v1244
    %1328 = vmatprep.subr.mxu0 0.0
    %1329 = vmatpush1.msra.mxu0 %v1243
    %1330 = vmatprep.subr.mxu0 0.0
    %1331 = vmatpush2.msra.mxu0 %v1274
    %1332 = vmatprep.subr.mxu0 0.0
    %1333 = vmatpush2.msra.mxu0 %v1273
    %1334 = vmatprep.subr.mxu0 0.0
    %1335 = vmatpush2.msra.mxu0 %v1272
    %1336 = vmatprep.subr.mxu0 0.0
    %1337 = vmatpush2.msra.mxu0 %v1271
    %1338 = vmatprep.subr.mxu0 0.0
    %1339 = vmatpush2.msra.mxu0 %v1270
    %1340 = vmatprep.subr.mxu0 0.0
    %1341 = vmatpush2.msra.mxu0 %v1269
    %1342 = vmatprep.subr.mxu0 0.0
    %1343 = vmatpush2.msra.mxu0 %v1268
    %1344 = vmatprep.subr.mxu0 0.0
    %1345 = vmatpush2.msra.mxu0 %v1267
    %1346 = vmatprep.subr.mxu0 0.0
    %1347 = vmatpush2.msra.mxu0 %v1266
    %1348 = vmatprep.subr.mxu0 0.0
    %1349 = vmatpush2.msra.mxu0 %v1265
    %1350 = vmatprep.subr.mxu0 0.0
    %1351 = vmatpush2.msra.mxu0 %v1264
    %1352 = vmatprep.subr.mxu0 0.0
    %1353 = vmatpush2.msra.mxu0 %v1263
    %1354 = vmatprep.subr.mxu0 0.0
    %1355 = vmatpush2.msra.mxu0 %v1262
    %1356 = vmatprep.subr.mxu0 0.0
    %1357 = vmatpush2.msra.mxu0 %v1261
    %1358 = vmatprep.subr.mxu0 0.0
    %1359 = vmatpush2.msra.mxu0 %v1260
    %1360 = vmatprep.subr.mxu0 0.0
    %1361 = vmatpush2.msra.mxu0 %v1259
    %1362 = vmatprep.mubr.f32.mxu0 %v1150
    %1363 = vmatmul.mubr.f32.gmra.mxu0 %v1242
    %v1364 = vpop.f32.mrf.mxu0
    %v1365 = vadd.f32 %v1296, %v1364
    %v1366 = vpop.f32.mrf.mxu0
    %1367 = vdwg.mxu0
    %1368 = vmatprep.subr.mxu0 0.0
    %1369 = vmatpush1.msra.mxu0 %v1290
    %1370 = vmatprep.subr.mxu0 0.0
    %1371 = vmatpush1.msra.mxu0 %v1289
    %1372 = vmatprep.subr.mxu0 0.0
    %1373 = vmatpush1.msra.mxu0 %v1288
    %1374 = vmatprep.subr.mxu0 0.0
    %1375 = vmatpush1.msra.mxu0 %v1287
    %1376 = vmatprep.subr.mxu0 0.0
    %1377 = vmatpush1.msra.mxu0 %v1286
    %1378 = vmatprep.subr.mxu0 0.0
    %1379 = vmatpush1.msra.mxu0 %v1285
    %1380 = vmatprep.subr.mxu0 0.0
    %1381 = vmatpush1.msra.mxu0 %v1284
    %1382 = vmatprep.subr.mxu0 0.0
    %1383 = vmatpush1.msra.mxu0 %v1283
    %1384 = vmatprep.subr.mxu0 0.0
    %1385 = vmatpush1.msra.mxu0 %v1282
    %1386 = vmatprep.subr.mxu0 0.0
    %1387 = vmatpush1.msra.mxu0 %v1281
    %1388 = vmatprep.subr.mxu0 0.0
    %1389 = vmatpush1.msra.mxu0 %v1280
    %1390 = vmatprep.subr.mxu0 0.0
    %1391 = vmatpush1.msra.mxu0 %v1279
    %1392 = vmatprep.subr.mxu0 0.0
    %1393 = vmatpush1.msra.mxu0 %v1278
    %1394 = vmatprep.subr.mxu0 0.0
    %1395 = vmatpush1.msra.mxu0 %v1277
    %1396 = vmatprep.subr.mxu0 0.0
    %1397 = vmatpush1.msra.mxu0 %v1276
    %1398 = vmatprep.subr.mxu0 0.0
    %1399 = vmatpush1.msra.mxu0 %v1275
    %1400 = vmatprep.subr.mxu0 0.0
    %1401 = vmatpush2.msra.mxu0 0.0
    %1402 = vmatprep.subr.mxu0 0.0
    %1403 = vmatpush2.msra.mxu0 0.0
    %1404 = vmatprep.subr.mxu0 0.0
    %1405 = vmatpush2.msra.mxu0 0.0
    %1406 = vmatprep.subr.mxu0 0.0
    %1407 = vmatpush2.msra.mxu0 0.0
    %1408 = vmatprep.subr.mxu0 0.0
    %1409 = vmatpush2.msra.mxu0 0.0
    %1410 = vmatprep.subr.mxu0 0.0
    %1411 = vmatpush2.msra.mxu0 0.0
    %1412 = vmatprep.subr.mxu0 0.0
    %1413 = vmatpush2.msra.mxu0 0.0
    %1414 = vmatprep.subr.mxu0 0.0
    %1415 = vmatpush2.msra.mxu0 0.0
    %1416 = vmatprep.subr.mxu0 0.0
    %1417 = vmatpush2.msra.mxu0 0.0
    %1418 = vmatprep.subr.mxu0 0.0
    %1419 = vmatpush2.msra.mxu0 0.0
    %1420 = vmatprep.subr.mxu0 0.0
    %1421 = vmatpush2.msra.mxu0 0.0
    %1422 = vmatprep.subr.mxu0 0.0
    %1423 = vmatpush2.msra.mxu0 0.0
    %1424 = vmatprep.subr.mxu0 0.0
    %1425 = vmatpush2.msra.mxu0 0.0
    %1426 = vmatprep.subr.mxu0 0.0
    %1427 = vmatpush2.msra.mxu0 0.0
    %1428 = vmatprep.subr.mxu0 0.0
    %1429 = vmatpush2.msra.mxu0 0.0
    %1430 = vmatprep.subr.mxu0 0.0
    %1431 = vmatpush2.msra.mxu0 0.0
    %1432 = vmatprep.mubr.f32.mxu0 0.0
    %1433 = vmatmul.mubr.f32.gmra.mxu0 %v1152
    %v1434 = vpop.f32.mrf.mxu0
    %v1435 = vadd.f32 %v1365, %v1434
    %v1436 = vpop.f32.mrf.mxu0
    %1437 = vdwg.mxu0
    %v1438 = vmul.f32 %v1150, 0.8026
    %v1439 = vtanh.pop %v1435
    %v1440 = vmul.f32 %v1439, 0.042
    %v1441 = vadd.f32 %v1438, %v1440
    %v1442 = vmul.f32 %v1152, 0.1134
    %v1443 = vsub.f32 %v1441, %v1442
    %v1444 = vmul.f32 %v1443, 0.042
    %v1445 = vadd.f32 %v1152, %v1444
    %v1446 = vld [vmem:[#allocation8] sm:$0xff]
    %v1447 = vld [vmem:[#allocation8 + $0x8] sm:$0xff]
    %v1448 = vld [vmem:[#allocation8 + $0x10] sm:$0xff]
    %v1449 = vld [vmem:[#allocation8 + $0x18] sm:$0xff]
    %v1450 = vld [vmem:[#allocation8 + $0x20] sm:$0xff]
    %v1451 = vld [vmem:[#allocation8 + $0x28] sm:$0xff]
    %v1452 = vld [vmem:[#allocation8 + $0x30] sm:$0xff]
    %v1453 = vld [vmem:[#allocation8 + $0x38] sm:$0xff]
    %v1454 = vld [vmem:[#allocation8 + $0x40] sm:$0xff]
    %v1455 = vld [vmem:[#allocation8 + $0x48] sm:$0xff]
    %v1456 = vld [vmem:[#allocation8 + $0x50] sm:$0xff]
    %v1457 = vld [vmem:[#allocation8 + $0x58] sm:$0xff]
    %v1458 = vld [vmem:[#allocation8 + $0x60] sm:$0xff]
    %v1459 = vld [vmem:[#allocation8 + $0x68] sm:$0xff]
    %v1460 = vld [vmem:[#allocation8 + $0x70] sm:$0xff]
    %v1461 = vld [vmem:[#allocation8 + $0x78] sm:$0xff]
    %1462 = vmatprep.subr.mxu0 0.0
    %1463 = vmatpush1.msra.mxu0 %v1461
    %1464 = vmatprep.subr.mxu0 0.0
    %1465 = vmatpush1.msra.mxu0 %v1460
    %1466 = vmatprep.subr.mxu0 0.0
    %1467 = vmatpush1.msra.mxu0 %v1459
    %1468 = vmatprep.subr.mxu0 0.0
    %1469 = vmatpush1.msra.mxu0 %v1458
    %1470 = vmatprep.subr.mxu0 0.0
    %1471 = vmatpush1.msra.mxu0 %v1457
    %1472 = vmatprep.subr.mxu0 0.0
    %1473 = vmatpush1.msra.mxu0 %v1456
    %1474 = vmatprep.subr.mxu0 0.0
    %1475 = vmatpush1.msra.mxu0 %v1455
    %1476 = vmatprep.subr.mxu0 0.0
    %1477 = vmatpush1.msra.mxu0 %v1454
    %1478 = vmatprep.subr.mxu0 0.0
    %1479 = vmatpush1.msra.mxu0 %v1453
    %1480 = vmatprep.subr.mxu0 0.0
    %1481 = vmatpush1.msra.mxu0 %v1452
    %1482 = vmatprep.subr.mxu0 0.0
    %1483 = vmatpush1.msra.mxu0 %v1451
    %1484 = vmatprep.subr.mxu0 0.0
    %1485 = vmatpush1.msra.mxu0 %v1450
    %1486 = vmatprep.subr.mxu0 0.0
    %1487 = vmatpush1.msra.mxu0 %v1449
    %1488 = vmatprep.subr.mxu0 0.0
    %1489 = vmatpush1.msra.mxu0 %v1448
    %1490 = vmatprep.subr.mxu0 0.0
    %1491 = vmatpush1.msra.mxu0 %v1447
    %1492 = vmatprep.subr.mxu0 0.0
    %1493 = vmatpush1.msra.mxu0 %v1446
    %1494 = vmatprep.subr.mxu0 0.0
    %1495 = vmatpush2.msra.mxu0 0.0
    %1496 = vmatprep.subr.mxu0 0.0
    %1497 = vmatpush2.msra.mxu0 0.0
    %1498 = vmatprep.subr.mxu0 0.0
    %1499 = vmatpush2.msra.mxu0 0.0
    %1500 = vmatprep.subr.mxu0 0.0
    %1501 = vmatpush2.msra.mxu0 0.0
    %1502 = vmatprep.subr.mxu0 0.0
    %1503 = vmatpush2.msra.mxu0 0.0
    %1504 = vmatprep.subr.mxu0 0.0
    %1505 = vmatpush2.msra.mxu0 0.0
    %1506 = vmatprep.subr.mxu0 0.0
    %1507 = vmatpush2.msra.mxu0 0.0
    %1508 = vmatprep.subr.mxu0 0.0
    %1509 = vmatpush2.msra.mxu0 0.0
    %1510 = vmatprep.subr.mxu0 0.0
    %1511 = vmatpush2.msra.mxu0 0.0
    %1512 = vmatprep.subr.mxu0 0.0
    %1513 = vmatpush2.msra.mxu0 0.0
    %1514 = vmatprep.subr.mxu0 0.0
    %1515 = vmatpush2.msra.mxu0 0.0
    %1516 = vmatprep.subr.mxu0 0.0
    %1517 = vmatpush2.msra.mxu0 0.0
    %1518 = vmatprep.subr.mxu0 0.0
    %1519 = vmatpush2.msra.mxu0 0.0
    %1520 = vmatprep.subr.mxu0 0.0
    %1521 = vmatpush2.msra.mxu0 0.0
    %1522 = vmatprep.subr.mxu0 0.0
    %1523 = vmatpush2.msra.mxu0 0.0
    %1524 = vmatprep.subr.mxu0 0.0
    %1525 = vmatpush2.msra.mxu0 0.0
    %1526 = vmatprep.mubr.f32.mxu0 0.0
    %1527 = vmatmul.mubr.f32.gmra.mxu0 %v1445
    %v1528 = vpop.f32.mrf.mxu0
    %v1529 = vadd.f32 0.0, %v1528
    %v1530 = vpop.f32.mrf.mxu0
    %1531 = vdwg.mxu0
    %s1532 = scalar_lea.vmem [#allocation9], 32
    %1533 = vst [vmem:[%s1532] sm:$0xff] %v1529
    %s1534 = scalar_lea.vmem [#allocation3], 40
    %v1535 = vld [vmem:[%s1534] sm:$0xff]
    %v1536 = vld [vmem:[#allocation6] sm:$0xff]
    %v1537 = vld [vmem:[#allocation6 + $0x8] sm:$0xff]
    %v1538 = vld [vmem:[#allocation6 + $0x10] sm:$0xff]
    %v1539 = vld [vmem:[#allocation6 + $0x18] sm:$0xff]
    %v1540 = vld [vmem:[#allocation6 + $0x20] sm:$0xff]
    %v1541 = vld [vmem:[#allocation6 + $0x28] sm:$0xff]
    %v1542 = vld [vmem:[#allocation6 + $0x30] sm:$0xff]
    %v1543 = vld [vmem:[#allocation6 + $0x38] sm:$0xff]
    %v1544 = vld [vmem:[#allocation6 + $0x40] sm:$0xff]
    %v1545 = vld [vmem:[#allocation6 + $0x48] sm:$0xff]
    %v1546 = vld [vmem:[#allocation6 + $0x50] sm:$0xff]
    %v1547 = vld [vmem:[#allocation6 + $0x58] sm:$0xff]
    %v1548 = vld [vmem:[#allocation6 + $0x60] sm:$0xff]
    %v1549 = vld [vmem:[#allocation6 + $0x68] sm:$0xff]
    %v1550 = vld [vmem:[#allocation6 + $0x70] sm:$0xff]
    %v1551 = vld [vmem:[#allocation6 + $0x78] sm:$0xff]
    %v1552 = vld [vmem:[#allocation6 + $0x80] sm:$0xff]
    %v1553 = vld [vmem:[#allocation6 + $0x88] sm:$0xff]
    %v1554 = vld [vmem:[#allocation6 + $0x90] sm:$0xff]
    %v1555 = vld [vmem:[#allocation6 + $0x98] sm:$0xff]
    %v1556 = vld [vmem:[#allocation6 + $0xa0] sm:$0xff]
    %v1557 = vld [vmem:[#allocation6 + $0xa8] sm:$0xff]
    %v1558 = vld [vmem:[#allocation6 + $0xb0] sm:$0xff]
    %v1559 = vld [vmem:[#allocation6 + $0xb8] sm:$0xff]
    %v1560 = vld [vmem:[#allocation6 + $0xc0] sm:$0xff]
    %v1561 = vld [vmem:[#allocation6 + $0xc8] sm:$0xff]
    %v1562 = vld [vmem:[#allocation6 + $0xd0] sm:$0xff]
    %v1563 = vld [vmem:[#allocation6 + $0xd8] sm:$0xff]
    %v1564 = vld [vmem:[#allocation6 + $0xe0] sm:$0xff]
    %v1565 = vld [vmem:[#allocation6 + $0xe8] sm:$0xff]
    %v1566 = vld [vmem:[#allocation6 + $0xf0] sm:$0xff]
    %v1567 = vld [vmem:[#allocation6 + $0xf8] sm:$0xff]
    %v1568 = vld [vmem:[#allocation6 + $0x100] sm:$0xff]
    %v1569 = vld [vmem:[#allocation6 + $0x108] sm:$0xff]
    %v1570 = vld [vmem:[#allocation6 + $0x110] sm:$0xff]
    %v1571 = vld [vmem:[#allocation6 + $0x118] sm:$0xff]
    %v1572 = vld [vmem:[#allocation6 + $0x120] sm:$0xff]
    %v1573 = vld [vmem:[#allocation6 + $0x128] sm:$0xff]
    %v1574 = vld [vmem:[#allocation6 + $0x130] sm:$0xff]
    %v1575 = vld [vmem:[#allocation6 + $0x138] sm:$0xff]
    %v1576 = vld [vmem:[#allocation6 + $0x140] sm:$0xff]
    %v1577 = vld [vmem:[#allocation6 + $0x148] sm:$0xff]
    %v1578 = vld [vmem:[#allocation6 + $0x150] sm:$0xff]
    %v1579 = vld [vmem:[#allocation6 + $0x158] sm:$0xff]
    %v1580 = vld [vmem:[#allocation6 + $0x160] sm:$0xff]
    %v1581 = vld [vmem:[#allocation6 + $0x168] sm:$0xff]
    %v1582 = vld [vmem:[#allocation6 + $0x170] sm:$0xff]
    %v1583 = vld [vmem:[#allocation6 + $0x178] sm:$0xff]
    %v1584 = vld [vmem:[%s2] sm:$0x1]
    %v1586 = vlaneseq
    %v1587 = vshrl.u32 %v1586, 7
    %v1588 = vsub.s32 0, %v1587
    %v1589 = vrot.slane %v1584, %v1588
    %1591 = vmatprep.subr.mxu0 0.0
    %1592 = vmatpush1.msra.mxu0 %v1551
    %1593 = vmatprep.subr.mxu0 0.0
    %1594 = vmatpush1.msra.mxu0 %v1550
    %1595 = vmatprep.subr.mxu0 0.0
    %1596 = vmatpush1.msra.mxu0 %v1549
    %1597 = vmatprep.subr.mxu0 0.0
    %1598 = vmatpush1.msra.mxu0 %v1548
    %1599 = vmatprep.subr.mxu0 0.0
    %1600 = vmatpush1.msra.mxu0 %v1547
    %1601 = vmatprep.subr.mxu0 0.0
    %1602 = vmatpush1.msra.mxu0 %v1546
    %1603 = vmatprep.subr.mxu0 0.0
    %1604 = vmatpush1.msra.mxu0 %v1545
    %1605 = vmatprep.subr.mxu0 0.0
    %1606 = vmatpush1.msra.mxu0 %v1544
    %1607 = vmatprep.subr.mxu0 0.0
    %1608 = vmatpush1.msra.mxu0 %v1543
    %1609 = vmatprep.subr.mxu0 0.0
    %1610 = vmatpush1.msra.mxu0 %v1542
    %1611 = vmatprep.subr.mxu0 0.0
    %1612 = vmatpush1.msra.mxu0 %v1541
    %1613 = vmatprep.subr.mxu0 0.0
    %1614 = vmatpush1.msra.mxu0 %v1540
    %1615 = vmatprep.subr.mxu0 0.0
    %1616 = vmatpush1.msra.mxu0 %v1539
    %1617 = vmatprep.subr.mxu0 0.0
    %1618 = vmatpush1.msra.mxu0 %v1538
    %1619 = vmatprep.subr.mxu0 0.0
    %1620 = vmatpush1.msra.mxu0 %v1537
    %1621 = vmatprep.subr.mxu0 0.0
    %1622 = vmatpush1.msra.mxu0 %v1536
    %1623 = vmatprep.subr.mxu0 0.0
    %1624 = vmatpush2.msra.mxu0 %v1567
    %1625 = vmatprep.subr.mxu0 0.0
    %1626 = vmatpush2.msra.mxu0 %v1566
    %1627 = vmatprep.subr.mxu0 0.0
    %1628 = vmatpush2.msra.mxu0 %v1565
    %1629 = vmatprep.subr.mxu0 0.0
    %1630 = vmatpush2.msra.mxu0 %v1564
    %1631 = vmatprep.subr.mxu0 0.0
    %1632 = vmatpush2.msra.mxu0 %v1563
    %1633 = vmatprep.subr.mxu0 0.0
    %1634 = vmatpush2.msra.mxu0 %v1562
    %1635 = vmatprep.subr.mxu0 0.0
    %1636 = vmatpush2.msra.mxu0 %v1561
    %1637 = vmatprep.subr.mxu0 0.0
    %1638 = vmatpush2.msra.mxu0 %v1560
    %1639 = vmatprep.subr.mxu0 0.0
    %1640 = vmatpush2.msra.mxu0 %v1559
    %1641 = vmatprep.subr.mxu0 0.0
    %1642 = vmatpush2.msra.mxu0 %v1558
    %1643 = vmatprep.subr.mxu0 0.0
    %1644 = vmatpush2.msra.mxu0 %v1557
    %1645 = vmatprep.subr.mxu0 0.0
    %1646 = vmatpush2.msra.mxu0 %v1556
    %1647 = vmatprep.subr.mxu0 0.0
    %1648 = vmatpush2.msra.mxu0 %v1555
    %1649 = vmatprep.subr.mxu0 0.0
    %1650 = vmatpush2.msra.mxu0 %v1554
    %1651 = vmatprep.subr.mxu0 0.0
    %1652 = vmatpush2.msra.mxu0 %v1553
    %1653 = vmatprep.subr.mxu0 0.0
    %1654 = vmatpush2.msra.mxu0 %v1552
    %1655 = vmatprep.mubr.f32.mxu0 %v1443
    %1656 = vmatmul.mubr.f32.gmra.mxu0 %v1535
    %v1657 = vpop.f32.mrf.mxu0
    %v1658 = vadd.f32 %v1589, %v1657
    %v1659 = vpop.f32.mrf.mxu0
    %1660 = vdwg.mxu0
    %1661 = vmatprep.subr.mxu0 0.0
    %1662 = vmatpush1.msra.mxu0 %v1583
    %1663 = vmatprep.subr.mxu0 0.0
    %1664 = vmatpush1.msra.mxu0 %v1582
    %1665 = vmatprep.subr.mxu0 0.0
    %1666 = vmatpush1.msra.mxu0 %v1581
    %1667 = vmatprep.subr.mxu0 0.0
    %1668 = vmatpush1.msra.mxu0 %v1580
    %1669 = vmatprep.subr.mxu0 0.0
    %1670 = vmatpush1.msra.mxu0 %v1579
    %1671 = vmatprep.subr.mxu0 0.0
    %1672 = vmatpush1.msra.mxu0 %v1578
    %1673 = vmatprep.subr.mxu0 0.0
    %1674 = vmatpush1.msra.mxu0 %v1577
    %1675 = vmatprep.subr.mxu0 0.0
    %1676 = vmatpush1.msra.mxu0 %v1576
    %1677 = vmatprep.subr.mxu0 0.0
    %1678 = vmatpush1.msra.mxu0 %v1575
    %1679 = vmatprep.subr.mxu0 0.0
    %1680 = vmatpush1.msra.mxu0 %v1574
    %1681 = vmatprep.subr.mxu0 0.0
    %1682 = vmatpush1.msra.mxu0 %v1573
    %1683 = vmatprep.subr.mxu0 0.0
    %1684 = vmatpush1.msra.mxu0 %v1572
    %1685 = vmatprep.subr.mxu0 0.0
    %1686 = vmatpush1.msra.mxu0 %v1571
    %1687 = vmatprep.subr.mxu0 0.0
    %1688 = vmatpush1.msra.mxu0 %v1570
    %1689 = vmatprep.subr.mxu0 0.0
    %1690 = vmatpush1.msra.mxu0 %v1569
    %1691 = vmatprep.subr.mxu0 0.0
    %1692 = vmatpush1.msra.mxu0 %v1568
    %1693 = vmatprep.subr.mxu0 0.0
    %1694 = vmatpush2.msra.mxu0 0.0
    %1695 = vmatprep.subr.mxu0 0.0
    %1696 = vmatpush2.msra.mxu0 0.0
    %1697 = vmatprep.subr.mxu0 0.0
    %1698 = vmatpush2.msra.mxu0 0.0
    %1699 = vmatprep.subr.mxu0 0.0
    %1700 = vmatpush2.msra.mxu0 0.0
    %1701 = vmatprep.subr.mxu0 0.0
    %1702 = vmatpush2.msra.mxu0 0.0
    %1703 = vmatprep.subr.mxu0 0.0
    %1704 = vmatpush2.msra.mxu0 0.0
    %1705 = vmatprep.subr.mxu0 0.0
    %1706 = vmatpush2.msra.mxu0 0.0
    %1707 = vmatprep.subr.mxu0 0.0
    %1708 = vmatpush2.msra.mxu0 0.0
    %1709 = vmatprep.subr.mxu0 0.0
    %1710 = vmatpush2.msra.mxu0 0.0
    %1711 = vmatprep.subr.mxu0 0.0
    %1712 = vmatpush2.msra.mxu0 0.0
    %1713 = vmatprep.subr.mxu0 0.0
    %1714 = vmatpush2.msra.mxu0 0.0
    %1715 = vmatprep.subr.mxu0 0.0
    %1716 = vmatpush2.msra.mxu0 0.0
    %1717 = vmatprep.subr.mxu0 0.0
    %1718 = vmatpush2.msra.mxu0 0.0
    %1719 = vmatprep.subr.mxu0 0.0
    %1720 = vmatpush2.msra.mxu0 0.0
    %1721 = vmatprep.subr.mxu0 0.0
    %1722 = vmatpush2.msra.mxu0 0.0
    %1723 = vmatprep.subr.mxu0 0.0
    %1724 = vmatpush2.msra.mxu0 0.0
    %1725 = vmatprep.mubr.f32.mxu0 0.0
    %1726 = vmatmul.mubr.f32.gmra.mxu0 %v1445
    %v1727 = vpop.f32.mrf.mxu0
    %v1728 = vadd.f32 %v1658, %v1727
    %v1729 = vpop.f32.mrf.mxu0
    %1730 = vdwg.mxu0
    %v1731 = vmul.f32 %v1443, 0.8026
    %v1732 = vtanh.pop %v1728
    %v1733 = vmul.f32 %v1732, 0.042
    %v1734 = vadd.f32 %v1731, %v1733
    %v1735 = vmul.f32 %v1445, 0.1134
    %v1736 = vsub.f32 %v1734, %v1735
    %v1737 = vmul.f32 %v1736, 0.042
    %v1738 = vadd.f32 %v1445, %v1737
    %v1739 = vld [vmem:[#allocation8] sm:$0xff]
    %v1740 = vld [vmem:[#allocation8 + $0x8] sm:$0xff]
    %v1741 = vld [vmem:[#allocation8 + $0x10] sm:$0xff]
    %v1742 = vld [vmem:[#allocation8 + $0x18] sm:$0xff]
    %v1743 = vld [vmem:[#allocation8 + $0x20] sm:$0xff]
    %v1744 = vld [vmem:[#allocation8 + $0x28] sm:$0xff]
    %v1745 = vld [vmem:[#allocation8 + $0x30] sm:$0xff]
    %v1746 = vld [vmem:[#allocation8 + $0x38] sm:$0xff]
    %v1747 = vld [vmem:[#allocation8 + $0x40] sm:$0xff]
    %v1748 = vld [vmem:[#allocation8 + $0x48] sm:$0xff]
    %v1749 = vld [vmem:[#allocation8 + $0x50] sm:$0xff]
    %v1750 = vld [vmem:[#allocation8 + $0x58] sm:$0xff]
    %v1751 = vld [vmem:[#allocation8 + $0x60] sm:$0xff]
    %v1752 = vld [vmem:[#allocation8 + $0x68] sm:$0xff]
    %v1753 = vld [vmem:[#allocation8 + $0x70] sm:$0xff]
    %v1754 = vld [vmem:[#allocation8 + $0x78] sm:$0xff]
    %1755 = vmatprep.subr.mxu0 0.0
    %1756 = vmatpush1.msra.mxu0 %v1754
    %1757 = vmatprep.subr.mxu0 0.0
    %1758 = vmatpush1.msra.mxu0 %v1753
    %1759 = vmatprep.subr.mxu0 0.0
    %1760 = vmatpush1.msra.mxu0 %v1752
    %1761 = vmatprep.subr.mxu0 0.0
    %1762 = vmatpush1.msra.mxu0 %v1751
    %1763 = vmatprep.subr.mxu0 0.0
    %1764 = vmatpush1.msra.mxu0 %v1750
    %1765 = vmatprep.subr.mxu0 0.0
    %1766 = vmatpush1.msra.mxu0 %v1749
    %1767 = vmatprep.subr.mxu0 0.0
    %1768 = vmatpush1.msra.mxu0 %v1748
    %1769 = vmatprep.subr.mxu0 0.0
    %1770 = vmatpush1.msra.mxu0 %v1747
    %1771 = vmatprep.subr.mxu0 0.0
    %1772 = vmatpush1.msra.mxu0 %v1746
    %1773 = vmatprep.subr.mxu0 0.0
    %1774 = vmatpush1.msra.mxu0 %v1745
    %1775 = vmatprep.subr.mxu0 0.0
    %1776 = vmatpush1.msra.mxu0 %v1744
    %1777 = vmatprep.subr.mxu0 0.0
    %1778 = vmatpush1.msra.mxu0 %v1743
    %1779 = vmatprep.subr.mxu0 0.0
    %1780 = vmatpush1.msra.mxu0 %v1742
    %1781 = vmatprep.subr.mxu0 0.0
    %1782 = vmatpush1.msra.mxu0 %v1741
    %1783 = vmatprep.subr.mxu0 0.0
    %1784 = vmatpush1.msra.mxu0 %v1740
    %1785 = vmatprep.subr.mxu0 0.0
    %1786 = vmatpush1.msra.mxu0 %v1739
    %1787 = vmatprep.subr.mxu0 0.0
    %1788 = vmatpush2.msra.mxu0 0.0
    %1789 = vmatprep.subr.mxu0 0.0
    %1790 = vmatpush2.msra.mxu0 0.0
    %1791 = vmatprep.subr.mxu0 0.0
    %1792 = vmatpush2.msra.mxu0 0.0
    %1793 = vmatprep.subr.mxu0 0.0
    %1794 = vmatpush2.msra.mxu0 0.0
    %1795 = vmatprep.subr.mxu0 0.0
    %1796 = vmatpush2.msra.mxu0 0.0
    %1797 = vmatprep.subr.mxu0 0.0
    %1798 = vmatpush2.msra.mxu0 0.0
    %1799 = vmatprep.subr.mxu0 0.0
    %1800 = vmatpush2.msra.mxu0 0.0
    %1801 = vmatprep.subr.mxu0 0.0
    %1802 = vmatpush2.msra.mxu0 0.0
    %1803 = vmatprep.subr.mxu0 0.0
    %1804 = vmatpush2.msra.mxu0 0.0
    %1805 = vmatprep.subr.mxu0 0.0
    %1806 = vmatpush2.msra.mxu0 0.0
    %1807 = vmatprep.subr.mxu0 0.0
    %1808 = vmatpush2.msra.mxu0 0.0
    %1809 = vmatprep.subr.mxu0 0.0
    %1810 = vmatpush2.msra.mxu0 0.0
    %1811 = vmatprep.subr.mxu0 0.0
    %1812 = vmatpush2.msra.mxu0 0.0
    %1813 = vmatprep.subr.mxu0 0.0
    %1814 = vmatpush2.msra.mxu0 0.0
    %1815 = vmatprep.subr.mxu0 0.0
    %1816 = vmatpush2.msra.mxu0 0.0
    %1817 = vmatprep.subr.mxu0 0.0
    %1818 = vmatpush2.msra.mxu0 0.0
    %1819 = vmatprep.mubr.f32.mxu0 0.0
    %1820 = vmatmul.mubr.f32.gmra.mxu0 %v1738
    %v1821 = vpop.f32.mrf.mxu0
    %v1822 = vadd.f32 0.0, %v1821
    %v1823 = vpop.f32.mrf.mxu0
    %1824 = vdwg.mxu0
    %s1825 = scalar_lea.vmem [#allocation9], 40
    %1826 = vst [vmem:[%s1825] sm:$0xff] %v1822
    %s1827 = scalar_lea.vmem [#allocation3], 48
    %v1828 = vld [vmem:[%s1827] sm:$0xff]
    %v1829 = vld [vmem:[#allocation6] sm:$0xff]
    %v1830 = vld [vmem:[#allocation6 + $0x8] sm:$0xff]
    %v1831 = vld [vmem:[#allocation6 + $0x10] sm:$0xff]
    %v1832 = vld [vmem:[#allocation6 + $0x18] sm:$0xff]
    %v1833 = vld [vmem:[#allocation6 + $0x20] sm:$0xff]
    %v1834 = vld [vmem:[#allocation6 + $0x28] sm:$0xff]
    %v1835 = vld [vmem:[#allocation6 + $0x30] sm:$0xff]
    %v1836 = vld [vmem:[#allocation6 + $0x38] sm:$0xff]
    %v1837 = vld [vmem:[#allocation6 + $0x40] sm:$0xff]
    %v1838 = vld [vmem:[#allocation6 + $0x48] sm:$0xff]
    %v1839 = vld [vmem:[#allocation6 + $0x50] sm:$0xff]
    %v1840 = vld [vmem:[#allocation6 + $0x58] sm:$0xff]
    %v1841 = vld [vmem:[#allocation6 + $0x60] sm:$0xff]
    %v1842 = vld [vmem:[#allocation6 + $0x68] sm:$0xff]
    %v1843 = vld [vmem:[#allocation6 + $0x70] sm:$0xff]
    %v1844 = vld [vmem:[#allocation6 + $0x78] sm:$0xff]
    %v1845 = vld [vmem:[#allocation6 + $0x80] sm:$0xff]
    %v1846 = vld [vmem:[#allocation6 + $0x88] sm:$0xff]
    %v1847 = vld [vmem:[#allocation6 + $0x90] sm:$0xff]
    %v1848 = vld [vmem:[#allocation6 + $0x98] sm:$0xff]
    %v1849 = vld [vmem:[#allocation6 + $0xa0] sm:$0xff]
    %v1850 = vld [vmem:[#allocation6 + $0xa8] sm:$0xff]
    %v1851 = vld [vmem:[#allocation6 + $0xb0] sm:$0xff]
    %v1852 = vld [vmem:[#allocation6 + $0xb8] sm:$0xff]
    %v1853 = vld [vmem:[#allocation6 + $0xc0] sm:$0xff]
    %v1854 = vld [vmem:[#allocation6 + $0xc8] sm:$0xff]
    %v1855 = vld [vmem:[#allocation6 + $0xd0] sm:$0xff]
    %v1856 = vld [vmem:[#allocation6 + $0xd8] sm:$0xff]
    %v1857 = vld [vmem:[#allocation6 + $0xe0] sm:$0xff]
    %v1858 = vld [vmem:[#allocation6 + $0xe8] sm:$0xff]
    %v1859 = vld [vmem:[#allocation6 + $0xf0] sm:$0xff]
    %v1860 = vld [vmem:[#allocation6 + $0xf8] sm:$0xff]
    %v1861 = vld [vmem:[#allocation6 + $0x100] sm:$0xff]
    %v1862 = vld [vmem:[#allocation6 + $0x108] sm:$0xff]
    %v1863 = vld [vmem:[#allocation6 + $0x110] sm:$0xff]
    %v1864 = vld [vmem:[#allocation6 + $0x118] sm:$0xff]
    %v1865 = vld [vmem:[#allocation6 + $0x120] sm:$0xff]
    %v1866 = vld [vmem:[#allocation6 + $0x128] sm:$0xff]
    %v1867 = vld [vmem:[#allocation6 + $0x130] sm:$0xff]
    %v1868 = vld [vmem:[#allocation6 + $0x138] sm:$0xff]
    %v1869 = vld [vmem:[#allocation6 + $0x140] sm:$0xff]
    %v1870 = vld [vmem:[#allocation6 + $0x148] sm:$0xff]
    %v1871 = vld [vmem:[#allocation6 + $0x150] sm:$0xff]
    %v1872 = vld [vmem:[#allocation6 + $0x158] sm:$0xff]
    %v1873 = vld [vmem:[#allocation6 + $0x160] sm:$0xff]
    %v1874 = vld [vmem:[#allocation6 + $0x168] sm:$0xff]
    %v1875 = vld [vmem:[#allocation6 + $0x170] sm:$0xff]
    %v1876 = vld [vmem:[#allocation6 + $0x178] sm:$0xff]
    %v1877 = vld [vmem:[%s2] sm:$0x1]
    %v1879 = vlaneseq
    %v1880 = vshrl.u32 %v1879, 7
    %v1881 = vsub.s32 0, %v1880
    %v1882 = vrot.slane %v1877, %v1881
    %1884 = vmatprep.subr.mxu0 0.0
    %1885 = vmatpush1.msra.mxu0 %v1844
    %1886 = vmatprep.subr.mxu0 0.0
    %1887 = vmatpush1.msra.mxu0 %v1843
    %1888 = vmatprep.subr.mxu0 0.0
    %1889 = vmatpush1.msra.mxu0 %v1842
    %1890 = vmatprep.subr.mxu0 0.0
    %1891 = vmatpush1.msra.mxu0 %v1841
    %1892 = vmatprep.subr.mxu0 0.0
    %1893 = vmatpush1.msra.mxu0 %v1840
    %1894 = vmatprep.subr.mxu0 0.0
    %1895 = vmatpush1.msra.mxu0 %v1839
    %1896 = vmatprep.subr.mxu0 0.0
    %1897 = vmatpush1.msra.mxu0 %v1838
    %1898 = vmatprep.subr.mxu0 0.0
    %1899 = vmatpush1.msra.mxu0 %v1837
    %1900 = vmatprep.subr.mxu0 0.0
    %1901 = vmatpush1.msra.mxu0 %v1836
    %1902 = vmatprep.subr.mxu0 0.0
    %1903 = vmatpush1.msra.mxu0 %v1835
    %1904 = vmatprep.subr.mxu0 0.0
    %1905 = vmatpush1.msra.mxu0 %v1834
    %1906 = vmatprep.subr.mxu0 0.0
    %1907 = vmatpush1.msra.mxu0 %v1833
    %1908 = vmatprep.subr.mxu0 0.0
    %1909 = vmatpush1.msra.mxu0 %v1832
    %1910 = vmatprep.subr.mxu0 0.0
    %1911 = vmatpush1.msra.mxu0 %v1831
    %1912 = vmatprep.subr.mxu0 0.0
    %1913 = vmatpush1.msra.mxu0 %v1830
    %1914 = vmatprep.subr.mxu0 0.0
    %1915 = vmatpush1.msra.mxu0 %v1829
    %1916 = vmatprep.subr.mxu0 0.0
    %1917 = vmatpush2.msra.mxu0 %v1860
    %1918 = vmatprep.subr.mxu0 0.0
    %1919 = vmatpush2.msra.mxu0 %v1859
    %1920 = vmatprep.subr.mxu0 0.0
    %1921 = vmatpush2.msra.mxu0 %v1858
    %1922 = vmatprep.subr.mxu0 0.0
    %1923 = vmatpush2.msra.mxu0 %v1857
    %1924 = vmatprep.subr.mxu0 0.0
    %1925 = vmatpush2.msra.mxu0 %v1856
    %1926 = vmatprep.subr.mxu0 0.0
    %1927 = vmatpush2.msra.mxu0 %v1855
    %1928 = vmatprep.subr.mxu0 0.0
    %1929 = vmatpush2.msra.mxu0 %v1854
    %1930 = vmatprep.subr.mxu0 0.0
    %1931 = vmatpush2.msra.mxu0 %v1853
    %1932 = vmatprep.subr.mxu0 0.0
    %1933 = vmatpush2.msra.mxu0 %v1852
    %1934 = vmatprep.subr.mxu0 0.0
    %1935 = vmatpush2.msra.mxu0 %v1851
    %1936 = vmatprep.subr.mxu0 0.0
    %1937 = vmatpush2.msra.mxu0 %v1850
    %1938 = vmatprep.subr.mxu0 0.0
    %1939 = vmatpush2.msra.mxu0 %v1849
    %1940 = vmatprep.subr.mxu0 0.0
    %1941 = vmatpush2.msra.mxu0 %v1848
    %1942 = vmatprep.subr.mxu0 0.0
    %1943 = vmatpush2.msra.mxu0 %v1847
    %1944 = vmatprep.subr.mxu0 0.0
    %1945 = vmatpush2.msra.mxu0 %v1846
    %1946 = vmatprep.subr.mxu0 0.0
    %1947 = vmatpush2.msra.mxu0 %v1845
    %1948 = vmatprep.mubr.f32.mxu0 %v1736
    %1949 = vmatmul.mubr.f32.gmra.mxu0 %v1828
    %v1950 = vpop.f32.mrf.mxu0
    %v1951 = vadd.f32 %v1882, %v1950
    %v1952 = vpop.f32.mrf.mxu0
    %1953 = vdwg.mxu0
    %1954 = vmatprep.subr.mxu0 0.0
    %1955 = vmatpush1.msra.mxu0 %v1876
    %1956 = vmatprep.subr.mxu0 0.0
    %1957 = vmatpush1.msra.mxu0 %v1875
    %1958 = vmatprep.subr.mxu0 0.0
    %1959 = vmatpush1.msra.mxu0 %v1874
    %1960 = vmatprep.subr.mxu0 0.0
    %1961 = vmatpush1.msra.mxu0 %v1873
    %1962 = vmatprep.subr.mxu0 0.0
    %1963 = vmatpush1.msra.mxu0 %v1872
    %1964 = vmatprep.subr.mxu0 0.0
    %1965 = vmatpush1.msra.mxu0 %v1871
    %1966 = vmatprep.subr.mxu0 0.0
    %1967 = vmatpush1.msra.mxu0 %v1870
    %1968 = vmatprep.subr.mxu0 0.0
    %1969 = vmatpush1.msra.mxu0 %v1869
    %1970 = vmatprep.subr.mxu0 0.0
    %1971 = vmatpush1.msra.mxu0 %v1868
    %1972 = vmatprep.subr.mxu0 0.0
    %1973 = vmatpush1.msra.mxu0 %v1867
    %1974 = vmatprep.subr.mxu0 0.0
    %1975 = vmatpush1.msra.mxu0 %v1866
    %1976 = vmatprep.subr.mxu0 0.0
    %1977 = vmatpush1.msra.mxu0 %v1865
    %1978 = vmatprep.subr.mxu0 0.0
    %1979 = vmatpush1.msra.mxu0 %v1864
    %1980 = vmatprep.subr.mxu0 0.0
    %1981 = vmatpush1.msra.mxu0 %v1863
    %1982 = vmatprep.subr.mxu0 0.0
    %1983 = vmatpush1.msra.mxu0 %v1862
    %1984 = vmatprep.subr.mxu0 0.0
    %1985 = vmatpush1.msra.mxu0 %v1861
    %1986 = vmatprep.subr.mxu0 0.0
    %1987 = vmatpush2.msra.mxu0 0.0
    %1988 = vmatprep.subr.mxu0 0.0
    %1989 = vmatpush2.msra.mxu0 0.0
    %1990 = vmatprep.subr.mxu0 0.0
    %1991 = vmatpush2.msra.mxu0 0.0
    %1992 = vmatprep.subr.mxu0 0.0
    %1993 = vmatpush2.msra.mxu0 0.0
    %1994 = vmatprep.subr.mxu0 0.0
    %1995 = vmatpush2.msra.mxu0 0.0
    %1996 = vmatprep.subr.mxu0 0.0
    %1997 = vmatpush2.msra.mxu0 0.0
    %1998 = vmatprep.subr.mxu0 0.0
    %1999 = vmatpush2.msra.mxu0 0.0
    %2000 = vmatprep.subr.mxu0 0.0
    %2001 = vmatpush2.msra.mxu0 0.0
    %2002 = vmatprep.subr.mxu0 0.0
    %2003 = vmatpush2.msra.mxu0 0.0
    %2004 = vmatprep.subr.mxu0 0.0
    %2005 = vmatpush2.msra.mxu0 0.0
    %2006 = vmatprep.subr.mxu0 0.0
    %2007 = vmatpush2.msra.mxu0 0.0
    %2008 = vmatprep.subr.mxu0 0.0
    %2009 = vmatpush2.msra.mxu0 0.0
    %2010 = vmatprep.subr.mxu0 0.0
    %2011 = vmatpush2.msra.mxu0 0.0
    %2012 = vmatprep.subr.mxu0 0.0
    %2013 = vmatpush2.msra.mxu0 0.0
    %2014 = vmatprep.subr.mxu0 0.0
    %2015 = vmatpush2.msra.mxu0 0.0
    %2016 = vmatprep.subr.mxu0 0.0
    %2017 = vmatpush2.msra.mxu0 0.0
    %2018 = vmatprep.mubr.f32.mxu0 0.0
    %2019 = vmatmul.mubr.f32.gmra.mxu0 %v1738
    %v2020 = vpop.f32.mrf.mxu0
    %v2021 = vadd.f32 %v1951, %v2020
    %v2022 = vpop.f32.mrf.mxu0
    %2023 = vdwg.mxu0
    %v2024 = vmul.f32 %v1736, 0.8026
    %v2025 = vtanh.pop %v2021
    %v2026 = vmul.f32 %v2025, 0.042
    %v2027 = vadd.f32 %v2024, %v2026
    %v2028 = vmul.f32 %v1738, 0.1134
    %v2029 = vsub.f32 %v2027, %v2028
    %v2030 = vmul.f32 %v2029, 0.042
    %v2031 = vadd.f32 %v1738, %v2030
    %v2032 = vld [vmem:[#allocation8] sm:$0xff]
    %v2033 = vld [vmem:[#allocation8 + $0x8] sm:$0xff]
    %v2034 = vld [vmem:[#allocation8 + $0x10] sm:$0xff]
    %v2035 = vld [vmem:[#allocation8 + $0x18] sm:$0xff]
    %v2036 = vld [vmem:[#allocation8 + $0x20] sm:$0xff]
    %v2037 = vld [vmem:[#allocation8 + $0x28] sm:$0xff]
    %v2038 = vld [vmem:[#allocation8 + $0x30] sm:$0xff]
    %v2039 = vld [vmem:[#allocation8 + $0x38] sm:$0xff]
    %v2040 = vld [vmem:[#allocation8 + $0x40] sm:$0xff]
    %v2041 = vld [vmem:[#allocation8 + $0x48] sm:$0xff]
    %v2042 = vld [vmem:[#allocation8 + $0x50] sm:$0xff]
    %v2043 = vld [vmem:[#allocation8 + $0x58] sm:$0xff]
    %v2044 = vld [vmem:[#allocation8 + $0x60] sm:$0xff]
    %v2045 = vld [vmem:[#allocation8 + $0x68] sm:$0xff]
    %v2046 = vld [vmem:[#allocation8 + $0x70] sm:$0xff]
    %v2047 = vld [vmem:[#allocation8 + $0x78] sm:$0xff]
    %2048 = vmatprep.subr.mxu0 0.0
    %2049 = vmatpush1.msra.mxu0 %v2047
    %2050 = vmatprep.subr.mxu0 0.0
    %2051 = vmatpush1.msra.mxu0 %v2046
    %2052 = vmatprep.subr.mxu0 0.0
    %2053 = vmatpush1.msra.mxu0 %v2045
    %2054 = vmatprep.subr.mxu0 0.0
    %2055 = vmatpush1.msra.mxu0 %v2044
    %2056 = vmatprep.subr.mxu0 0.0
    %2057 = vmatpush1.msra.mxu0 %v2043
    %2058 = vmatprep.subr.mxu0 0.0
    %2059 = vmatpush1.msra.mxu0 %v2042
    %2060 = vmatprep.subr.mxu0 0.0
    %2061 = vmatpush1.msra.mxu0 %v2041
    %2062 = vmatprep.subr.mxu0 0.0
    %2063 = vmatpush1.msra.mxu0 %v2040
    %2064 = vmatprep.subr.mxu0 0.0
    %2065 = vmatpush1.msra.mxu0 %v2039
    %2066 = vmatprep.subr.mxu0 0.0
    %2067 = vmatpush1.msra.mxu0 %v2038
    %2068 = vmatprep.subr.mxu0 0.0
    %2069 = vmatpush1.msra.mxu0 %v2037
    %2070 = vmatprep.subr.mxu0 0.0
    %2071 = vmatpush1.msra.mxu0 %v2036
    %2072 = vmatprep.subr.mxu0 0.0
    %2073 = vmatpush1.msra.mxu0 %v2035
    %2074 = vmatprep.subr.mxu0 0.0
    %2075 = vmatpush1.msra.mxu0 %v2034
    %2076 = vmatprep.subr.mxu0 0.0
    %2077 = vmatpush1.msra.mxu0 %v2033
    %2078 = vmatprep.subr.mxu0 0.0
    %2079 = vmatpush1.msra.mxu0 %v2032
    %2080 = vmatprep.subr.mxu0 0.0
    %2081 = vmatpush2.msra.mxu0 0.0
    %2082 = vmatprep.subr.mxu0 0.0
    %2083 = vmatpush2.msra.mxu0 0.0
    %2084 = vmatprep.subr.mxu0 0.0
    %2085 = vmatpush2.msra.mxu0 0.0
    %2086 = vmatprep.subr.mxu0 0.0
    %2087 = vmatpush2.msra.mxu0 0.0
    %2088 = vmatprep.subr.mxu0 0.0
    %2089 = vmatpush2.msra.mxu0 0.0
    %2090 = vmatprep.subr.mxu0 0.0
    %2091 = vmatpush2.msra.mxu0 0.0
    %2092 = vmatprep.subr.mxu0 0.0
    %2093 = vmatpush2.msra.mxu0 0.0
    %2094 = vmatprep.subr.mxu0 0.0
    %2095 = vmatpush2.msra.mxu0 0.0
    %2096 = vmatprep.subr.mxu0 0.0
    %2097 = vmatpush2.msra.mxu0 0.0
    %2098 = vmatprep.subr.mxu0 0.0
    %2099 = vmatpush2.msra.mxu0 0.0
    %2100 = vmatprep.subr.mxu0 0.0
    %2101 = vmatpush2.msra.mxu0 0.0
    %2102 = vmatprep.subr.mxu0 0.0
    %2103 = vmatpush2.msra.mxu0 0.0
    %2104 = vmatprep.subr.mxu0 0.0
    %2105 = vmatpush2.msra.mxu0 0.0
    %2106 = vmatprep.subr.mxu0 0.0
    %2107 = vmatpush2.msra.mxu0 0.0
    %2108 = vmatprep.subr.mxu0 0.0
    %2109 = vmatpush2.msra.mxu0 0.0
    %2110 = vmatprep.subr.mxu0 0.0
    %2111 = vmatpush2.msra.mxu0 0.0
    %2112 = vmatprep.mubr.f32.mxu0 0.0
    %2113 = vmatmul.mubr.f32.gmra.mxu0 %v2031
    %v2114 = vpop.f32.mrf.mxu0
    %v2115 = vadd.f32 0.0, %v2114
    %v2116 = vpop.f32.mrf.mxu0
    %2117 = vdwg.mxu0
    %s2118 = scalar_lea.vmem [#allocation9], 48
    %2119 = vst [vmem:[%s2118] sm:$0xff] %v2115
    %s2120 = scalar_lea.vmem [#allocation3], 56
    %v2121 = vld [vmem:[%s2120] sm:$0xff]
    %v2122 = vld [vmem:[#allocation6] sm:$0xff]
    %v2123 = vld [vmem:[#allocation6 + $0x8] sm:$0xff]
    %v2124 = vld [vmem:[#allocation6 + $0x10] sm:$0xff]
    %v2125 = vld [vmem:[#allocation6 + $0x18] sm:$0xff]
    %v2126 = vld [vmem:[#allocation6 + $0x20] sm:$0xff]
    %v2127 = vld [vmem:[#allocation6 + $0x28] sm:$0xff]
    %v2128 = vld [vmem:[#allocation6 + $0x30] sm:$0xff]
    %v2129 = vld [vmem:[#allocation6 + $0x38] sm:$0xff]
    %v2130 = vld [vmem:[#allocation6 + $0x40] sm:$0xff]
    %v2131 = vld [vmem:[#allocation6 + $0x48] sm:$0xff]
    %v2132 = vld [vmem:[#allocation6 + $0x50] sm:$0xff]
    %v2133 = vld [vmem:[#allocation6 + $0x58] sm:$0xff]
    %v2134 = vld [vmem:[#allocation6 + $0x60] sm:$0xff]
    %v2135 = vld [vmem:[#allocation6 + $0x68] sm:$0xff]
    %v2136 = vld [vmem:[#allocation6 + $0x70] sm:$0xff]
    %v2137 = vld [vmem:[#allocation6 + $0x78] sm:$0xff]
    %v2138 = vld [vmem:[#allocation6 + $0x80] sm:$0xff]
    %v2139 = vld [vmem:[#allocation6 + $0x88] sm:$0xff]
    %v2140 = vld [vmem:[#allocation6 + $0x90] sm:$0xff]
    %v2141 = vld [vmem:[#allocation6 + $0x98] sm:$0xff]
    %v2142 = vld [vmem:[#allocation6 + $0xa0] sm:$0xff]
    %v2143 = vld [vmem:[#allocation6 + $0xa8] sm:$0xff]
    %v2144 = vld [vmem:[#allocation6 + $0xb0] sm:$0xff]
    %v2145 = vld [vmem:[#allocation6 + $0xb8] sm:$0xff]
    %v2146 = vld [vmem:[#allocation6 + $0xc0] sm:$0xff]
    %v2147 = vld [vmem:[#allocation6 + $0xc8] sm:$0xff]
    %v2148 = vld [vmem:[#allocation6 + $0xd0] sm:$0xff]
    %v2149 = vld [vmem:[#allocation6 + $0xd8] sm:$0xff]
    %v2150 = vld [vmem:[#allocation6 + $0xe0] sm:$0xff]
    %v2151 = vld [vmem:[#allocation6 + $0xe8] sm:$0xff]
    %v2152 = vld [vmem:[#allocation6 + $0xf0] sm:$0xff]
    %v2153 = vld [vmem:[#allocation6 + $0xf8] sm:$0xff]
    %v2154 = vld [vmem:[#allocation6 + $0x100] sm:$0xff]
    %v2155 = vld [vmem:[#allocation6 + $0x108] sm:$0xff]
    %v2156 = vld [vmem:[#allocation6 + $0x110] sm:$0xff]
    %v2157 = vld [vmem:[#allocation6 + $0x118] sm:$0xff]
    %v2158 = vld [vmem:[#allocation6 + $0x120] sm:$0xff]
    %v2159 = vld [vmem:[#allocation6 + $0x128] sm:$0xff]
    %v2160 = vld [vmem:[#allocation6 + $0x130] sm:$0xff]
    %v2161 = vld [vmem:[#allocation6 + $0x138] sm:$0xff]
    %v2162 = vld [vmem:[#allocation6 + $0x140] sm:$0xff]
    %v2163 = vld [vmem:[#allocation6 + $0x148] sm:$0xff]
    %v2164 = vld [vmem:[#allocation6 + $0x150] sm:$0xff]
    %v2165 = vld [vmem:[#allocation6 + $0x158] sm:$0xff]
    %v2166 = vld [vmem:[#allocation6 + $0x160] sm:$0xff]
    %v2167 = vld [vmem:[#allocation6 + $0x168] sm:$0xff]
    %v2168 = vld [vmem:[#allocation6 + $0x170] sm:$0xff]
    %v2169 = vld [vmem:[#allocation6 + $0x178] sm:$0xff]
    %v2170 = vld [vmem:[%s2] sm:$0x1]
    %v2172 = vlaneseq
    %v2173 = vshrl.u32 %v2172, 7
    %v2174 = vsub.s32 0, %v2173
    %v2175 = vrot.slane %v2170, %v2174
    %2177 = vmatprep.subr.mxu0 0.0
    %2178 = vmatpush1.msra.mxu0 %v2137
    %2179 = vmatprep.subr.mxu0 0.0
    %2180 = vmatpush1.msra.mxu0 %v2136
    %2181 = vmatprep.subr.mxu0 0.0
    %2182 = vmatpush1.msra.mxu0 %v2135
    %2183 = vmatprep.subr.mxu0 0.0
    %2184 = vmatpush1.msra.mxu0 %v2134
    %2185 = vmatprep.subr.mxu0 0.0
    %2186 = vmatpush1.msra.mxu0 %v2133
    %2187 = vmatprep.subr.mxu0 0.0
    %2188 = vmatpush1.msra.mxu0 %v2132
    %2189 = vmatprep.subr.mxu0 0.0
    %2190 = vmatpush1.msra.mxu0 %v2131
    %2191 = vmatprep.subr.mxu0 0.0
    %2192 = vmatpush1.msra.mxu0 %v2130
    %2193 = vmatprep.subr.mxu0 0.0
    %2194 = vmatpush1.msra.mxu0 %v2129
    %2195 = vmatprep.subr.mxu0 0.0
    %2196 = vmatpush1.msra.mxu0 %v2128
    %2197 = vmatprep.subr.mxu0 0.0
    %2198 = vmatpush1.msra.mxu0 %v2127
    %2199 = vmatprep.subr.mxu0 0.0
    %2200 = vmatpush1.msra.mxu0 %v2126
    %2201 = vmatprep.subr.mxu0 0.0
    %2202 = vmatpush1.msra.mxu0 %v2125
    %2203 = vmatprep.subr.mxu0 0.0
    %2204 = vmatpush1.msra.mxu0 %v2124
    %2205 = vmatprep.subr.mxu0 0.0
    %2206 = vmatpush1.msra.mxu0 %v2123
    %2207 = vmatprep.subr.mxu0 0.0
    %2208 = vmatpush1.msra.mxu0 %v2122
    %2209 = vmatprep.subr.mxu0 0.0
    %2210 = vmatpush2.msra.mxu0 %v2153
    %2211 = vmatprep.subr.mxu0 0.0
    %2212 = vmatpush2.msra.mxu0 %v2152
    %2213 = vmatprep.subr.mxu0 0.0
    %2214 = vmatpush2.msra.mxu0 %v2151
    %2215 = vmatprep.subr.mxu0 0.0
    %2216 = vmatpush2.msra.mxu0 %v2150
    %2217 = vmatprep.subr.mxu0 0.0
    %2218 = vmatpush2.msra.mxu0 %v2149
    %2219 = vmatprep.subr.mxu0 0.0
    %2220 = vmatpush2.msra.mxu0 %v2148
    %2221 = vmatprep.subr.mxu0 0.0
    %2222 = vmatpush2.msra.mxu0 %v2147
    %2223 = vmatprep.subr.mxu0 0.0
    %2224 = vmatpush2.msra.mxu0 %v2146
    %2225 = vmatprep.subr.mxu0 0.0
    %2226 = vmatpush2.msra.mxu0 %v2145
    %2227 = vmatprep.subr.mxu0 0.0
    %2228 = vmatpush2.msra.mxu0 %v2144
    %2229 = vmatprep.subr.mxu0 0.0
    %2230 = vmatpush2.msra.mxu0 %v2143
    %2231 = vmatprep.subr.mxu0 0.0
    %2232 = vmatpush2.msra.mxu0 %v2142
    %2233 = vmatprep.subr.mxu0 0.0
    %2234 = vmatpush2.msra.mxu0 %v2141
    %2235 = vmatprep.subr.mxu0 0.0
    %2236 = vmatpush2.msra.mxu0 %v2140
    %2237 = vmatprep.subr.mxu0 0.0
    %2238 = vmatpush2.msra.mxu0 %v2139
    %2239 = vmatprep.subr.mxu0 0.0
    %2240 = vmatpush2.msra.mxu0 %v2138
    %2241 = vmatprep.mubr.f32.mxu0 %v2029
    %2242 = vmatmul.mubr.f32.gmra.mxu0 %v2121
    %v2243 = vpop.f32.mrf.mxu0
    %v2244 = vadd.f32 %v2175, %v2243
    %v2245 = vpop.f32.mrf.mxu0
    %2246 = vdwg.mxu0
    %2247 = vmatprep.subr.mxu0 0.0
    %2248 = vmatpush1.msra.mxu0 %v2169
    %2249 = vmatprep.subr.mxu0 0.0
    %2250 = vmatpush1.msra.mxu0 %v2168
    %2251 = vmatprep.subr.mxu0 0.0
    %2252 = vmatpush1.msra.mxu0 %v2167
    %2253 = vmatprep.subr.mxu0 0.0
    %2254 = vmatpush1.msra.mxu0 %v2166
    %2255 = vmatprep.subr.mxu0 0.0
    %2256 = vmatpush1.msra.mxu0 %v2165
    %2257 = vmatprep.subr.mxu0 0.0
    %2258 = vmatpush1.msra.mxu0 %v2164
    %2259 = vmatprep.subr.mxu0 0.0
    %2260 = vmatpush1.msra.mxu0 %v2163
    %2261 = vmatprep.subr.mxu0 0.0
    %2262 = vmatpush1.msra.mxu0 %v2162
    %2263 = vmatprep.subr.mxu0 0.0
    %2264 = vmatpush1.msra.mxu0 %v2161
    %2265 = vmatprep.subr.mxu0 0.0
    %2266 = vmatpush1.msra.mxu0 %v2160
    %2267 = vmatprep.subr.mxu0 0.0
    %2268 = vmatpush1.msra.mxu0 %v2159
    %2269 = vmatprep.subr.mxu0 0.0
    %2270 = vmatpush1.msra.mxu0 %v2158
    %2271 = vmatprep.subr.mxu0 0.0
    %2272 = vmatpush1.msra.mxu0 %v2157
    %2273 = vmatprep.subr.mxu0 0.0
    %2274 = vmatpush1.msra.mxu0 %v2156
    %2275 = vmatprep.subr.mxu0 0.0
    %2276 = vmatpush1.msra.mxu0 %v2155
    %2277 = vmatprep.subr.mxu0 0.0
    %2278 = vmatpush1.msra.mxu0 %v2154
    %2279 = vmatprep.subr.mxu0 0.0
    %2280 = vmatpush2.msra.mxu0 0.0
    %2281 = vmatprep.subr.mxu0 0.0
    %2282 = vmatpush2.msra.mxu0 0.0
    %2283 = vmatprep.subr.mxu0 0.0
    %2284 = vmatpush2.msra.mxu0 0.0
    %2285 = vmatprep.subr.mxu0 0.0
    %2286 = vmatpush2.msra.mxu0 0.0
    %2287 = vmatprep.subr.mxu0 0.0
    %2288 = vmatpush2.msra.mxu0 0.0
    %2289 = vmatprep.subr.mxu0 0.0
    %2290 = vmatpush2.msra.mxu0 0.0
    %2291 = vmatprep.subr.mxu0 0.0
    %2292 = vmatpush2.msra.mxu0 0.0
    %2293 = vmatprep.subr.mxu0 0.0
    %2294 = vmatpush2.msra.mxu0 0.0
    %2295 = vmatprep.subr.mxu0 0.0
    %2296 = vmatpush2.msra.mxu0 0.0
    %2297 = vmatprep.subr.mxu0 0.0
    %2298 = vmatpush2.msra.mxu0 0.0
    %2299 = vmatprep.subr.mxu0 0.0
    %2300 = vmatpush2.msra.mxu0 0.0
    %2301 = vmatprep.subr.mxu0 0.0
    %2302 = vmatpush2.msra.mxu0 0.0
    %2303 = vmatprep.subr.mxu0 0.0
    %2304 = vmatpush2.msra.mxu0 0.0
    %2305 = vmatprep.subr.mxu0 0.0
    %2306 = vmatpush2.msra.mxu0 0.0
    %2307 = vmatprep.subr.mxu0 0.0
    %2308 = vmatpush2.msra.mxu0 0.0
    %2309 = vmatprep.subr.mxu0 0.0
    %2310 = vmatpush2.msra.mxu0 0.0
    %2311 = vmatprep.mubr.f32.mxu0 0.0
    %2312 = vmatmul.mubr.f32.gmra.mxu0 %v2031
    %v2313 = vpop.f32.mrf.mxu0
    %v2314 = vadd.f32 %v2244, %v2313
    %v2315 = vpop.f32.mrf.mxu0
    %2316 = vdwg.mxu0
    %v2317 = vmul.f32 %v2029, 0.8026
    %v2318 = vtanh.pop %v2314
    %v2319 = vmul.f32 %v2318, 0.042
    %v2320 = vadd.f32 %v2317, %v2319
    %v2321 = vmul.f32 %v2031, 0.1134
    %v2322 = vsub.f32 %v2320, %v2321
    %v2323 = vmul.f32 %v2322, 0.042
    %v2324 = vadd.f32 %v2031, %v2323
    %v2325 = vld [vmem:[#allocation8] sm:$0xff]
    %v2326 = vld [vmem:[#allocation8 + $0x8] sm:$0xff]
    %v2327 = vld [vmem:[#allocation8 + $0x10] sm:$0xff]
    %v2328 = vld [vmem:[#allocation8 + $0x18] sm:$0xff]
    %v2329 = vld [vmem:[#allocation8 + $0x20] sm:$0xff]
    %v2330 = vld [vmem:[#allocation8 + $0x28] sm:$0xff]
    %v2331 = vld [vmem:[#allocation8 + $0x30] sm:$0xff]
    %v2332 = vld [vmem:[#allocation8 + $0x38] sm:$0xff]
    %v2333 = vld [vmem:[#allocation8 + $0x40] sm:$0xff]
    %v2334 = vld [vmem:[#allocation8 + $0x48] sm:$0xff]
    %v2335 = vld [vmem:[#allocation8 + $0x50] sm:$0xff]
    %v2336 = vld [vmem:[#allocation8 + $0x58] sm:$0xff]
    %v2337 = vld [vmem:[#allocation8 + $0x60] sm:$0xff]
    %v2338 = vld [vmem:[#allocation8 + $0x68] sm:$0xff]
    %v2339 = vld [vmem:[#allocation8 + $0x70] sm:$0xff]
    %v2340 = vld [vmem:[#allocation8 + $0x78] sm:$0xff]
    %2341 = vmatprep.subr.mxu0 0.0
    %2342 = vmatpush1.msra.mxu0 %v2340
    %2343 = vmatprep.subr.mxu0 0.0
    %2344 = vmatpush1.msra.mxu0 %v2339
    %2345 = vmatprep.subr.mxu0 0.0
    %2346 = vmatpush1.msra.mxu0 %v2338
    %2347 = vmatprep.subr.mxu0 0.0
    %2348 = vmatpush1.msra.mxu0 %v2337
    %2349 = vmatprep.subr.mxu0 0.0
    %2350 = vmatpush1.msra.mxu0 %v2336
    %2351 = vmatprep.subr.mxu0 0.0
    %2352 = vmatpush1.msra.mxu0 %v2335
    %2353 = vmatprep.subr.mxu0 0.0
    %2354 = vmatpush1.msra.mxu0 %v2334
    %2355 = vmatprep.subr.mxu0 0.0
    %2356 = vmatpush1.msra.mxu0 %v2333
    %2357 = vmatprep.subr.mxu0 0.0
    %2358 = vmatpush1.msra.mxu0 %v2332
    %2359 = vmatprep.subr.mxu0 0.0
    %2360 = vmatpush1.msra.mxu0 %v2331
    %2361 = vmatprep.subr.mxu0 0.0
    %2362 = vmatpush1.msra.mxu0 %v2330
    %2363 = vmatprep.subr.mxu0 0.0
    %2364 = vmatpush1.msra.mxu0 %v2329
    %2365 = vmatprep.subr.mxu0 0.0
    %2366 = vmatpush1.msra.mxu0 %v2328
    %2367 = vmatprep.subr.mxu0 0.0
    %2368 = vmatpush1.msra.mxu0 %v2327
    %2369 = vmatprep.subr.mxu0 0.0
    %2370 = vmatpush1.msra.mxu0 %v2326
    %2371 = vmatprep.subr.mxu0 0.0
    %2372 = vmatpush1.msra.mxu0 %v2325
    %2373 = vmatprep.subr.mxu0 0.0
    %2374 = vmatpush2.msra.mxu0 0.0
    %2375 = vmatprep.subr.mxu0 0.0
    %2376 = vmatpush2.msra.mxu0 0.0
    %2377 = vmatprep.subr.mxu0 0.0
    %2378 = vmatpush2.msra.mxu0 0.0
    %2379 = vmatprep.subr.mxu0 0.0
    %2380 = vmatpush2.msra.mxu0 0.0
    %2381 = vmatprep.subr.mxu0 0.0
    %2382 = vmatpush2.msra.mxu0 0.0
    %2383 = vmatprep.subr.mxu0 0.0
    %2384 = vmatpush2.msra.mxu0 0.0
    %2385 = vmatprep.subr.mxu0 0.0
    %2386 = vmatpush2.msra.mxu0 0.0
    %2387 = vmatprep.subr.mxu0 0.0
    %2388 = vmatpush2.msra.mxu0 0.0
    %2389 = vmatprep.subr.mxu0 0.0
    %2390 = vmatpush2.msra.mxu0 0.0
    %2391 = vmatprep.subr.mxu0 0.0
    %2392 = vmatpush2.msra.mxu0 0.0
    %2393 = vmatprep.subr.mxu0 0.0
    %2394 = vmatpush2.msra.mxu0 0.0
    %2395 = vmatprep.subr.mxu0 0.0
    %2396 = vmatpush2.msra.mxu0 0.0
    %2397 = vmatprep.subr.mxu0 0.0
    %2398 = vmatpush2.msra.mxu0 0.0
    %2399 = vmatprep.subr.mxu0 0.0
    %2400 = vmatpush2.msra.mxu0 0.0
    %2401 = vmatprep.subr.mxu0 0.0
    %2402 = vmatpush2.msra.mxu0 0.0
    %2403 = vmatprep.subr.mxu0 0.0
    %2404 = vmatpush2.msra.mxu0 0.0
    %2405 = vmatprep.mubr.f32.mxu0 0.0
    %2406 = vmatmul.mubr.f32.gmra.mxu0 %v2324
    %v2407 = vpop.f32.mrf.mxu0
    %v2408 = vadd.f32 0.0, %v2407
    %v2409 = vpop.f32.mrf.mxu0
    %2410 = vdwg.mxu0
    %s2411 = scalar_lea.vmem [#allocation9], 56
    %2412 = vst [vmem:[%s2411] sm:$0xff] %v2408
    %2413 = vst [vmem:[#allocation2] sm:$0xff] %v2322
    %2414 = vst [vmem:[#allocation2 + $0x8] sm:$0xff] %v2324
    // Predicated region
    $region34: #{tpu_custom_call.1} parent=1 // pred_check
      %p2415 = pneg %p63
    $region35: #{tpu_custom_call.1} parent=1 // pred_check_branch
      %2417 = sbr.rel (%p2415) target = $region37
    $region36: #{tpu_custom_call.1} parent=1 // pred_region
      %2418 = vst [vmem:[#allocation10] sm:$0xff] %v2324
      %2419 = vst [vmem:[#allocation12] sm:$0xff] %v2322
    $region37: #{tpu_custom_call.1} parent=1 // pred_fallthru
      _
    // Predicated region
    $region38: #{tpu_custom_call.1} parent=1 // pred_check
      _
    $region39: #{tpu_custom_call.1} parent=1 // pred_check_branch
      %2421 = sbr.rel (0) target = $region41
    $region40: #{tpu_custom_call.1} parent=1 // pred_region
      %s2423 = ssub.s32 1024, 1024
      %2424 = vsyncadd [#allocation5], %s2423
      %s2425 = sshll.u32 [#allocation9], 4
      %s2426 = int_to_ptr.vmem [resolvable:$true] %s2425
      %2431 = dma.vmem_to_hbm [thread:$0]  %s2426, 1024, %s4, [#allocation5], 128, 128, 8
    $region41: #{tpu_custom_call.1} parent=1 // pred_fallthru
      _
    // Predicated region
    $region42: #{tpu_custom_call.1} parent=1 // pred_check
      _
    $region43: #{tpu_custom_call.1} parent=1 // pred_check_branch
      %2433 = sbr.rel (0) target = $region45
    $region44: #{tpu_custom_call.1} parent=1 // pred_region
      %s2435 = ssub.s32 128, 128
      %2436 = vsyncadd [#allocation11], %s2435
      %s2438 = sshll.u32 [#allocation10], 4
      %s2439 = int_to_ptr.vmem [resolvable:$true] %s2438
      %2441 = dma.vmem_to_hbm [thread:$0]  %s2439, 128, %s5, [#allocation11]
    $region45: #{tpu_custom_call.1} parent=1 // pred_fallthru
      _
    // Predicated region
    $region46: #{tpu_custom_call.1} parent=1 // pred_check
      _
    $region47: #{tpu_custom_call.1} parent=1 // pred_check_branch
      %2443 = sbr.rel (0) target = $region49
    $region48: #{tpu_custom_call.1} parent=1 // pred_region
      %s2445 = ssub.s32 128, 128
      %2446 = vsyncadd [#allocation11], %s2445
      %s2448 = sshll.u32 [#allocation12], 4
      %s2449 = int_to_ptr.vmem [resolvable:$true] %s2448
      %2451 = dma.vmem_to_hbm [thread:$0]  %s2449, 128, %s6, [#allocation11]
    $region49: #{tpu_custom_call.1} parent=1 // pred_fallthru
      _
    // Predicated region
    $region50: #{tpu_custom_call.1} parent=1 // pred_check
      _
    $region51: #{tpu_custom_call.1} parent=1 // pred_check_branch
      %2453 = sbr.rel (0) target = $region53
    $region52: #{tpu_custom_call.1} parent=1 // pred_region
      %2454 = dma.done [#allocation5], 1024
    $region53: #{tpu_custom_call.1} parent=1 // pred_fallthru
      _
    // Predicated region
    $region54: #{tpu_custom_call.1} parent=1 // pred_check
      _
    $region55: #{tpu_custom_call.1} parent=1 // pred_check_branch
      %2456 = sbr.rel (0) target = $region57
    $region56: #{tpu_custom_call.1} parent=1 // pred_region
      %2457 = dma.done [#allocation11], 128
    $region57: #{tpu_custom_call.1} parent=1 // pred_fallthru
      _
    // Predicated region
    $region58: #{tpu_custom_call.1} parent=1 // pred_check
      _
    $region59: #{tpu_custom_call.1} parent=1 // pred_check_branch
      %2459 = sbr.rel (0) target = $region61
    $region60: #{tpu_custom_call.1} parent=1 // pred_region
      %2460 = dma.done [#allocation11], 128
    $region61: #{tpu_custom_call.1} parent=1 // pred_fallthru
      _
    %2461 = vsyncpa [#allocation4], 1
    %2462 = vsyncpa [#allocation7], 1
    %2463 = vsyncpa [#allocation5], 1
    %2464 = vsyncpa [#allocation11], 1

</llo_original>
